<compile_context>
chip_gen: v6e
topology: v6e:2x2x1
jax: 0.10.0
libtpu: 0.0.40
codegen_flags: <defaults>
</compile_context>

<pallas_src>
import functools

import jax
import jax.numpy as jnp
import numpy as np
from jax import lax
from jax.experimental import pallas as pl
from jax.experimental.pallas import tpu as pltpu

# ---------------- configuration (small, synthetic) ----------------
B = 2          # batch
LQ = 8         # query length
LK = 8         # key/value length
Q_DIM = 32
K_DIM = 32
V_DIM = 32
NUM_HEADS = 4
HEAD_DIM = 16
HD = NUM_HEADS * HEAD_DIM   # 64
TAU = HEAD_DIM ** (-0.5)


def _ceil8(x):
    return ((x + 7) // 8) * 8


def prepare_params(params, *, num_heads, head_dim, batch):
    """Pack the eight (W, b) params into three kernel buffers.  Runs ONCE.

    Per-head weight slabs are laid out on the leading "group" axis g = h*batch + b
    so the kernel never slices the lane axis, and all projection biases ride inside
    the same buffer (fewer prologue DMAs).  All slice starts are 8-aligned.
    """
    wq, bq, wk, bk, wv, bv, wo, bo = params
    q_dim, k_dim, v_dim = wq.shape[0], wk.shape[0], wv.shape[0]
    o_dim = wo.shape[1]
    G = num_heads * batch
    f32 = jnp.float32

    def per_group_w(w, in_dim):
        # (in, H*D) -> (H, in, D) -> (G, in, D) with g = h*batch + b
        w3 = w.astype(f32).reshape(in_dim, num_heads, head_dim).transpose(1, 0, 2)
        return jnp.repeat(w3, batch, axis=0)

    def per_group_b(b):
        b3 = b.astype(f32).reshape(num_heads, 1, head_dim)
        return jnp.repeat(b3, batch, axis=0)

    segs, offs, cur = [], {}, 0
    for name, w, bias, in_dim in (("q", wq, bq, q_dim),
                                  ("k", wk, bk, k_dim),
                                  ("v", wv, bv, v_dim)):
        offs["w" + name] = cur
        segs.append(per_group_w(w, in_dim))
        cur += in_dim
        offs["b" + name] = cur
        segs.append(per_group_b(bias))
        cur += 1
        pad = _ceil8(cur) - cur                      # keep every slice start 8-aligned
        if pad:
            segs.append(jnp.zeros((G, pad, head_dim), f32))
            cur += pad
    w_in = jnp.concatenate(segs, axis=1)             # (G, cur, D)

    # Output projection per group (same slab for every b of a head): (G, D, O)
    wo_g = jnp.repeat(wo.astype(f32).reshape(num_heads, head_dim, o_dim), batch, axis=0)
    bo3 = bo.astype(f32).reshape(1, 1, o_dim)

    layout = dict(num_heads=num_heads, head_dim=head_dim, batch=batch,
                  q_dim=q_dim, k_dim=k_dim, v_dim=v_dim, o_dim=o_dim, offs=offs)
    return (w_in, wo_g, bo3), layout


def _mha_kernel(q_ref, k_ref, v_ref, w_in_ref, wo_ref, bo_ref, o_ref, *, layout, tau):
    """Whole (tiny) problem in one grid-less invocation; everything sits in VMEM."""
    H = layout["num_heads"]
    Bc = layout["batch"]
    q_dim, k_dim, v_dim = layout["q_dim"], layout["k_dim"], layout["v_dim"]
    offs = layout["offs"]
    f32 = jnp.float32

    def bmm(a, b):
        # (G, M, K) @ (G, K, N) -> (G, M, N), single-leading-batch MXU contraction.
        return lax.dot_general(a, b, (((2,), (1,)), ((0,), (0,))),
                               preferred_element_type=f32)

    def group(x):
        # (B, L, IN) -> (G, L, IN): leading-axis tiling only; group g = h*B + b.
        return jnp.concatenate([x] * H, axis=0)

    # Q/K/V projections: one batched MXU chain per tensor, bias rows folded into the
    # same packed weight buffer (no separate bias DMAs, no lane slicing anywhere).
    qh = (bmm(group(q_ref[...]), w_in_ref[:, offs["wq"]:offs["wq"] + q_dim, :])
          + w_in_ref[:, offs["bq"]:offs["bq"] + 1, :])                     # (G, LQ, D)
    kh = (bmm(group(k_ref[...]), w_in_ref[:, offs["wk"]:offs["wk"] + k_dim, :])
          + w_in_ref[:, offs["bk"]:offs["bk"] + 1, :])                     # (G, LK, D)
    vh = (bmm(group(v_ref[...]), w_in_ref[:, offs["wv"]:offs["wv"] + v_dim, :])
          + w_in_ref[:, offs["bv"]:offs["bv"] + 1, :])                     # (G, LK, D)

    # Scores + ONE softmax chain over all (head, batch) groups.
    # mask=None path; dropout p=0.0 (applied to logits in the module) is a no-op.
    s = lax.dot_general(qh, kh, (((2,), (2,)), ((0,), (0,))),
                        preferred_element_type=f32) * tau                 # (G, LQ, LK)
    m = jnp.max(s, axis=-1, keepdims=True)
    e = jnp.exp(s - m)
    p = e * pl.reciprocal(jnp.sum(e, axis=-1, keepdims=True), approx=False)

    ctx = bmm(p, vh)                                                       # (G, LQ, D)

    # Output projection: per-group (D, O) matmul, then reduce over heads with
    # leading-dim slices + adds (no lane concat of per-head contexts).
    y = bmm(ctx, wo_ref[...])                                              # (G, LQ, O)
    out = y[0:Bc]
    for h in range(1, H):
        out = out + y[h * Bc:(h + 1) * Bc]                                 # (B, LQ, O)
    o_ref[...] = out + bo_ref[...]


def multi_head_attention(q, k, v, prepared):
    (w_in, wo_g, bo3), layout = prepared
    batch, lq, q_dim = q.shape
    _, lk, k_dim = k.shape
    _, lk2, v_dim = v.shape
    assert batch == layout["batch"], "prepare_params was built for a different batch"
    assert (q_dim, k_dim, v_dim) == (layout["q_dim"], layout["k_dim"], layout["v_dim"])
    assert lk == lk2
    o_dim = layout["o_dim"]
    tau = layout["head_dim"] ** (-0.5)

    kernel = functools.partial(_mha_kernel, layout=layout, tau=tau)
    out = pl.pallas_call(
        kernel,
        out_shape=jax.ShapeDtypeStruct((batch, lq, o_dim), jnp.float32),
        in_specs=[pl.BlockSpec(memory_space=pltpu.MemorySpace.VMEM)] * 6,
        out_specs=pl.BlockSpec(memory_space=pltpu.MemorySpace.VMEM),
    )(q.astype(jnp.float32), k.astype(jnp.float32), v.astype(jnp.float32),
      w_in, wo_g, bo3)
    return out


def reference(q, k, v, params):
    """Pure-JAX f32 reference mirroring the torch forward (mask=None, dropout=0)."""
    wq, bq, wk, bk, wv, bv, wo, bo = params
    batch, lq, _ = q.shape
    _, lk, _ = k.shape
    H, D = NUM_HEADS, HEAD_DIM
    qp = (q @ wq + bq).reshape(batch, lq, H, D).transpose(0, 2, 1, 3)   # (B,H,LQ,D)
    kp = (k @ wk + bk).reshape(batch, lk, H, D).transpose(0, 2, 1, 3)   # (B,H,LK,D)
    vp = (v @ wv + bv).reshape(batch, lk, H, D).transpose(0, 2, 1, 3)   # (B,H,LK,D)
    att = jnp.einsum('bhqd,bhkd->bhqk', qp, kp) * TAU
    att = jax.nn.softmax(att, axis=-1)
    ctx = jnp.einsum('bhqk,bhkd->bhqd', att, vp)                        # (B,H,LQ,D)
    ctx = ctx.transpose(0, 2, 1, 3).reshape(batch, lq, H * D)
    return ctx @ wo + bo


def init_params(key):
    ks = jax.random.split(key, 8)
    scale = 0.05
    wq = jax.random.normal(ks[0], (Q_DIM, HD), jnp.float32) * scale
    bq = jax.random.normal(ks[1], (1, HD), jnp.float32) * scale
    wk = jax.random.normal(ks[2], (K_DIM, HD), jnp.float32) * scale
    bk = jax.random.normal(ks[3], (1, HD), jnp.float32) * scale
    wv = jax.random.normal(ks[4], (V_DIM, HD), jnp.float32) * scale
    bv = jax.random.normal(ks[5], (1, HD), jnp.float32) * scale
    wo = jax.random.normal(ks[6], (HD, Q_DIM), jnp.float32) * scale
    bo = jax.random.normal(ks[7], (1, Q_DIM), jnp.float32) * scale
    return (wq, bq, wk, bk, wv, bv, wo, bo)


if __name__ == "__main__":
    key = jax.random.PRNGKey(0)
    kq, kk, kv, kp = jax.random.split(key, 4)
    q = jax.random.normal(kq, (B, LQ, Q_DIM), jnp.float32)
    k = jax.random.normal(kk, (B, LK, K_DIM), jnp.float32)
    v = jax.random.normal(kv, (B, LK, V_DIM), jnp.float32)
    params = init_params(kp)

    # Weight packing runs once, outside the per-call path (weights are static).
    prepared = prepare_params(params, num_heads=NUM_HEADS, head_dim=HEAD_DIM, batch=B)

    out = multi_head_attention(q, k, v, prepared)
    out = jax.block_until_ready(out)

    ref = reference(q, k, v, params)
    # f32 operands end-to-end + exact softmax reciprocal -> tighter check than the
    # previous bf16 version (still leaves headroom for MXU f32 pass rounding).
    np.testing.assert_allclose(np.asarray(out), np.asarray(ref), rtol=1e-2, atol=1e-2)

    print("KERNEL_OK")
</pallas_src>

<mosaic_0001>
module attributes {stable_mosaic.version = 11 : i64} {
  func.func @_mha_kernel(%arg0: memref<2x8x32xf32, #tpu.memory_space<vmem>>, %arg1: memref<2x8x32xf32, #tpu.memory_space<vmem>>, %arg2: memref<2x8x32xf32, #tpu.memory_space<vmem>>, %arg3: memref<8x120x16xf32, #tpu.memory_space<vmem>>, %arg4: memref<8x16x32xf32, #tpu.memory_space<vmem>>, %arg5: memref<1x1x32xf32, #tpu.memory_space<vmem>>, %arg6: memref<2x8x32xf32, #tpu.memory_space<vmem>>) attributes {dimension_semantics = [], scalar_prefetch = 0 : i64, scratch_operands = 0 : i64, tpu.core_type = #tpu.core_type<tc>} {
    %c0 = arith.constant 0 : index
    %c0_0 = arith.constant 0 : index
    %c0_1 = arith.constant 0 : index
    %0 = vector.load %arg0[%c0, %c0_0, %c0_1] : memref<2x8x32xf32, #tpu.memory_space<vmem>>, vector<2x8x32xf32>
    %1 = tpu.concatenate %0, %0, %0, %0 in 0 : vector<2x8x32xf32>, vector<2x8x32xf32>, vector<2x8x32xf32>, vector<2x8x32xf32> -> vector<8x8x32xf32>
    %c0_2 = arith.constant 0 : index
    %c0_3 = arith.constant 0 : index
    %c0_4 = arith.constant 0 : index
    %2 = vector.load %arg3[%c0_2, %c0_3, %c0_4] : memref<8x120x16xf32, #tpu.memory_space<vmem>>, vector<8x32x16xf32>
    %cst = arith.constant dense<0.000000e+00> : vector<8x8x16xf32>
    %3 = tpu.matmul %1, %2, %cst {dimension_numbers = #tpu.dot_dimension_numbers<[2], [1], [1], [2], [0, 0, 0, 1, 1, 2], [0], [0]>} : vector<8x8x32xf32>, vector<8x32x16xf32>, vector<8x8x16xf32> -> vector<8x8x16xf32>
    %c0_5 = arith.constant 0 : index
    %c32 = arith.constant 32 : index
    %c0_6 = arith.constant 0 : index
    %4 = vector.load %arg3[%c0_5, %c32, %c0_6] : memref<8x120x16xf32, #tpu.memory_space<vmem>>, vector<8x1x16xf32>
    %5 = vector.broadcast %4 : vector<8x1x16xf32> to vector<8x8x16xf32>
    %6 = arith.addf %3, %5 : vector<8x8x16xf32>
    %c0_7 = arith.constant 0 : index
    %c0_8 = arith.constant 0 : index
    %c0_9 = arith.constant 0 : index
    %7 = vector.load %arg1[%c0_7, %c0_8, %c0_9] : memref<2x8x32xf32, #tpu.memory_space<vmem>>, vector<2x8x32xf32>
    %8 = tpu.concatenate %7, %7, %7, %7 in 0 : vector<2x8x32xf32>, vector<2x8x32xf32>, vector<2x8x32xf32>, vector<2x8x32xf32> -> vector<8x8x32xf32>
    %c0_10 = arith.constant 0 : index
    %c40 = arith.constant 40 : index
    %c0_11 = arith.constant 0 : index
    %9 = vector.load %arg3[%c0_10, %c40, %c0_11] : memref<8x120x16xf32, #tpu.memory_space<vmem>>, vector<8x32x16xf32>
    %cst_12 = arith.constant dense<0.000000e+00> : vector<8x8x16xf32>
    %10 = tpu.matmul %8, %9, %cst_12 {dimension_numbers = #tpu.dot_dimension_numbers<[2], [1], [1], [2], [0, 0, 0, 1, 1, 2], [0], [0]>} : vector<8x8x32xf32>, vector<8x32x16xf32>, vector<8x8x16xf32> -> vector<8x8x16xf32>
    %c0_13 = arith.constant 0 : index
    %c72 = arith.constant 72 : index
    %c0_14 = arith.constant 0 : index
    %11 = vector.load %arg3[%c0_13, %c72, %c0_14] : memref<8x120x16xf32, #tpu.memory_space<vmem>>, vector<8x1x16xf32>
    %12 = vector.broadcast %11 : vector<8x1x16xf32> to vector<8x8x16xf32>
    %13 = arith.addf %10, %12 : vector<8x8x16xf32>
    %c0_15 = arith.constant 0 : index
    %c0_16 = arith.constant 0 : index
    %c0_17 = arith.constant 0 : index
    %14 = vector.load %arg2[%c0_15, %c0_16, %c0_17] : memref<2x8x32xf32, #tpu.memory_space<vmem>>, vector<2x8x32xf32>
    %15 = tpu.concatenate %14, %14, %14, %14 in 0 : vector<2x8x32xf32>, vector<2x8x32xf32>, vector<2x8x32xf32>, vector<2x8x32xf32> -> vector<8x8x32xf32>
    %c0_18 = arith.constant 0 : index
    %c80 = arith.constant 80 : index
    %c0_19 = arith.constant 0 : index
    %16 = vector.load %arg3[%c0_18, %c80, %c0_19] : memref<8x120x16xf32, #tpu.memory_space<vmem>>, vector<8x32x16xf32>
    %cst_20 = arith.constant dense<0.000000e+00> : vector<8x8x16xf32>
    %17 = tpu.matmul %15, %16, %cst_20 {dimension_numbers = #tpu.dot_dimension_numbers<[2], [1], [1], [2], [0, 0, 0, 1, 1, 2], [0], [0]>} : vector<8x8x32xf32>, vector<8x32x16xf32>, vector<8x8x16xf32> -> vector<8x8x16xf32>
    %c0_21 = arith.constant 0 : index
    %c112 = arith.constant 112 : index
    %c0_22 = arith.constant 0 : index
    %18 = vector.load %arg3[%c0_21, %c112, %c0_22] : memref<8x120x16xf32, #tpu.memory_space<vmem>>, vector<8x1x16xf32>
    %19 = vector.broadcast %18 : vector<8x1x16xf32> to vector<8x8x16xf32>
    %20 = arith.addf %17, %19 : vector<8x8x16xf32>
    %cst_23 = arith.constant dense<0.000000e+00> : vector<8x8x8xf32>
    %21 = tpu.matmul %6, %13, %cst_23 {dimension_numbers = #tpu.dot_dimension_numbers<[2], [2], [1], [1], [0, 0, 0, 1, 1, 1], [0], [0]>} : vector<8x8x16xf32>, vector<8x8x16xf32>, vector<8x8x8xf32> -> vector<8x8x8xf32>
    %cst_24 = arith.constant 2.500000e-01 : f32
    %22 = vector.broadcast %cst_24 : f32 to vector<8x8x8xf32>
    %23 = arith.mulf %21, %22 : vector<8x8x8xf32>
    %cst_25 = arith.constant dense<0xFF800000> : vector<8x8xf32>
    %24 = vector.multi_reduction <maximumf>, %23, %cst_25 [2] : vector<8x8x8xf32> to vector<8x8xf32>
    %25 = vector.shape_cast %24 : vector<8x8xf32> to vector<8x8x1xf32>
    %26 = vector.broadcast %25 : vector<8x8x1xf32> to vector<8x8x8xf32>
    %27 = arith.subf %23, %26 : vector<8x8x8xf32>
    %28 = math.exp %27 : vector<8x8x8xf32>
    %cst_26 = arith.constant dense<0.000000e+00> : vector<8x8xf32>
    %29 = vector.multi_reduction <add>, %28, %cst_26 [2] : vector<8x8x8xf32> to vector<8x8xf32>
    %30 = vector.shape_cast %29 : vector<8x8xf32> to vector<8x8x1xf32>
    %31 = tpu.reciprocal %30 : vector<8x8x1xf32> -> vector<8x8x1xf32>
    %32 = vector.broadcast %31 : vector<8x8x1xf32> to vector<8x8x8xf32>
    %33 = arith.mulf %28, %32 : vector<8x8x8xf32>
    %cst_27 = arith.constant dense<0.000000e+00> : vector<8x8x16xf32>
    %34 = tpu.matmul %33, %20, %cst_27 {dimension_numbers = #tpu.dot_dimension_numbers<[2], [1], [1], [2], [0, 0, 0, 1, 1, 2], [0], [0]>} : vector<8x8x8xf32>, vector<8x8x16xf32>, vector<8x8x16xf32> -> vector<8x8x16xf32>
    %c0_28 = arith.constant 0 : index
    %c0_29 = arith.constant 0 : index
    %c0_30 = arith.constant 0 : index
    %35 = vector.load %arg4[%c0_28, %c0_29, %c0_30] : memref<8x16x32xf32, #tpu.memory_space<vmem>>, vector<8x16x32xf32>
    %cst_31 = arith.constant dense<0.000000e+00> : vector<8x8x32xf32>
    %36 = tpu.matmul %34, %35, %cst_31 {dimension_numbers = #tpu.dot_dimension_numbers<[2], [1], [1], [2], [0, 0, 0, 1, 1, 2], [0], [0]>} : vector<8x8x16xf32>, vector<8x16x32xf32>, vector<8x8x32xf32> -> vector<8x8x32xf32>
    %37 = vector.extract_strided_slice %36 {offsets = [0, 0, 0], sizes = [2, 8, 32], strides = [1, 1, 1]} : vector<8x8x32xf32> to vector<2x8x32xf32>
    %38 = vector.extract_strided_slice %36 {offsets = [2, 0, 0], sizes = [2, 8, 32], strides = [1, 1, 1]} : vector<8x8x32xf32> to vector<2x8x32xf32>
    %39 = arith.addf %37, %38 : vector<2x8x32xf32>
    %40 = vector.extract_strided_slice %36 {offsets = [4, 0, 0], sizes = [2, 8, 32], strides = [1, 1, 1]} : vector<8x8x32xf32> to vector<2x8x32xf32>
    %41 = arith.addf %39, %40 : vector<2x8x32xf32>
    %42 = vector.extract_strided_slice %36 {offsets = [6, 0, 0], sizes = [2, 8, 32], strides = [1, 1, 1]} : vector<8x8x32xf32> to vector<2x8x32xf32>
    %43 = arith.addf %41, %42 : vector<2x8x32xf32>
    %c0_32 = arith.constant 0 : index
    %c0_33 = arith.constant 0 : index
    %c0_34 = arith.constant 0 : index
    %44 = vector.load %arg5[%c0_32, %c0_33, %c0_34] : memref<1x1x32xf32, #tpu.memory_space<vmem>>, vector<1x1x32xf32>
    %45 = vector.broadcast %44 : vector<1x1x32xf32> to vector<2x8x32xf32>
    %46 = arith.addf %43, %45 : vector<2x8x32xf32>
    %c0_35 = arith.constant 0 : index
    %c0_36 = arith.constant 0 : index
    %c0_37 = arith.constant 0 : index
    %47 = vector.load %arg6[%c0_35, %c0_36, %c0_37] : memref<2x8x32xf32, #tpu.memory_space<vmem>>, vector<2x8x32xf32>
    tpu.vector_store %arg6[%c0_35, %c0_36, %c0_37], %46 {strides = array<i32>} : memref<2x8x32xf32, #tpu.memory_space<vmem>>, vector<2x8x32xf32>,
    return
  }
}

</mosaic_0001>

<llo_original>
// kernel: tpu_custom_call.1
$region0: #{tpu_custom_call.1}
  #allocation0 [shape = 'u32[]', space=smem, size = 0x4, offset = 0x4, fixed_abs, tag = 'smem constant byte address 0x4 - core index']
  #allocation1 [shape = 'u32[144,128]{1,0:T(1,128)}', space=vmem, size = 0x12000, scoped, tag = 'internal scratch']
  %s0 = inlined_call_operand.vmem [shape: f32[2,8,32], index: 0, kind: input, shape index: {}]
  %s1 = inlined_call_operand.vmem [shape: f32[2,8,32], index: 1, kind: input, shape index: {}]
  %s2 = inlined_call_operand.vmem [shape: f32[2,8,32], index: 2, kind: input, shape index: {}]
  %s3 = inlined_call_operand.vmem [shape: f32[8,120,16], index: 3, kind: input, shape index: {}]
  %s4 = inlined_call_operand.vmem [shape: f32[8,16,32], index: 4, kind: input, shape index: {}]
  %s5 = inlined_call_operand.vmem [shape: f32[1,1,32], index: 5, kind: input, shape index: {}]
  %s6 = inlined_call_operand.hbm [shape: f32[2,8,32], index: 6, kind: output, shape index: {}]
  %s7 = sld [smem:[#allocation0]]
  $region34: #{tpu_custom_call.1} parent=0
    _
  %s9 = ssub.s32 1, %s7
  %s10 = scalar_select 0, %s9, %s7
  $region1: #{tpu_custom_call.1} parent=0
    #allocation2 [shape = 'u8[8192]{0}', space=vmem, size = 0x2000, scoped, tag = 'output window, operand 0, single buffered']
    #allocation3 [shape = 's32[1]{0}', space=sflag, size = 0x4, scoped, tag = 'scoped memory for tpu_custom_call.1']
    %11 = vsyncpa [#allocation3], 0
    // Predicated region
    $region2: #{tpu_custom_call.1} parent=1 // pred_check
      _
    $region3: #{tpu_custom_call.1} parent=1 // pred_check_branch
      %13 = sbr.rel (0) target = $region5
    $region4: #{tpu_custom_call.1} parent=1 // pred_region
      _
    $region5: #{tpu_custom_call.1} parent=1 // pred_fallthru
      _
    // Predicated region
    $region6: #{tpu_custom_call.1} parent=1 // pred_check
      _
    $region7: #{tpu_custom_call.1} parent=1 // pred_check_branch
      %15 = sbr.rel (0) target = $region9
    $region8: #{tpu_custom_call.1} parent=1 // pred_region
      _
    $region9: #{tpu_custom_call.1} parent=1 // pred_fallthru
      _
    // Predicated region
    $region10: #{tpu_custom_call.1} parent=1 // pred_check
      _
    $region11: #{tpu_custom_call.1} parent=1 // pred_check_branch
      %17 = sbr.rel (0) target = $region13
    $region12: #{tpu_custom_call.1} parent=1 // pred_region
      _
    $region13: #{tpu_custom_call.1} parent=1 // pred_fallthru
      _
    // Predicated region
    $region14: #{tpu_custom_call.1} parent=1 // pred_check
      _
    $region15: #{tpu_custom_call.1} parent=1 // pred_check_branch
      %19 = sbr.rel (0) target = $region17
    $region16: #{tpu_custom_call.1} parent=1 // pred_region
      _
    $region17: #{tpu_custom_call.1} parent=1 // pred_fallthru
      _
    // Predicated region
    $region18: #{tpu_custom_call.1} parent=1 // pred_check
      _
    $region19: #{tpu_custom_call.1} parent=1 // pred_check_branch
      %21 = sbr.rel (0) target = $region21
    $region20: #{tpu_custom_call.1} parent=1 // pred_region
      _
    $region21: #{tpu_custom_call.1} parent=1 // pred_fallthru
      _
    // Predicated region
    $region22: #{tpu_custom_call.1} parent=1 // pred_check
      _
    $region23: #{tpu_custom_call.1} parent=1 // pred_check_branch
      %23 = sbr.rel (0) target = $region25
    $region24: #{tpu_custom_call.1} parent=1 // pred_region
      _
    $region25: #{tpu_custom_call.1} parent=1 // pred_fallthru
      _
    %v24 = vld [vmem:[%s0] sm:$0xff]
    %v25 = vld [vmem:[%s0 + $0x8] sm:$0xff]
    %v26 = vld [vmem:[%s3] sm:$0xff]
    %v27 = vld [vmem:[%s3 + $0x8] sm:$0xff]
    %v28 = vld [vmem:[%s3 + $0x10] sm:$0xff]
    %v29 = vld [vmem:[%s3 + $0x18] sm:$0xff]
    %v30 = vld [vmem:[%s3 + $0x78] sm:$0xff]
    %v31 = vld [vmem:[%s3 + $0x80] sm:$0xff]
    %v32 = vld [vmem:[%s3 + $0x88] sm:$0xff]
    %v33 = vld [vmem:[%s3 + $0x90] sm:$0xff]
    %v34 = vld [vmem:[%s3 + $0xf0] sm:$0xff]
    %v35 = vld [vmem:[%s3 + $0xf8] sm:$0xff]
    %v36 = vld [vmem:[%s3 + $0x100] sm:$0xff]
    %v37 = vld [vmem:[%s3 + $0x108] sm:$0xff]
    %v38 = vld [vmem:[%s3 + $0x168] sm:$0xff]
    %v39 = vld [vmem:[%s3 + $0x170] sm:$0xff]
    %v40 = vld [vmem:[%s3 + $0x178] sm:$0xff]
    %v41 = vld [vmem:[%s3 + $0x180] sm:$0xff]
    %v42 = vld [vmem:[%s3 + $0x1e0] sm:$0xff]
    %v43 = vld [vmem:[%s3 + $0x1e8] sm:$0xff]
    %v44 = vld [vmem:[%s3 + $0x1f0] sm:$0xff]
    %v45 = vld [vmem:[%s3 + $0x1f8] sm:$0xff]
    %v46 = vld [vmem:[%s3 + $0x258] sm:$0xff]
    %v47 = vld [vmem:[%s3 + $0x260] sm:$0xff]
    %v48 = vld [vmem:[%s3 + $0x268] sm:$0xff]
    %v49 = vld [vmem:[%s3 + $0x270] sm:$0xff]
    %v50 = vld [vmem:[%s3 + $0x2d0] sm:$0xff]
    %v51 = vld [vmem:[%s3 + $0x2d8] sm:$0xff]
    %v52 = vld [vmem:[%s3 + $0x2e0] sm:$0xff]
    %v53 = vld [vmem:[%s3 + $0x2e8] sm:$0xff]
    %v54 = vld [vmem:[%s3 + $0x348] sm:$0xff]
    %v55 = vld [vmem:[%s3 + $0x350] sm:$0xff]
    %v56 = vld [vmem:[%s3 + $0x358] sm:$0xff]
    %v57 = vld [vmem:[%s3 + $0x360] sm:$0xff]
    %v58 = vld [vmem:[%s3 + $0x20] sm:$0x1]
    %v59 = vld [vmem:[%s3 + $0x98] sm:$0x1]
    %v60 = vld [vmem:[%s3 + $0x110] sm:$0x1]
    %v61 = vld [vmem:[%s3 + $0x188] sm:$0x1]
    %v62 = vld [vmem:[%s3 + $0x200] sm:$0x1]
    %v63 = vld [vmem:[%s3 + $0x278] sm:$0x1]
    %v64 = vld [vmem:[%s3 + $0x2f0] sm:$0x1]
    %v65 = vld [vmem:[%s3 + $0x368] sm:$0x1]
    %v66 = vlaneseq
    %v67 = vshrl.u32 %v66, 7
    %v68 = vsub.s32 0, %v67
    %v69 = vrot.slane %v58, %v68
    %v70 = vlaneseq
    %v71 = vshrl.u32 %v70, 7
    %v72 = vsub.s32 0, %v71
    %v73 = vrot.slane %v59, %v72
    %v74 = vlaneseq
    %v75 = vshrl.u32 %v74, 7
    %v76 = vsub.s32 0, %v75
    %v77 = vrot.slane %v60, %v76
    %v78 = vlaneseq
    %v79 = vshrl.u32 %v78, 7
    %v80 = vsub.s32 0, %v79
    %v81 = vrot.slane %v61, %v80
    %v82 = vlaneseq
    %v83 = vshrl.u32 %v82, 7
    %v84 = vsub.s32 0, %v83
    %v85 = vrot.slane %v62, %v84
    %v86 = vlaneseq
    %v87 = vshrl.u32 %v86, 7
    %v88 = vsub.s32 0, %v87
    %v89 = vrot.slane %v63, %v88
    %v90 = vlaneseq
    %v91 = vshrl.u32 %v90, 7
    %v92 = vsub.s32 0, %v91
    %v93 = vrot.slane %v64, %v92
    %v94 = vlaneseq
    %v95 = vshrl.u32 %v94, 7
    %v96 = vsub.s32 0, %v95
    %v97 = vrot.slane %v65, %v96
    %vm98 = vcmask 261120
    %v100 = vsel %vm98, %v24, 0
    %102 = vmatprep.subr.mxu0 0.0
    %103 = vmatpush1.msra.mxu0 0.0
    %104 = vmatprep.subr.mxu0 0.0
    %105 = vmatpush1.msra.mxu0 0.0
    %106 = vmatprep.subr.mxu0 0.0
    %107 = vmatpush1.msra.mxu0 0.0
    %108 = vmatprep.subr.mxu0 0.0
    %109 = vmatpush1.msra.mxu0 0.0
    %110 = vmatprep.subr.mxu0 0.0
    %111 = vmatpush1.msra.mxu0 0.0
    %112 = vmatprep.subr.mxu0 0.0
    %113 = vmatpush1.msra.mxu0 0.0
    %114 = vmatprep.subr.mxu0 0.0
    %115 = vmatpush1.msra.mxu0 0.0
    %116 = vmatprep.subr.mxu0 0.0
    %117 = vmatpush1.msra.mxu0 0.0
    %118 = vmatprep.subr.mxu0 0.0
    %119 = vmatpush1.msra.mxu0 0.0
    %120 = vmatprep.subr.mxu0 0.0
    %121 = vmatpush1.msra.mxu0 0.0
    %122 = vmatprep.subr.mxu0 0.0
    %123 = vmatpush1.msra.mxu0 0.0
    %124 = vmatprep.subr.mxu0 0.0
    %125 = vmatpush1.msra.mxu0 0.0
    %126 = vmatprep.subr.mxu0 0.0
    %127 = vmatpush1.msra.mxu0 %v29
    %128 = vmatprep.subr.mxu0 0.0
    %129 = vmatpush1.msra.mxu0 %v28
    %130 = vmatprep.subr.mxu0 0.0
    %131 = vmatpush1.msra.mxu0 %v27
    %132 = vmatprep.subr.mxu0 0.0
    %133 = vmatpush1.msra.mxu0 %v26
    %134 = vmatprep.subr.mxu0 0.0
    %135 = vmatpush2.msra.mxu0 0.0
    %136 = vmatprep.subr.mxu0 0.0
    %137 = vmatpush2.msra.mxu0 0.0
    %138 = vmatprep.subr.mxu0 0.0
    %139 = vmatpush2.msra.mxu0 0.0
    %140 = vmatprep.subr.mxu0 0.0
    %141 = vmatpush2.msra.mxu0 0.0
    %142 = vmatprep.subr.mxu0 0.0
    %143 = vmatpush2.msra.mxu0 0.0
    %144 = vmatprep.subr.mxu0 0.0
    %145 = vmatpush2.msra.mxu0 0.0
    %146 = vmatprep.subr.mxu0 0.0
    %147 = vmatpush2.msra.mxu0 0.0
    %148 = vmatprep.subr.mxu0 0.0
    %149 = vmatpush2.msra.mxu0 0.0
    %150 = vmatprep.subr.mxu0 0.0
    %151 = vmatpush2.msra.mxu0 0.0
    %152 = vmatprep.subr.mxu0 0.0
    %153 = vmatpush2.msra.mxu0 0.0
    %154 = vmatprep.subr.mxu0 0.0
    %155 = vmatpush2.msra.mxu0 0.0
    %156 = vmatprep.subr.mxu0 0.0
    %157 = vmatpush2.msra.mxu0 0.0
    %158 = vmatprep.subr.mxu0 0.0
    %159 = vmatpush2.msra.mxu0 0.0
    %160 = vmatprep.subr.mxu0 0.0
    %161 = vmatpush2.msra.mxu0 0.0
    %162 = vmatprep.subr.mxu0 0.0
    %163 = vmatpush2.msra.mxu0 0.0
    %164 = vmatprep.subr.mxu0 0.0
    %165 = vmatpush2.msra.mxu0 0.0
    %166 = vmatprep.mubr.f32.mxu0 0.0
    %167 = vmatmul.mubr.f32.gmra.mxu0 %v100
    %v168 = vpop.f32.mrf.mxu0
    %v169 = vadd.f32 %v69, %v168
    %v170 = vpop.f32.mrf.mxu0
    %171 = vdwg.mxu0
    %v173 = vsel %vm98, %v25, 0
    %175 = vmatprep.subr.mxu0 0.0
    %176 = vmatpush1.msra.mxu0 0.0
    %177 = vmatprep.subr.mxu0 0.0
    %178 = vmatpush1.msra.mxu0 0.0
    %179 = vmatprep.subr.mxu0 0.0
    %180 = vmatpush1.msra.mxu0 0.0
    %181 = vmatprep.subr.mxu0 0.0
    %182 = vmatpush1.msra.mxu0 0.0
    %183 = vmatprep.subr.mxu0 0.0
    %184 = vmatpush1.msra.mxu0 0.0
    %185 = vmatprep.subr.mxu0 0.0
    %186 = vmatpush1.msra.mxu0 0.0
    %187 = vmatprep.subr.mxu0 0.0
    %188 = vmatpush1.msra.mxu0 0.0
    %189 = vmatprep.subr.mxu0 0.0
    %190 = vmatpush1.msra.mxu0 0.0
    %191 = vmatprep.subr.mxu0 0.0
    %192 = vmatpush1.msra.mxu0 0.0
    %193 = vmatprep.subr.mxu0 0.0
    %194 = vmatpush1.msra.mxu0 0.0
    %195 = vmatprep.subr.mxu0 0.0
    %196 = vmatpush1.msra.mxu0 0.0
    %197 = vmatprep.subr.mxu0 0.0
    %198 = vmatpush1.msra.mxu0 0.0
    %199 = vmatprep.subr.mxu0 0.0
    %200 = vmatpush1.msra.mxu0 %v33
    %201 = vmatprep.subr.mxu0 0.0
    %202 = vmatpush1.msra.mxu0 %v32
    %203 = vmatprep.subr.mxu0 0.0
    %204 = vmatpush1.msra.mxu0 %v31
    %205 = vmatprep.subr.mxu0 0.0
    %206 = vmatpush1.msra.mxu0 %v30
    %207 = vmatprep.subr.mxu0 0.0
    %208 = vmatpush2.msra.mxu0 0.0
    %209 = vmatprep.subr.mxu0 0.0
    %210 = vmatpush2.msra.mxu0 0.0
    %211 = vmatprep.subr.mxu0 0.0
    %212 = vmatpush2.msra.mxu0 0.0
    %213 = vmatprep.subr.mxu0 0.0
    %214 = vmatpush2.msra.mxu0 0.0
    %215 = vmatprep.subr.mxu0 0.0
    %216 = vmatpush2.msra.mxu0 0.0
    %217 = vmatprep.subr.mxu0 0.0
    %218 = vmatpush2.msra.mxu0 0.0
    %219 = vmatprep.subr.mxu0 0.0
    %220 = vmatpush2.msra.mxu0 0.0
    %221 = vmatprep.subr.mxu0 0.0
    %222 = vmatpush2.msra.mxu0 0.0
    %223 = vmatprep.subr.mxu0 0.0
    %224 = vmatpush2.msra.mxu0 0.0
    %225 = vmatprep.subr.mxu0 0.0
    %226 = vmatpush2.msra.mxu0 0.0
    %227 = vmatprep.subr.mxu0 0.0
    %228 = vmatpush2.msra.mxu0 0.0
    %229 = vmatprep.subr.mxu0 0.0
    %230 = vmatpush2.msra.mxu0 0.0
    %231 = vmatprep.subr.mxu0 0.0
    %232 = vmatpush2.msra.mxu0 0.0
    %233 = vmatprep.subr.mxu0 0.0
    %234 = vmatpush2.msra.mxu0 0.0
    %235 = vmatprep.subr.mxu0 0.0
    %236 = vmatpush2.msra.mxu0 0.0
    %237 = vmatprep.subr.mxu0 0.0
    %238 = vmatpush2.msra.mxu0 0.0
    %239 = vmatprep.mubr.f32.mxu0 0.0
    %240 = vmatmul.mubr.f32.gmra.mxu0 %v173
    %v241 = vpop.f32.mrf.mxu0
    %v242 = vadd.f32 %v73, %v241
    %v243 = vpop.f32.mrf.mxu0
    %244 = vdwg.mxu0
    %245 = vmatprep.subr.mxu0 0.0
    %246 = vmatpush1.msra.mxu0 0.0
    %247 = vmatprep.subr.mxu0 0.0
    %248 = vmatpush1.msra.mxu0 0.0
    %249 = vmatprep.subr.mxu0 0.0
    %250 = vmatpush1.msra.mxu0 0.0
    %251 = vmatprep.subr.mxu0 0.0
    %252 = vmatpush1.msra.mxu0 0.0
    %253 = vmatprep.subr.mxu0 0.0
    %254 = vmatpush1.msra.mxu0 0.0
    %255 = vmatprep.subr.mxu0 0.0
    %256 = vmatpush1.msra.mxu0 0.0
    %257 = vmatprep.subr.mxu0 0.0
    %258 = vmatpush1.msra.mxu0 0.0
    %259 = vmatprep.subr.mxu0 0.0
    %260 = vmatpush1.msra.mxu0 0.0
    %261 = vmatprep.subr.mxu0 0.0
    %262 = vmatpush1.msra.mxu0 0.0
    %263 = vmatprep.subr.mxu0 0.0
    %264 = vmatpush1.msra.mxu0 0.0
    %265 = vmatprep.subr.mxu0 0.0
    %266 = vmatpush1.msra.mxu0 0.0
    %267 = vmatprep.subr.mxu0 0.0
    %268 = vmatpush1.msra.mxu0 0.0
    %269 = vmatprep.subr.mxu0 0.0
    %270 = vmatpush1.msra.mxu0 %v37
    %271 = vmatprep.subr.mxu0 0.0
    %272 = vmatpush1.msra.mxu0 %v36
    %273 = vmatprep.subr.mxu0 0.0
    %274 = vmatpush1.msra.mxu0 %v35
    %275 = vmatprep.subr.mxu0 0.0
    %276 = vmatpush1.msra.mxu0 %v34
    %277 = vmatprep.subr.mxu0 0.0
    %278 = vmatpush2.msra.mxu0 0.0
    %279 = vmatprep.subr.mxu0 0.0
    %280 = vmatpush2.msra.mxu0 0.0
    %281 = vmatprep.subr.mxu0 0.0
    %282 = vmatpush2.msra.mxu0 0.0
    %283 = vmatprep.subr.mxu0 0.0
    %284 = vmatpush2.msra.mxu0 0.0
    %285 = vmatprep.subr.mxu0 0.0
    %286 = vmatpush2.msra.mxu0 0.0
    %287 = vmatprep.subr.mxu0 0.0
    %288 = vmatpush2.msra.mxu0 0.0
    %289 = vmatprep.subr.mxu0 0.0
    %290 = vmatpush2.msra.mxu0 0.0
    %291 = vmatprep.subr.mxu0 0.0
    %292 = vmatpush2.msra.mxu0 0.0
    %293 = vmatprep.subr.mxu0 0.0
    %294 = vmatpush2.msra.mxu0 0.0
    %295 = vmatprep.subr.mxu0 0.0
    %296 = vmatpush2.msra.mxu0 0.0
    %297 = vmatprep.subr.mxu0 0.0
    %298 = vmatpush2.msra.mxu0 0.0
    %299 = vmatprep.subr.mxu0 0.0
    %300 = vmatpush2.msra.mxu0 0.0
    %301 = vmatprep.subr.mxu0 0.0
    %302 = vmatpush2.msra.mxu0 0.0
    %303 = vmatprep.subr.mxu0 0.0
    %304 = vmatpush2.msra.mxu0 0.0
    %305 = vmatprep.subr.mxu0 0.0
    %306 = vmatpush2.msra.mxu0 0.0
    %307 = vmatprep.subr.mxu0 0.0
    %308 = vmatpush2.msra.mxu0 0.0
    %309 = vmatprep.mubr.f32.mxu0 0.0
    %310 = vmatmul.mubr.f32.gmra.mxu0 %v100
    %v311 = vpop.f32.mrf.mxu0
    %v312 = vadd.f32 %v77, %v311
    %v313 = vpop.f32.mrf.mxu0
    %314 = vdwg.mxu0
    %315 = vmatprep.subr.mxu0 0.0
    %316 = vmatpush1.msra.mxu0 0.0
    %317 = vmatprep.subr.mxu0 0.0
    %318 = vmatpush1.msra.mxu0 0.0
    %319 = vmatprep.subr.mxu0 0.0
    %320 = vmatpush1.msra.mxu0 0.0
    %321 = vmatprep.subr.mxu0 0.0
    %322 = vmatpush1.msra.mxu0 0.0
    %323 = vmatprep.subr.mxu0 0.0
    %324 = vmatpush1.msra.mxu0 0.0
    %325 = vmatprep.subr.mxu0 0.0
    %326 = vmatpush1.msra.mxu0 0.0
    %327 = vmatprep.subr.mxu0 0.0
    %328 = vmatpush1.msra.mxu0 0.0
    %329 = vmatprep.subr.mxu0 0.0
    %330 = vmatpush1.msra.mxu0 0.0
    %331 = vmatprep.subr.mxu0 0.0
    %332 = vmatpush1.msra.mxu0 0.0
    %333 = vmatprep.subr.mxu0 0.0
    %334 = vmatpush1.msra.mxu0 0.0
    %335 = vmatprep.subr.mxu0 0.0
    %336 = vmatpush1.msra.mxu0 0.0
    %337 = vmatprep.subr.mxu0 0.0
    %338 = vmatpush1.msra.mxu0 0.0
    %339 = vmatprep.subr.mxu0 0.0
    %340 = vmatpush1.msra.mxu0 %v41
    %341 = vmatprep.subr.mxu0 0.0
    %342 = vmatpush1.msra.mxu0 %v40
    %343 = vmatprep.subr.mxu0 0.0
    %344 = vmatpush1.msra.mxu0 %v39
    %345 = vmatprep.subr.mxu0 0.0
    %346 = vmatpush1.msra.mxu0 %v38
    %347 = vmatprep.subr.mxu0 0.0
    %348 = vmatpush2.msra.mxu0 0.0
    %349 = vmatprep.subr.mxu0 0.0
    %350 = vmatpush2.msra.mxu0 0.0
    %351 = vmatprep.subr.mxu0 0.0
    %352 = vmatpush2.msra.mxu0 0.0
    %353 = vmatprep.subr.mxu0 0.0
    %354 = vmatpush2.msra.mxu0 0.0
    %355 = vmatprep.subr.mxu0 0.0
    %356 = vmatpush2.msra.mxu0 0.0
    %357 = vmatprep.subr.mxu0 0.0
    %358 = vmatpush2.msra.mxu0 0.0
    %359 = vmatprep.subr.mxu0 0.0
    %360 = vmatpush2.msra.mxu0 0.0
    %361 = vmatprep.subr.mxu0 0.0
    %362 = vmatpush2.msra.mxu0 0.0
    %363 = vmatprep.subr.mxu0 0.0
    %364 = vmatpush2.msra.mxu0 0.0
    %365 = vmatprep.subr.mxu0 0.0
    %366 = vmatpush2.msra.mxu0 0.0
    %367 = vmatprep.subr.mxu0 0.0
    %368 = vmatpush2.msra.mxu0 0.0
    %369 = vmatprep.subr.mxu0 0.0
    %370 = vmatpush2.msra.mxu0 0.0
    %371 = vmatprep.subr.mxu0 0.0
    %372 = vmatpush2.msra.mxu0 0.0
    %373 = vmatprep.subr.mxu0 0.0
    %374 = vmatpush2.msra.mxu0 0.0
    %375 = vmatprep.subr.mxu0 0.0
    %376 = vmatpush2.msra.mxu0 0.0
    %377 = vmatprep.subr.mxu0 0.0
    %378 = vmatpush2.msra.mxu0 0.0
    %379 = vmatprep.mubr.f32.mxu0 0.0
    %380 = vmatmul.mubr.f32.gmra.mxu0 %v173
    %v381 = vpop.f32.mrf.mxu0
    %v382 = vadd.f32 %v81, %v381
    %v383 = vpop.f32.mrf.mxu0
    %384 = vdwg.mxu0
    %385 = vmatprep.subr.mxu0 0.0
    %386 = vmatpush1.msra.mxu0 0.0
    %387 = vmatprep.subr.mxu0 0.0
    %388 = vmatpush1.msra.mxu0 0.0
    %389 = vmatprep.subr.mxu0 0.0
    %390 = vmatpush1.msra.mxu0 0.0
    %391 = vmatprep.subr.mxu0 0.0
    %392 = vmatpush1.msra.mxu0 0.0
    %393 = vmatprep.subr.mxu0 0.0
    %394 = vmatpush1.msra.mxu0 0.0
    %395 = vmatprep.subr.mxu0 0.0
    %396 = vmatpush1.msra.mxu0 0.0
    %397 = vmatprep.subr.mxu0 0.0
    %398 = vmatpush1.msra.mxu0 0.0
    %399 = vmatprep.subr.mxu0 0.0
    %400 = vmatpush1.msra.mxu0 0.0
    %401 = vmatprep.subr.mxu0 0.0
    %402 = vmatpush1.msra.mxu0 0.0
    %403 = vmatprep.subr.mxu0 0.0
    %404 = vmatpush1.msra.mxu0 0.0
    %405 = vmatprep.subr.mxu0 0.0
    %406 = vmatpush1.msra.mxu0 0.0
    %407 = vmatprep.subr.mxu0 0.0
    %408 = vmatpush1.msra.mxu0 0.0
    %409 = vmatprep.subr.mxu0 0.0
    %410 = vmatpush1.msra.mxu0 %v45
    %411 = vmatprep.subr.mxu0 0.0
    %412 = vmatpush1.msra.mxu0 %v44
    %413 = vmatprep.subr.mxu0 0.0
    %414 = vmatpush1.msra.mxu0 %v43
    %415 = vmatprep.subr.mxu0 0.0
    %416 = vmatpush1.msra.mxu0 %v42
    %417 = vmatprep.subr.mxu0 0.0
    %418 = vmatpush2.msra.mxu0 0.0
    %419 = vmatprep.subr.mxu0 0.0
    %420 = vmatpush2.msra.mxu0 0.0
    %421 = vmatprep.subr.mxu0 0.0
    %422 = vmatpush2.msra.mxu0 0.0
    %423 = vmatprep.subr.mxu0 0.0
    %424 = vmatpush2.msra.mxu0 0.0
    %425 = vmatprep.subr.mxu0 0.0
    %426 = vmatpush2.msra.mxu0 0.0
    %427 = vmatprep.subr.mxu0 0.0
    %428 = vmatpush2.msra.mxu0 0.0
    %429 = vmatprep.subr.mxu0 0.0
    %430 = vmatpush2.msra.mxu0 0.0
    %431 = vmatprep.subr.mxu0 0.0
    %432 = vmatpush2.msra.mxu0 0.0
    %433 = vmatprep.subr.mxu0 0.0
    %434 = vmatpush2.msra.mxu0 0.0
    %435 = vmatprep.subr.mxu0 0.0
    %436 = vmatpush2.msra.mxu0 0.0
    %437 = vmatprep.subr.mxu0 0.0
    %438 = vmatpush2.msra.mxu0 0.0
    %439 = vmatprep.subr.mxu0 0.0
    %440 = vmatpush2.msra.mxu0 0.0
    %441 = vmatprep.subr.mxu0 0.0
    %442 = vmatpush2.msra.mxu0 0.0
    %443 = vmatprep.subr.mxu0 0.0
    %444 = vmatpush2.msra.mxu0 0.0
    %445 = vmatprep.subr.mxu0 0.0
    %446 = vmatpush2.msra.mxu0 0.0
    %447 = vmatprep.subr.mxu0 0.0
    %448 = vmatpush2.msra.mxu0 0.0
    %449 = vmatprep.mubr.f32.mxu0 0.0
    %450 = vmatmul.mubr.f32.gmra.mxu0 %v100
    %v451 = vpop.f32.mrf.mxu0
    %v452 = vadd.f32 %v85, %v451
    %v453 = vpop.f32.mrf.mxu0
    %454 = vdwg.mxu0
    %455 = vmatprep.subr.mxu0 0.0
    %456 = vmatpush1.msra.mxu0 0.0
    %457 = vmatprep.subr.mxu0 0.0
    %458 = vmatpush1.msra.mxu0 0.0
    %459 = vmatprep.subr.mxu0 0.0
    %460 = vmatpush1.msra.mxu0 0.0
    %461 = vmatprep.subr.mxu0 0.0
    %462 = vmatpush1.msra.mxu0 0.0
    %463 = vmatprep.subr.mxu0 0.0
    %464 = vmatpush1.msra.mxu0 0.0
    %465 = vmatprep.subr.mxu0 0.0
    %466 = vmatpush1.msra.mxu0 0.0
    %467 = vmatprep.subr.mxu0 0.0
    %468 = vmatpush1.msra.mxu0 0.0
    %469 = vmatprep.subr.mxu0 0.0
    %470 = vmatpush1.msra.mxu0 0.0
    %471 = vmatprep.subr.mxu0 0.0
    %472 = vmatpush1.msra.mxu0 0.0
    %473 = vmatprep.subr.mxu0 0.0
    %474 = vmatpush1.msra.mxu0 0.0
    %475 = vmatprep.subr.mxu0 0.0
    %476 = vmatpush1.msra.mxu0 0.0
    %477 = vmatprep.subr.mxu0 0.0
    %478 = vmatpush1.msra.mxu0 0.0
    %479 = vmatprep.subr.mxu0 0.0
    %480 = vmatpush1.msra.mxu0 %v49
    %481 = vmatprep.subr.mxu0 0.0
    %482 = vmatpush1.msra.mxu0 %v48
    %483 = vmatprep.subr.mxu0 0.0
    %484 = vmatpush1.msra.mxu0 %v47
    %485 = vmatprep.subr.mxu0 0.0
    %486 = vmatpush1.msra.mxu0 %v46
    %487 = vmatprep.subr.mxu0 0.0
    %488 = vmatpush2.msra.mxu0 0.0
    %489 = vmatprep.subr.mxu0 0.0
    %490 = vmatpush2.msra.mxu0 0.0
    %491 = vmatprep.subr.mxu0 0.0
    %492 = vmatpush2.msra.mxu0 0.0
    %493 = vmatprep.subr.mxu0 0.0
    %494 = vmatpush2.msra.mxu0 0.0
    %495 = vmatprep.subr.mxu0 0.0
    %496 = vmatpush2.msra.mxu0 0.0
    %497 = vmatprep.subr.mxu0 0.0
    %498 = vmatpush2.msra.mxu0 0.0
    %499 = vmatprep.subr.mxu0 0.0
    %500 = vmatpush2.msra.mxu0 0.0
    %501 = vmatprep.subr.mxu0 0.0
    %502 = vmatpush2.msra.mxu0 0.0
    %503 = vmatprep.subr.mxu0 0.0
    %504 = vmatpush2.msra.mxu0 0.0
    %505 = vmatprep.subr.mxu0 0.0
    %506 = vmatpush2.msra.mxu0 0.0
    %507 = vmatprep.subr.mxu0 0.0
    %508 = vmatpush2.msra.mxu0 0.0
    %509 = vmatprep.subr.mxu0 0.0
    %510 = vmatpush2.msra.mxu0 0.0
    %511 = vmatprep.subr.mxu0 0.0
    %512 = vmatpush2.msra.mxu0 0.0
    %513 = vmatprep.subr.mxu0 0.0
    %514 = vmatpush2.msra.mxu0 0.0
    %515 = vmatprep.subr.mxu0 0.0
    %516 = vmatpush2.msra.mxu0 0.0
    %517 = vmatprep.subr.mxu0 0.0
    %518 = vmatpush2.msra.mxu0 0.0
    %519 = vmatprep.mubr.f32.mxu0 0.0
    %520 = vmatmul.mubr.f32.gmra.mxu0 %v173
    %v521 = vpop.f32.mrf.mxu0
    %v522 = vadd.f32 %v89, %v521
    %v523 = vpop.f32.mrf.mxu0
    %524 = vdwg.mxu0
    %525 = vmatprep.subr.mxu0 0.0
    %526 = vmatpush1.msra.mxu0 0.0
    %527 = vmatprep.subr.mxu0 0.0
    %528 = vmatpush1.msra.mxu0 0.0
    %529 = vmatprep.subr.mxu0 0.0
    %530 = vmatpush1.msra.mxu0 0.0
    %531 = vmatprep.subr.mxu0 0.0
    %532 = vmatpush1.msra.mxu0 0.0
    %533 = vmatprep.subr.mxu0 0.0
    %534 = vmatpush1.msra.mxu0 0.0
    %535 = vmatprep.subr.mxu0 0.0
    %536 = vmatpush1.msra.mxu0 0.0
    %537 = vmatprep.subr.mxu0 0.0
    %538 = vmatpush1.msra.mxu0 0.0
    %539 = vmatprep.subr.mxu0 0.0
    %540 = vmatpush1.msra.mxu0 0.0
    %541 = vmatprep.subr.mxu0 0.0
    %542 = vmatpush1.msra.mxu0 0.0
    %543 = vmatprep.subr.mxu0 0.0
    %544 = vmatpush1.msra.mxu0 0.0
    %545 = vmatprep.subr.mxu0 0.0
    %546 = vmatpush1.msra.mxu0 0.0
    %547 = vmatprep.subr.mxu0 0.0
    %548 = vmatpush1.msra.mxu0 0.0
    %549 = vmatprep.subr.mxu0 0.0
    %550 = vmatpush1.msra.mxu0 %v53
    %551 = vmatprep.subr.mxu0 0.0
    %552 = vmatpush1.msra.mxu0 %v52
    %553 = vmatprep.subr.mxu0 0.0
    %554 = vmatpush1.msra.mxu0 %v51
    %555 = vmatprep.subr.mxu0 0.0
    %556 = vmatpush1.msra.mxu0 %v50
    %557 = vmatprep.subr.mxu0 0.0
    %558 = vmatpush2.msra.mxu0 0.0
    %559 = vmatprep.subr.mxu0 0.0
    %560 = vmatpush2.msra.mxu0 0.0
    %561 = vmatprep.subr.mxu0 0.0
    %562 = vmatpush2.msra.mxu0 0.0
    %563 = vmatprep.subr.mxu0 0.0
    %564 = vmatpush2.msra.mxu0 0.0
    %565 = vmatprep.subr.mxu0 0.0
    %566 = vmatpush2.msra.mxu0 0.0
    %567 = vmatprep.subr.mxu0 0.0
    %568 = vmatpush2.msra.mxu0 0.0
    %569 = vmatprep.subr.mxu0 0.0
    %570 = vmatpush2.msra.mxu0 0.0
    %571 = vmatprep.subr.mxu0 0.0
    %572 = vmatpush2.msra.mxu0 0.0
    %573 = vmatprep.subr.mxu0 0.0
    %574 = vmatpush2.msra.mxu0 0.0
    %575 = vmatprep.subr.mxu0 0.0
    %576 = vmatpush2.msra.mxu0 0.0
    %577 = vmatprep.subr.mxu0 0.0
    %578 = vmatpush2.msra.mxu0 0.0
    %579 = vmatprep.subr.mxu0 0.0
    %580 = vmatpush2.msra.mxu0 0.0
    %581 = vmatprep.subr.mxu0 0.0
    %582 = vmatpush2.msra.mxu0 0.0
    %583 = vmatprep.subr.mxu0 0.0
    %584 = vmatpush2.msra.mxu0 0.0
    %585 = vmatprep.subr.mxu0 0.0
    %586 = vmatpush2.msra.mxu0 0.0
    %587 = vmatprep.subr.mxu0 0.0
    %588 = vmatpush2.msra.mxu0 0.0
    %589 = vmatprep.mubr.f32.mxu0 0.0
    %590 = vmatmul.mubr.f32.gmra.mxu0 %v100
    %v591 = vpop.f32.mrf.mxu0
    %v592 = vadd.f32 %v93, %v591
    %v593 = vpop.f32.mrf.mxu0
    %594 = vdwg.mxu0
    %595 = vmatprep.subr.mxu0 0.0
    %596 = vmatpush1.msra.mxu0 0.0
    %597 = vmatprep.subr.mxu0 0.0
    %598 = vmatpush1.msra.mxu0 0.0
    %599 = vmatprep.subr.mxu0 0.0
    %600 = vmatpush1.msra.mxu0 0.0
    %601 = vmatprep.subr.mxu0 0.0
    %602 = vmatpush1.msra.mxu0 0.0
    %603 = vmatprep.subr.mxu0 0.0
    %604 = vmatpush1.msra.mxu0 0.0
    %605 = vmatprep.subr.mxu0 0.0
    %606 = vmatpush1.msra.mxu0 0.0
    %607 = vmatprep.subr.mxu0 0.0
    %608 = vmatpush1.msra.mxu0 0.0
    %609 = vmatprep.subr.mxu0 0.0
    %610 = vmatpush1.msra.mxu0 0.0
    %611 = vmatprep.subr.mxu0 0.0
    %612 = vmatpush1.msra.mxu0 0.0
    %613 = vmatprep.subr.mxu0 0.0
    %614 = vmatpush1.msra.mxu0 0.0
    %615 = vmatprep.subr.mxu0 0.0
    %616 = vmatpush1.msra.mxu0 0.0
    %617 = vmatprep.subr.mxu0 0.0
    %618 = vmatpush1.msra.mxu0 0.0
    %619 = vmatprep.subr.mxu0 0.0
    %620 = vmatpush1.msra.mxu0 %v57
    %621 = vmatprep.subr.mxu0 0.0
    %622 = vmatpush1.msra.mxu0 %v56
    %623 = vmatprep.subr.mxu0 0.0
    %624 = vmatpush1.msra.mxu0 %v55
    %625 = vmatprep.subr.mxu0 0.0
    %626 = vmatpush1.msra.mxu0 %v54
    %627 = vmatprep.subr.mxu0 0.0
    %628 = vmatpush2.msra.mxu0 0.0
    %629 = vmatprep.subr.mxu0 0.0
    %630 = vmatpush2.msra.mxu0 0.0
    %631 = vmatprep.subr.mxu0 0.0
    %632 = vmatpush2.msra.mxu0 0.0
    %633 = vmatprep.subr.mxu0 0.0
    %634 = vmatpush2.msra.mxu0 0.0
    %635 = vmatprep.subr.mxu0 0.0
    %636 = vmatpush2.msra.mxu0 0.0
    %637 = vmatprep.subr.mxu0 0.0
    %638 = vmatpush2.msra.mxu0 0.0
    %639 = vmatprep.subr.mxu0 0.0
    %640 = vmatpush2.msra.mxu0 0.0
    %641 = vmatprep.subr.mxu0 0.0
    %642 = vmatpush2.msra.mxu0 0.0
    %643 = vmatprep.subr.mxu0 0.0
    %644 = vmatpush2.msra.mxu0 0.0
    %645 = vmatprep.subr.mxu0 0.0
    %646 = vmatpush2.msra.mxu0 0.0
    %647 = vmatprep.subr.mxu0 0.0
    %648 = vmatpush2.msra.mxu0 0.0
    %649 = vmatprep.subr.mxu0 0.0
    %650 = vmatpush2.msra.mxu0 0.0
    %651 = vmatprep.subr.mxu0 0.0
    %652 = vmatpush2.msra.mxu0 0.0
    %653 = vmatprep.subr.mxu0 0.0
    %654 = vmatpush2.msra.mxu0 0.0
    %655 = vmatprep.subr.mxu0 0.0
    %656 = vmatpush2.msra.mxu0 0.0
    %657 = vmatprep.subr.mxu0 0.0
    %658 = vmatpush2.msra.mxu0 0.0
    %659 = vmatprep.mubr.f32.mxu0 0.0
    %660 = vmatmul.mubr.f32.gmra.mxu0 %v173
    %v661 = vpop.f32.mrf.mxu0
    %v662 = vadd.f32 %v97, %v661
    %v663 = vpop.f32.mrf.mxu0
    %664 = vdwg.mxu0
    %v665 = vld [vmem:[%s1] sm:$0xff]
    %v666 = vld [vmem:[%s1 + $0x8] sm:$0xff]
    %v667 = vld [vmem:[%s3 + $0x28] sm:$0xff]
    %v668 = vld [vmem:[%s3 + $0x30] sm:$0xff]
    %v669 = vld [vmem:[%s3 + $0x38] sm:$0xff]
    %v670 = vld [vmem:[%s3 + $0x40] sm:$0xff]
    %v671 = vld [vmem:[%s3 + $0xa0] sm:$0xff]
    %v672 = vld [vmem:[%s3 + $0xa8] sm:$0xff]
    %v673 = vld [vmem:[%s3 + $0xb0] sm:$0xff]
    %v674 = vld [vmem:[%s3 + $0xb8] sm:$0xff]
    %v675 = vld [vmem:[%s3 + $0x118] sm:$0xff]
    %v676 = vld [vmem:[%s3 + $0x120] sm:$0xff]
    %v677 = vld [vmem:[%s3 + $0x128] sm:$0xff]
    %v678 = vld [vmem:[%s3 + $0x130] sm:$0xff]
    %v679 = vld [vmem:[%s3 + $0x190] sm:$0xff]
    %v680 = vld [vmem:[%s3 + $0x198] sm:$0xff]
    %v681 = vld [vmem:[%s3 + $0x1a0] sm:$0xff]
    %v682 = vld [vmem:[%s3 + $0x1a8] sm:$0xff]
    %v683 = vld [vmem:[%s3 + $0x208] sm:$0xff]
    %v684 = vld [vmem:[%s3 + $0x210] sm:$0xff]
    %v685 = vld [vmem:[%s3 + $0x218] sm:$0xff]
    %v686 = vld [vmem:[%s3 + $0x220] sm:$0xff]
    %v687 = vld [vmem:[%s3 + $0x280] sm:$0xff]
    %v688 = vld [vmem:[%s3 + $0x288] sm:$0xff]
    %v689 = vld [vmem:[%s3 + $0x290] sm:$0xff]
    %v690 = vld [vmem:[%s3 + $0x298] sm:$0xff]
    %v691 = vld [vmem:[%s3 + $0x2f8] sm:$0xff]
    %v692 = vld [vmem:[%s3 + $0x300] sm:$0xff]
    %v693 = vld [vmem:[%s3 + $0x308] sm:$0xff]
    %v694 = vld [vmem:[%s3 + $0x310] sm:$0xff]
    %v695 = vld [vmem:[%s3 + $0x370] sm:$0xff]
    %v696 = vld [vmem:[%s3 + $0x378] sm:$0xff]
    %v697 = vld [vmem:[%s3 + $0x380] sm:$0xff]
    %v698 = vld [vmem:[%s3 + $0x388] sm:$0xff]
    %v699 = vld [vmem:[%s3 + $0x48] sm:$0x1]
    %v700 = vld [vmem:[%s3 + $0xc0] sm:$0x1]
    %v701 = vld [vmem:[%s3 + $0x138] sm:$0x1]
    %v702 = vld [vmem:[%s3 + $0x1b0] sm:$0x1]
    %v703 = vld [vmem:[%s3 + $0x228] sm:$0x1]
    %v704 = vld [vmem:[%s3 + $0x2a0] sm:$0x1]
    %v705 = vld [vmem:[%s3 + $0x318] sm:$0x1]
    %v706 = vld [vmem:[%s3 + $0x390] sm:$0x1]
    %v707 = vlaneseq
    %v708 = vshrl.u32 %v707, 7
    %v709 = vsub.s32 0, %v708
    %v710 = vrot.slane %v699, %v709
    %v711 = vlaneseq
    %v712 = vshrl.u32 %v711, 7
    %v713 = vsub.s32 0, %v712
    %v714 = vrot.slane %v700, %v713
    %v715 = vlaneseq
    %v716 = vshrl.u32 %v715, 7
    %v717 = vsub.s32 0, %v716
    %v718 = vrot.slane %v701, %v717
    %v719 = vlaneseq
    %v720 = vshrl.u32 %v719, 7
    %v721 = vsub.s32 0, %v720
    %v722 = vrot.slane %v702, %v721
    %v723 = vlaneseq
    %v724 = vshrl.u32 %v723, 7
    %v725 = vsub.s32 0, %v724
    %v726 = vrot.slane %v703, %v725
    %v727 = vlaneseq
    %v728 = vshrl.u32 %v727, 7
    %v729 = vsub.s32 0, %v728
    %v730 = vrot.slane %v704, %v729
    %v731 = vlaneseq
    %v732 = vshrl.u32 %v731, 7
    %v733 = vsub.s32 0, %v732
    %v734 = vrot.slane %v705, %v733
    %v735 = vlaneseq
    %v736 = vshrl.u32 %v735, 7
    %v737 = vsub.s32 0, %v736
    %v738 = vrot.slane %v706, %v737
    %v740 = vsel %vm98, %v665, 0
    %742 = vmatprep.subr.mxu0 0.0
    %743 = vmatpush1.msra.mxu0 0.0
    %744 = vmatprep.subr.mxu0 0.0
    %745 = vmatpush1.msra.mxu0 0.0
    %746 = vmatprep.subr.mxu0 0.0
    %747 = vmatpush1.msra.mxu0 0.0
    %748 = vmatprep.subr.mxu0 0.0
    %749 = vmatpush1.msra.mxu0 0.0
    %750 = vmatprep.subr.mxu0 0.0
    %751 = vmatpush1.msra.mxu0 0.0
    %752 = vmatprep.subr.mxu0 0.0
    %753 = vmatpush1.msra.mxu0 0.0
    %754 = vmatprep.subr.mxu0 0.0
    %755 = vmatpush1.msra.mxu0 0.0
    %756 = vmatprep.subr.mxu0 0.0
    %757 = vmatpush1.msra.mxu0 0.0
    %758 = vmatprep.subr.mxu0 0.0
    %759 = vmatpush1.msra.mxu0 0.0
    %760 = vmatprep.subr.mxu0 0.0
    %761 = vmatpush1.msra.mxu0 0.0
    %762 = vmatprep.subr.mxu0 0.0
    %763 = vmatpush1.msra.mxu0 0.0
    %764 = vmatprep.subr.mxu0 0.0
    %765 = vmatpush1.msra.mxu0 0.0
    %766 = vmatprep.subr.mxu0 0.0
    %767 = vmatpush1.msra.mxu0 %v670
    %768 = vmatprep.subr.mxu0 0.0
    %769 = vmatpush1.msra.mxu0 %v669
    %770 = vmatprep.subr.mxu0 0.0
    %771 = vmatpush1.msra.mxu0 %v668
    %772 = vmatprep.subr.mxu0 0.0
    %773 = vmatpush1.msra.mxu0 %v667
    %774 = vmatprep.subr.mxu0 0.0
    %775 = vmatpush2.msra.mxu0 0.0
    %776 = vmatprep.subr.mxu0 0.0
    %777 = vmatpush2.msra.mxu0 0.0
    %778 = vmatprep.subr.mxu0 0.0
    %779 = vmatpush2.msra.mxu0 0.0
    %780 = vmatprep.subr.mxu0 0.0
    %781 = vmatpush2.msra.mxu0 0.0
    %782 = vmatprep.subr.mxu0 0.0
    %783 = vmatpush2.msra.mxu0 0.0
    %784 = vmatprep.subr.mxu0 0.0
    %785 = vmatpush2.msra.mxu0 0.0
    %786 = vmatprep.subr.mxu0 0.0
    %787 = vmatpush2.msra.mxu0 0.0
    %788 = vmatprep.subr.mxu0 0.0
    %789 = vmatpush2.msra.mxu0 0.0
    %790 = vmatprep.subr.mxu0 0.0
    %791 = vmatpush2.msra.mxu0 0.0
    %792 = vmatprep.subr.mxu0 0.0
    %793 = vmatpush2.msra.mxu0 0.0
    %794 = vmatprep.subr.mxu0 0.0
    %795 = vmatpush2.msra.mxu0 0.0
    %796 = vmatprep.subr.mxu0 0.0
    %797 = vmatpush2.msra.mxu0 0.0
    %798 = vmatprep.subr.mxu0 0.0
    %799 = vmatpush2.msra.mxu0 0.0
    %800 = vmatprep.subr.mxu0 0.0
    %801 = vmatpush2.msra.mxu0 0.0
    %802 = vmatprep.subr.mxu0 0.0
    %803 = vmatpush2.msra.mxu0 0.0
    %804 = vmatprep.subr.mxu0 0.0
    %805 = vmatpush2.msra.mxu0 0.0
    %806 = vmatprep.mubr.f32.mxu0 0.0
    %807 = vmatmul.mubr.f32.gmra.mxu0 %v740
    %v808 = vpop.f32.mrf.mxu0
    %v809 = vadd.f32 %v710, %v808
    %v810 = vpop.f32.mrf.mxu0
    %811 = vdwg.mxu0
    %v813 = vsel %vm98, %v666, 0
    %815 = vmatprep.subr.mxu0 0.0
    %816 = vmatpush1.msra.mxu0 0.0
    %817 = vmatprep.subr.mxu0 0.0
    %818 = vmatpush1.msra.mxu0 0.0
    %819 = vmatprep.subr.mxu0 0.0
    %820 = vmatpush1.msra.mxu0 0.0
    %821 = vmatprep.subr.mxu0 0.0
    %822 = vmatpush1.msra.mxu0 0.0
    %823 = vmatprep.subr.mxu0 0.0
    %824 = vmatpush1.msra.mxu0 0.0
    %825 = vmatprep.subr.mxu0 0.0
    %826 = vmatpush1.msra.mxu0 0.0
    %827 = vmatprep.subr.mxu0 0.0
    %828 = vmatpush1.msra.mxu0 0.0
    %829 = vmatprep.subr.mxu0 0.0
    %830 = vmatpush1.msra.mxu0 0.0
    %831 = vmatprep.subr.mxu0 0.0
    %832 = vmatpush1.msra.mxu0 0.0
    %833 = vmatprep.subr.mxu0 0.0
    %834 = vmatpush1.msra.mxu0 0.0
    %835 = vmatprep.subr.mxu0 0.0
    %836 = vmatpush1.msra.mxu0 0.0
    %837 = vmatprep.subr.mxu0 0.0
    %838 = vmatpush1.msra.mxu0 0.0
    %839 = vmatprep.subr.mxu0 0.0
    %840 = vmatpush1.msra.mxu0 %v674
    %841 = vmatprep.subr.mxu0 0.0
    %842 = vmatpush1.msra.mxu0 %v673
    %843 = vmatprep.subr.mxu0 0.0
    %844 = vmatpush1.msra.mxu0 %v672
    %845 = vmatprep.subr.mxu0 0.0
    %846 = vmatpush1.msra.mxu0 %v671
    %847 = vmatprep.subr.mxu0 0.0
    %848 = vmatpush2.msra.mxu0 0.0
    %849 = vmatprep.subr.mxu0 0.0
    %850 = vmatpush2.msra.mxu0 0.0
    %851 = vmatprep.subr.mxu0 0.0
    %852 = vmatpush2.msra.mxu0 0.0
    %853 = vmatprep.subr.mxu0 0.0
    %854 = vmatpush2.msra.mxu0 0.0
    %855 = vmatprep.subr.mxu0 0.0
    %856 = vmatpush2.msra.mxu0 0.0
    %857 = vmatprep.subr.mxu0 0.0
    %858 = vmatpush2.msra.mxu0 0.0
    %859 = vmatprep.subr.mxu0 0.0
    %860 = vmatpush2.msra.mxu0 0.0
    %861 = vmatprep.subr.mxu0 0.0
    %862 = vmatpush2.msra.mxu0 0.0
    %863 = vmatprep.subr.mxu0 0.0
    %864 = vmatpush2.msra.mxu0 0.0
    %865 = vmatprep.subr.mxu0 0.0
    %866 = vmatpush2.msra.mxu0 0.0
    %867 = vmatprep.subr.mxu0 0.0
    %868 = vmatpush2.msra.mxu0 0.0
    %869 = vmatprep.subr.mxu0 0.0
    %870 = vmatpush2.msra.mxu0 0.0
    %871 = vmatprep.subr.mxu0 0.0
    %872 = vmatpush2.msra.mxu0 0.0
    %873 = vmatprep.subr.mxu0 0.0
    %874 = vmatpush2.msra.mxu0 0.0
    %875 = vmatprep.subr.mxu0 0.0
    %876 = vmatpush2.msra.mxu0 0.0
    %877 = vmatprep.subr.mxu0 0.0
    %878 = vmatpush2.msra.mxu0 0.0
    %879 = vmatprep.mubr.f32.mxu0 0.0
    %880 = vmatmul.mubr.f32.gmra.mxu0 %v813
    %v881 = vpop.f32.mrf.mxu0
    %v882 = vadd.f32 %v714, %v881
    %v883 = vpop.f32.mrf.mxu0
    %884 = vdwg.mxu0
    %885 = vmatprep.subr.mxu0 0.0
    %886 = vmatpush1.msra.mxu0 0.0
    %887 = vmatprep.subr.mxu0 0.0
    %888 = vmatpush1.msra.mxu0 0.0
    %889 = vmatprep.subr.mxu0 0.0
    %890 = vmatpush1.msra.mxu0 0.0
    %891 = vmatprep.subr.mxu0 0.0
    %892 = vmatpush1.msra.mxu0 0.0
    %893 = vmatprep.subr.mxu0 0.0
    %894 = vmatpush1.msra.mxu0 0.0
    %895 = vmatprep.subr.mxu0 0.0
    %896 = vmatpush1.msra.mxu0 0.0
    %897 = vmatprep.subr.mxu0 0.0
    %898 = vmatpush1.msra.mxu0 0.0
    %899 = vmatprep.subr.mxu0 0.0
    %900 = vmatpush1.msra.mxu0 0.0
    %901 = vmatprep.subr.mxu0 0.0
    %902 = vmatpush1.msra.mxu0 0.0
    %903 = vmatprep.subr.mxu0 0.0
    %904 = vmatpush1.msra.mxu0 0.0
    %905 = vmatprep.subr.mxu0 0.0
    %906 = vmatpush1.msra.mxu0 0.0
    %907 = vmatprep.subr.mxu0 0.0
    %908 = vmatpush1.msra.mxu0 0.0
    %909 = vmatprep.subr.mxu0 0.0
    %910 = vmatpush1.msra.mxu0 %v678
    %911 = vmatprep.subr.mxu0 0.0
    %912 = vmatpush1.msra.mxu0 %v677
    %913 = vmatprep.subr.mxu0 0.0
    %914 = vmatpush1.msra.mxu0 %v676
    %915 = vmatprep.subr.mxu0 0.0
    %916 = vmatpush1.msra.mxu0 %v675
    %917 = vmatprep.subr.mxu0 0.0
    %918 = vmatpush2.msra.mxu0 0.0
    %919 = vmatprep.subr.mxu0 0.0
    %920 = vmatpush2.msra.mxu0 0.0
    %921 = vmatprep.subr.mxu0 0.0
    %922 = vmatpush2.msra.mxu0 0.0
    %923 = vmatprep.subr.mxu0 0.0
    %924 = vmatpush2.msra.mxu0 0.0
    %925 = vmatprep.subr.mxu0 0.0
    %926 = vmatpush2.msra.mxu0 0.0
    %927 = vmatprep.subr.mxu0 0.0
    %928 = vmatpush2.msra.mxu0 0.0
    %929 = vmatprep.subr.mxu0 0.0
    %930 = vmatpush2.msra.mxu0 0.0
    %931 = vmatprep.subr.mxu0 0.0
    %932 = vmatpush2.msra.mxu0 0.0
    %933 = vmatprep.subr.mxu0 0.0
    %934 = vmatpush2.msra.mxu0 0.0
    %935 = vmatprep.subr.mxu0 0.0
    %936 = vmatpush2.msra.mxu0 0.0
    %937 = vmatprep.subr.mxu0 0.0
    %938 = vmatpush2.msra.mxu0 0.0
    %939 = vmatprep.subr.mxu0 0.0
    %940 = vmatpush2.msra.mxu0 0.0
    %941 = vmatprep.subr.mxu0 0.0
    %942 = vmatpush2.msra.mxu0 0.0
    %943 = vmatprep.subr.mxu0 0.0
    %944 = vmatpush2.msra.mxu0 0.0
    %945 = vmatprep.subr.mxu0 0.0
    %946 = vmatpush2.msra.mxu0 0.0
    %947 = vmatprep.subr.mxu0 0.0
    %948 = vmatpush2.msra.mxu0 0.0
    %949 = vmatprep.mubr.f32.mxu0 0.0
    %950 = vmatmul.mubr.f32.gmra.mxu0 %v740
    %v951 = vpop.f32.mrf.mxu0
    %v952 = vadd.f32 %v718, %v951
    %v953 = vpop.f32.mrf.mxu0
    %954 = vdwg.mxu0
    %955 = vmatprep.subr.mxu0 0.0
    %956 = vmatpush1.msra.mxu0 0.0
    %957 = vmatprep.subr.mxu0 0.0
    %958 = vmatpush1.msra.mxu0 0.0
    %959 = vmatprep.subr.mxu0 0.0
    %960 = vmatpush1.msra.mxu0 0.0
    %961 = vmatprep.subr.mxu0 0.0
    %962 = vmatpush1.msra.mxu0 0.0
    %963 = vmatprep.subr.mxu0 0.0
    %964 = vmatpush1.msra.mxu0 0.0
    %965 = vmatprep.subr.mxu0 0.0
    %966 = vmatpush1.msra.mxu0 0.0
    %967 = vmatprep.subr.mxu0 0.0
    %968 = vmatpush1.msra.mxu0 0.0
    %969 = vmatprep.subr.mxu0 0.0
    %970 = vmatpush1.msra.mxu0 0.0
    %971 = vmatprep.subr.mxu0 0.0
    %972 = vmatpush1.msra.mxu0 0.0
    %973 = vmatprep.subr.mxu0 0.0
    %974 = vmatpush1.msra.mxu0 0.0
    %975 = vmatprep.subr.mxu0 0.0
    %976 = vmatpush1.msra.mxu0 0.0
    %977 = vmatprep.subr.mxu0 0.0
    %978 = vmatpush1.msra.mxu0 0.0
    %979 = vmatprep.subr.mxu0 0.0
    %980 = vmatpush1.msra.mxu0 %v682
    %981 = vmatprep.subr.mxu0 0.0
    %982 = vmatpush1.msra.mxu0 %v681
    %983 = vmatprep.subr.mxu0 0.0
    %984 = vmatpush1.msra.mxu0 %v680
    %985 = vmatprep.subr.mxu0 0.0
    %986 = vmatpush1.msra.mxu0 %v679
    %987 = vmatprep.subr.mxu0 0.0
    %988 = vmatpush2.msra.mxu0 0.0
    %989 = vmatprep.subr.mxu0 0.0
    %990 = vmatpush2.msra.mxu0 0.0
    %991 = vmatprep.subr.mxu0 0.0
    %992 = vmatpush2.msra.mxu0 0.0
    %993 = vmatprep.subr.mxu0 0.0
    %994 = vmatpush2.msra.mxu0 0.0
    %995 = vmatprep.subr.mxu0 0.0
    %996 = vmatpush2.msra.mxu0 0.0
    %997 = vmatprep.subr.mxu0 0.0
    %998 = vmatpush2.msra.mxu0 0.0
    %999 = vmatprep.subr.mxu0 0.0
    %1000 = vmatpush2.msra.mxu0 0.0
    %1001 = vmatprep.subr.mxu0 0.0
    %1002 = vmatpush2.msra.mxu0 0.0
    %1003 = vmatprep.subr.mxu0 0.0
    %1004 = vmatpush2.msra.mxu0 0.0
    %1005 = vmatprep.subr.mxu0 0.0
    %1006 = vmatpush2.msra.mxu0 0.0
    %1007 = vmatprep.subr.mxu0 0.0
    %1008 = vmatpush2.msra.mxu0 0.0
    %1009 = vmatprep.subr.mxu0 0.0
    %1010 = vmatpush2.msra.mxu0 0.0
    %1011 = vmatprep.subr.mxu0 0.0
    %1012 = vmatpush2.msra.mxu0 0.0
    %1013 = vmatprep.subr.mxu0 0.0
    %1014 = vmatpush2.msra.mxu0 0.0
    %1015 = vmatprep.subr.mxu0 0.0
    %1016 = vmatpush2.msra.mxu0 0.0
    %1017 = vmatprep.subr.mxu0 0.0
    %1018 = vmatpush2.msra.mxu0 0.0
    %1019 = vmatprep.mubr.f32.mxu0 0.0
    %1020 = vmatmul.mubr.f32.gmra.mxu0 %v813
    %v1021 = vpop.f32.mrf.mxu0
    %v1022 = vadd.f32 %v722, %v1021
    %v1023 = vpop.f32.mrf.mxu0
    %1024 = vdwg.mxu0
    %1025 = vmatprep.subr.mxu0 0.0
    %1026 = vmatpush1.msra.mxu0 0.0
    %1027 = vmatprep.subr.mxu0 0.0
    %1028 = vmatpush1.msra.mxu0 0.0
    %1029 = vmatprep.subr.mxu0 0.0
    %1030 = vmatpush1.msra.mxu0 0.0
    %1031 = vmatprep.subr.mxu0 0.0
    %1032 = vmatpush1.msra.mxu0 0.0
    %1033 = vmatprep.subr.mxu0 0.0
    %1034 = vmatpush1.msra.mxu0 0.0
    %1035 = vmatprep.subr.mxu0 0.0
    %1036 = vmatpush1.msra.mxu0 0.0
    %1037 = vmatprep.subr.mxu0 0.0
    %1038 = vmatpush1.msra.mxu0 0.0
    %1039 = vmatprep.subr.mxu0 0.0
    %1040 = vmatpush1.msra.mxu0 0.0
    %1041 = vmatprep.subr.mxu0 0.0
    %1042 = vmatpush1.msra.mxu0 0.0
    %1043 = vmatprep.subr.mxu0 0.0
    %1044 = vmatpush1.msra.mxu0 0.0
    %1045 = vmatprep.subr.mxu0 0.0
    %1046 = vmatpush1.msra.mxu0 0.0
    %1047 = vmatprep.subr.mxu0 0.0
    %1048 = vmatpush1.msra.mxu0 0.0
    %1049 = vmatprep.subr.mxu0 0.0
    %1050 = vmatpush1.msra.mxu0 %v686
    %1051 = vmatprep.subr.mxu0 0.0
    %1052 = vmatpush1.msra.mxu0 %v685
    %1053 = vmatprep.subr.mxu0 0.0
    %1054 = vmatpush1.msra.mxu0 %v684
    %1055 = vmatprep.subr.mxu0 0.0
    %1056 = vmatpush1.msra.mxu0 %v683
    %1057 = vmatprep.subr.mxu0 0.0
    %1058 = vmatpush2.msra.mxu0 0.0
    %1059 = vmatprep.subr.mxu0 0.0
    %1060 = vmatpush2.msra.mxu0 0.0
    %1061 = vmatprep.subr.mxu0 0.0
    %1062 = vmatpush2.msra.mxu0 0.0
    %1063 = vmatprep.subr.mxu0 0.0
    %1064 = vmatpush2.msra.mxu0 0.0
    %1065 = vmatprep.subr.mxu0 0.0
    %1066 = vmatpush2.msra.mxu0 0.0
    %1067 = vmatprep.subr.mxu0 0.0
    %1068 = vmatpush2.msra.mxu0 0.0
    %1069 = vmatprep.subr.mxu0 0.0
    %1070 = vmatpush2.msra.mxu0 0.0
    %1071 = vmatprep.subr.mxu0 0.0
    %1072 = vmatpush2.msra.mxu0 0.0
    %1073 = vmatprep.subr.mxu0 0.0
    %1074 = vmatpush2.msra.mxu0 0.0
    %1075 = vmatprep.subr.mxu0 0.0
    %1076 = vmatpush2.msra.mxu0 0.0
    %1077 = vmatprep.subr.mxu0 0.0
    %1078 = vmatpush2.msra.mxu0 0.0
    %1079 = vmatprep.subr.mxu0 0.0
    %1080 = vmatpush2.msra.mxu0 0.0
    %1081 = vmatprep.subr.mxu0 0.0
    %1082 = vmatpush2.msra.mxu0 0.0
    %1083 = vmatprep.subr.mxu0 0.0
    %1084 = vmatpush2.msra.mxu0 0.0
    %1085 = vmatprep.subr.mxu0 0.0
    %1086 = vmatpush2.msra.mxu0 0.0
    %1087 = vmatprep.subr.mxu0 0.0
    %1088 = vmatpush2.msra.mxu0 0.0
    %1089 = vmatprep.mubr.f32.mxu0 0.0
    %1090 = vmatmul.mubr.f32.gmra.mxu0 %v740
    %v1091 = vpop.f32.mrf.mxu0
    %v1092 = vadd.f32 %v726, %v1091
    %v1093 = vpop.f32.mrf.mxu0
    %1094 = vdwg.mxu0
    %1095 = vmatprep.subr.mxu0 0.0
    %1096 = vmatpush1.msra.mxu0 0.0
    %1097 = vmatprep.subr.mxu0 0.0
    %1098 = vmatpush1.msra.mxu0 0.0
    %1099 = vmatprep.subr.mxu0 0.0
    %1100 = vmatpush1.msra.mxu0 0.0
    %1101 = vmatprep.subr.mxu0 0.0
    %1102 = vmatpush1.msra.mxu0 0.0
    %1103 = vmatprep.subr.mxu0 0.0
    %1104 = vmatpush1.msra.mxu0 0.0
    %1105 = vmatprep.subr.mxu0 0.0
    %1106 = vmatpush1.msra.mxu0 0.0
    %1107 = vmatprep.subr.mxu0 0.0
    %1108 = vmatpush1.msra.mxu0 0.0
    %1109 = vmatprep.subr.mxu0 0.0
    %1110 = vmatpush1.msra.mxu0 0.0
    %1111 = vmatprep.subr.mxu0 0.0
    %1112 = vmatpush1.msra.mxu0 0.0
    %1113 = vmatprep.subr.mxu0 0.0
    %1114 = vmatpush1.msra.mxu0 0.0
    %1115 = vmatprep.subr.mxu0 0.0
    %1116 = vmatpush1.msra.mxu0 0.0
    %1117 = vmatprep.subr.mxu0 0.0
    %1118 = vmatpush1.msra.mxu0 0.0
    %1119 = vmatprep.subr.mxu0 0.0
    %1120 = vmatpush1.msra.mxu0 %v690
    %1121 = vmatprep.subr.mxu0 0.0
    %1122 = vmatpush1.msra.mxu0 %v689
    %1123 = vmatprep.subr.mxu0 0.0
    %1124 = vmatpush1.msra.mxu0 %v688
    %1125 = vmatprep.subr.mxu0 0.0
    %1126 = vmatpush1.msra.mxu0 %v687
    %1127 = vmatprep.subr.mxu0 0.0
    %1128 = vmatpush2.msra.mxu0 0.0
    %1129 = vmatprep.subr.mxu0 0.0
    %1130 = vmatpush2.msra.mxu0 0.0
    %1131 = vmatprep.subr.mxu0 0.0
    %1132 = vmatpush2.msra.mxu0 0.0
    %1133 = vmatprep.subr.mxu0 0.0
    %1134 = vmatpush2.msra.mxu0 0.0
    %1135 = vmatprep.subr.mxu0 0.0
    %1136 = vmatpush2.msra.mxu0 0.0
    %1137 = vmatprep.subr.mxu0 0.0
    %1138 = vmatpush2.msra.mxu0 0.0
    %1139 = vmatprep.subr.mxu0 0.0
    %1140 = vmatpush2.msra.mxu0 0.0
    %1141 = vmatprep.subr.mxu0 0.0
    %1142 = vmatpush2.msra.mxu0 0.0
    %1143 = vmatprep.subr.mxu0 0.0
    %1144 = vmatpush2.msra.mxu0 0.0
    %1145 = vmatprep.subr.mxu0 0.0
    %1146 = vmatpush2.msra.mxu0 0.0
    %1147 = vmatprep.subr.mxu0 0.0
    %1148 = vmatpush2.msra.mxu0 0.0
    %1149 = vmatprep.subr.mxu0 0.0
    %1150 = vmatpush2.msra.mxu0 0.0
    %1151 = vmatprep.subr.mxu0 0.0
    %1152 = vmatpush2.msra.mxu0 0.0
    %1153 = vmatprep.subr.mxu0 0.0
    %1154 = vmatpush2.msra.mxu0 0.0
    %1155 = vmatprep.subr.mxu0 0.0
    %1156 = vmatpush2.msra.mxu0 0.0
    %1157 = vmatprep.subr.mxu0 0.0
    %1158 = vmatpush2.msra.mxu0 0.0
    %1159 = vmatprep.mubr.f32.mxu0 0.0
    %1160 = vmatmul.mubr.f32.gmra.mxu0 %v813
    %v1161 = vpop.f32.mrf.mxu0
    %v1162 = vadd.f32 %v730, %v1161
    %v1163 = vpop.f32.mrf.mxu0
    %1164 = vdwg.mxu0
    %1165 = vmatprep.subr.mxu0 0.0
    %1166 = vmatpush1.msra.mxu0 0.0
    %1167 = vmatprep.subr.mxu0 0.0
    %1168 = vmatpush1.msra.mxu0 0.0
    %1169 = vmatprep.subr.mxu0 0.0
    %1170 = vmatpush1.msra.mxu0 0.0
    %1171 = vmatprep.subr.mxu0 0.0
    %1172 = vmatpush1.msra.mxu0 0.0
    %1173 = vmatprep.subr.mxu0 0.0
    %1174 = vmatpush1.msra.mxu0 0.0
    %1175 = vmatprep.subr.mxu0 0.0
    %1176 = vmatpush1.msra.mxu0 0.0
    %1177 = vmatprep.subr.mxu0 0.0
    %1178 = vmatpush1.msra.mxu0 0.0
    %1179 = vmatprep.subr.mxu0 0.0
    %1180 = vmatpush1.msra.mxu0 0.0
    %1181 = vmatprep.subr.mxu0 0.0
    %1182 = vmatpush1.msra.mxu0 0.0
    %1183 = vmatprep.subr.mxu0 0.0
    %1184 = vmatpush1.msra.mxu0 0.0
    %1185 = vmatprep.subr.mxu0 0.0
    %1186 = vmatpush1.msra.mxu0 0.0
    %1187 = vmatprep.subr.mxu0 0.0
    %1188 = vmatpush1.msra.mxu0 0.0
    %1189 = vmatprep.subr.mxu0 0.0
    %1190 = vmatpush1.msra.mxu0 %v694
    %1191 = vmatprep.subr.mxu0 0.0
    %1192 = vmatpush1.msra.mxu0 %v693
    %1193 = vmatprep.subr.mxu0 0.0
    %1194 = vmatpush1.msra.mxu0 %v692
    %1195 = vmatprep.subr.mxu0 0.0
    %1196 = vmatpush1.msra.mxu0 %v691
    %1197 = vmatprep.subr.mxu0 0.0
    %1198 = vmatpush2.msra.mxu0 0.0
    %1199 = vmatprep.subr.mxu0 0.0
    %1200 = vmatpush2.msra.mxu0 0.0
    %1201 = vmatprep.subr.mxu0 0.0
    %1202 = vmatpush2.msra.mxu0 0.0
    %1203 = vmatprep.subr.mxu0 0.0
    %1204 = vmatpush2.msra.mxu0 0.0
    %1205 = vmatprep.subr.mxu0 0.0
    %1206 = vmatpush2.msra.mxu0 0.0
    %1207 = vmatprep.subr.mxu0 0.0
    %1208 = vmatpush2.msra.mxu0 0.0
    %1209 = vmatprep.subr.mxu0 0.0
    %1210 = vmatpush2.msra.mxu0 0.0
    %1211 = vmatprep.subr.mxu0 0.0
    %1212 = vmatpush2.msra.mxu0 0.0
    %1213 = vmatprep.subr.mxu0 0.0
    %1214 = vmatpush2.msra.mxu0 0.0
    %1215 = vmatprep.subr.mxu0 0.0
    %1216 = vmatpush2.msra.mxu0 0.0
    %1217 = vmatprep.subr.mxu0 0.0
    %1218 = vmatpush2.msra.mxu0 0.0
    %1219 = vmatprep.subr.mxu0 0.0
    %1220 = vmatpush2.msra.mxu0 0.0
    %1221 = vmatprep.subr.mxu0 0.0
    %1222 = vmatpush2.msra.mxu0 0.0
    %1223 = vmatprep.subr.mxu0 0.0
    %1224 = vmatpush2.msra.mxu0 0.0
    %1225 = vmatprep.subr.mxu0 0.0
    %1226 = vmatpush2.msra.mxu0 0.0
    %1227 = vmatprep.subr.mxu0 0.0
    %1228 = vmatpush2.msra.mxu0 0.0
    %1229 = vmatprep.mubr.f32.mxu0 0.0
    %1230 = vmatmul.mubr.f32.gmra.mxu0 %v740
    %v1231 = vpop.f32.mrf.mxu0
    %v1232 = vadd.f32 %v734, %v1231
    %v1233 = vpop.f32.mrf.mxu0
    %1234 = vdwg.mxu0
    %1235 = vmatprep.subr.mxu0 0.0
    %1236 = vmatpush1.msra.mxu0 0.0
    %1237 = vmatprep.subr.mxu0 0.0
    %1238 = vmatpush1.msra.mxu0 0.0
    %1239 = vmatprep.subr.mxu0 0.0
    %1240 = vmatpush1.msra.mxu0 0.0
    %1241 = vmatprep.subr.mxu0 0.0
    %1242 = vmatpush1.msra.mxu0 0.0
    %1243 = vmatprep.subr.mxu0 0.0
    %1244 = vmatpush1.msra.mxu0 0.0
    %1245 = vmatprep.subr.mxu0 0.0
    %1246 = vmatpush1.msra.mxu0 0.0
    %1247 = vmatprep.subr.mxu0 0.0
    %1248 = vmatpush1.msra.mxu0 0.0
    %1249 = vmatprep.subr.mxu0 0.0
    %1250 = vmatpush1.msra.mxu0 0.0
    %1251 = vmatprep.subr.mxu0 0.0
    %1252 = vmatpush1.msra.mxu0 0.0
    %1253 = vmatprep.subr.mxu0 0.0
    %1254 = vmatpush1.msra.mxu0 0.0
    %1255 = vmatprep.subr.mxu0 0.0
    %1256 = vmatpush1.msra.mxu0 0.0
    %1257 = vmatprep.subr.mxu0 0.0
    %1258 = vmatpush1.msra.mxu0 0.0
    %1259 = vmatprep.subr.mxu0 0.0
    %1260 = vmatpush1.msra.mxu0 %v698
    %1261 = vmatprep.subr.mxu0 0.0
    %1262 = vmatpush1.msra.mxu0 %v697
    %1263 = vmatprep.subr.mxu0 0.0
    %1264 = vmatpush1.msra.mxu0 %v696
    %1265 = vmatprep.subr.mxu0 0.0
    %1266 = vmatpush1.msra.mxu0 %v695
    %1267 = vmatprep.subr.mxu0 0.0
    %1268 = vmatpush2.msra.mxu0 0.0
    %1269 = vmatprep.subr.mxu0 0.0
    %1270 = vmatpush2.msra.mxu0 0.0
    %1271 = vmatprep.subr.mxu0 0.0
    %1272 = vmatpush2.msra.mxu0 0.0
    %1273 = vmatprep.subr.mxu0 0.0
    %1274 = vmatpush2.msra.mxu0 0.0
    %1275 = vmatprep.subr.mxu0 0.0
    %1276 = vmatpush2.msra.mxu0 0.0
    %1277 = vmatprep.subr.mxu0 0.0
    %1278 = vmatpush2.msra.mxu0 0.0
    %1279 = vmatprep.subr.mxu0 0.0
    %1280 = vmatpush2.msra.mxu0 0.0
    %1281 = vmatprep.subr.mxu0 0.0
    %1282 = vmatpush2.msra.mxu0 0.0
    %1283 = vmatprep.subr.mxu0 0.0
    %1284 = vmatpush2.msra.mxu0 0.0
    %1285 = vmatprep.subr.mxu0 0.0
    %1286 = vmatpush2.msra.mxu0 0.0
    %1287 = vmatprep.subr.mxu0 0.0
    %1288 = vmatpush2.msra.mxu0 0.0
    %1289 = vmatprep.subr.mxu0 0.0
    %1290 = vmatpush2.msra.mxu0 0.0
    %1291 = vmatprep.subr.mxu0 0.0
    %1292 = vmatpush2.msra.mxu0 0.0
    %1293 = vmatprep.subr.mxu0 0.0
    %1294 = vmatpush2.msra.mxu0 0.0
    %1295 = vmatprep.subr.mxu0 0.0
    %1296 = vmatpush2.msra.mxu0 0.0
    %1297 = vmatprep.subr.mxu0 0.0
    %1298 = vmatpush2.msra.mxu0 0.0
    %1299 = vmatprep.mubr.f32.mxu0 0.0
    %1300 = vmatmul.mubr.f32.gmra.mxu0 %v813
    %v1301 = vpop.f32.mrf.mxu0
    %v1302 = vadd.f32 %v738, %v1301
    %v1303 = vpop.f32.mrf.mxu0
    %1304 = vdwg.mxu0
    %v1305 = vld [vmem:[%s2] sm:$0xff]
    %v1306 = vld [vmem:[%s2 + $0x8] sm:$0xff]
    %v1307 = vld [vmem:[%s3 + $0x50] sm:$0xff]
    %v1308 = vld [vmem:[%s3 + $0x58] sm:$0xff]
    %v1309 = vld [vmem:[%s3 + $0x60] sm:$0xff]
    %v1310 = vld [vmem:[%s3 + $0x68] sm:$0xff]
    %v1311 = vld [vmem:[%s3 + $0xc8] sm:$0xff]
    %v1312 = vld [vmem:[%s3 + $0xd0] sm:$0xff]
    %v1313 = vld [vmem:[%s3 + $0xd8] sm:$0xff]
    %v1314 = vld [vmem:[%s3 + $0xe0] sm:$0xff]
    %v1315 = vld [vmem:[%s3 + $0x140] sm:$0xff]
    %v1316 = vld [vmem:[%s3 + $0x148] sm:$0xff]
    %v1317 = vld [vmem:[%s3 + $0x150] sm:$0xff]
    %v1318 = vld [vmem:[%s3 + $0x158] sm:$0xff]
    %v1319 = vld [vmem:[%s3 + $0x1b8] sm:$0xff]
    %v1320 = vld [vmem:[%s3 + $0x1c0] sm:$0xff]
    %v1321 = vld [vmem:[%s3 + $0x1c8] sm:$0xff]
    %v1322 = vld [vmem:[%s3 + $0x1d0] sm:$0xff]
    %v1323 = vld [vmem:[%s3 + $0x230] sm:$0xff]
    %v1324 = vld [vmem:[%s3 + $0x238] sm:$0xff]
    %v1325 = vld [vmem:[%s3 + $0x240] sm:$0xff]
    %v1326 = vld [vmem:[%s3 + $0x248] sm:$0xff]
    %v1327 = vld [vmem:[%s3 + $0x2a8] sm:$0xff]
    %v1328 = vld [vmem:[%s3 + $0x2b0] sm:$0xff]
    %v1329 = vld [vmem:[%s3 + $0x2b8] sm:$0xff]
    %v1330 = vld [vmem:[%s3 + $0x2c0] sm:$0xff]
    %v1331 = vld [vmem:[%s3 + $0x320] sm:$0xff]
    %v1332 = vld [vmem:[%s3 + $0x328] sm:$0xff]
    %v1333 = vld [vmem:[%s3 + $0x330] sm:$0xff]
    %v1334 = vld [vmem:[%s3 + $0x338] sm:$0xff]
    %v1335 = vld [vmem:[%s3 + $0x398] sm:$0xff]
    %v1336 = vld [vmem:[%s3 + $0x3a0] sm:$0xff]
    %v1337 = vld [vmem:[%s3 + $0x3a8] sm:$0xff]
    %v1338 = vld [vmem:[%s3 + $0x3b0] sm:$0xff]
    %v1339 = vld [vmem:[%s3 + $0x70] sm:$0x1]
    %v1340 = vld [vmem:[%s3 + $0xe8] sm:$0x1]
    %v1341 = vld [vmem:[%s3 + $0x160] sm:$0x1]
    %v1342 = vld [vmem:[%s3 + $0x1d8] sm:$0x1]
    %v1343 = vld [vmem:[%s3 + $0x250] sm:$0x1]
    %v1344 = vld [vmem:[%s3 + $0x2c8] sm:$0x1]
    %v1345 = vld [vmem:[%s3 + $0x340] sm:$0x1]
    %v1346 = vld [vmem:[%s3 + $0x3b8] sm:$0x1]
    %v1347 = vlaneseq
    %v1348 = vshrl.u32 %v1347, 7
    %v1349 = vsub.s32 0, %v1348
    %v1350 = vrot.slane %v1339, %v1349
    %v1351 = vlaneseq
    %v1352 = vshrl.u32 %v1351, 7
    %v1353 = vsub.s32 0, %v1352
    %v1354 = vrot.slane %v1340, %v1353
    %v1355 = vlaneseq
    %v1356 = vshrl.u32 %v1355, 7
    %v1357 = vsub.s32 0, %v1356
    %v1358 = vrot.slane %v1341, %v1357
    %v1359 = vlaneseq
    %v1360 = vshrl.u32 %v1359, 7
    %v1361 = vsub.s32 0, %v1360
    %v1362 = vrot.slane %v1342, %v1361
    %v1363 = vlaneseq
    %v1364 = vshrl.u32 %v1363, 7
    %v1365 = vsub.s32 0, %v1364
    %v1366 = vrot.slane %v1343, %v1365
    %v1367 = vlaneseq
    %v1368 = vshrl.u32 %v1367, 7
    %v1369 = vsub.s32 0, %v1368
    %v1370 = vrot.slane %v1344, %v1369
    %v1371 = vlaneseq
    %v1372 = vshrl.u32 %v1371, 7
    %v1373 = vsub.s32 0, %v1372
    %v1374 = vrot.slane %v1345, %v1373
    %v1375 = vlaneseq
    %v1376 = vshrl.u32 %v1375, 7
    %v1377 = vsub.s32 0, %v1376
    %v1378 = vrot.slane %v1346, %v1377
    %v1380 = vsel %vm98, %v1305, 0
    %1382 = vmatprep.subr.mxu0 0.0
    %1383 = vmatpush1.msra.mxu0 0.0
    %1384 = vmatprep.subr.mxu0 0.0
    %1385 = vmatpush1.msra.mxu0 0.0
    %1386 = vmatprep.subr.mxu0 0.0
    %1387 = vmatpush1.msra.mxu0 0.0
    %1388 = vmatprep.subr.mxu0 0.0
    %1389 = vmatpush1.msra.mxu0 0.0
    %1390 = vmatprep.subr.mxu0 0.0
    %1391 = vmatpush1.msra.mxu0 0.0
    %1392 = vmatprep.subr.mxu0 0.0
    %1393 = vmatpush1.msra.mxu0 0.0
    %1394 = vmatprep.subr.mxu0 0.0
    %1395 = vmatpush1.msra.mxu0 0.0
    %1396 = vmatprep.subr.mxu0 0.0
    %1397 = vmatpush1.msra.mxu0 0.0
    %1398 = vmatprep.subr.mxu0 0.0
    %1399 = vmatpush1.msra.mxu0 0.0
    %1400 = vmatprep.subr.mxu0 0.0
    %1401 = vmatpush1.msra.mxu0 0.0
    %1402 = vmatprep.subr.mxu0 0.0
    %1403 = vmatpush1.msra.mxu0 0.0
    %1404 = vmatprep.subr.mxu0 0.0
    %1405 = vmatpush1.msra.mxu0 0.0
    %1406 = vmatprep.subr.mxu0 0.0
    %1407 = vmatpush1.msra.mxu0 %v1310
    %1408 = vmatprep.subr.mxu0 0.0
    %1409 = vmatpush1.msra.mxu0 %v1309
    %1410 = vmatprep.subr.mxu0 0.0
    %1411 = vmatpush1.msra.mxu0 %v1308
    %1412 = vmatprep.subr.mxu0 0.0
    %1413 = vmatpush1.msra.mxu0 %v1307
    %1414 = vmatprep.subr.mxu0 0.0
    %1415 = vmatpush2.msra.mxu0 0.0
    %1416 = vmatprep.subr.mxu0 0.0
    %1417 = vmatpush2.msra.mxu0 0.0
    %1418 = vmatprep.subr.mxu0 0.0
    %1419 = vmatpush2.msra.mxu0 0.0
    %1420 = vmatprep.subr.mxu0 0.0
    %1421 = vmatpush2.msra.mxu0 0.0
    %1422 = vmatprep.subr.mxu0 0.0
    %1423 = vmatpush2.msra.mxu0 0.0
    %1424 = vmatprep.subr.mxu0 0.0
    %1425 = vmatpush2.msra.mxu0 0.0
    %1426 = vmatprep.subr.mxu0 0.0
    %1427 = vmatpush2.msra.mxu0 0.0
    %1428 = vmatprep.subr.mxu0 0.0
    %1429 = vmatpush2.msra.mxu0 0.0
    %1430 = vmatprep.subr.mxu0 0.0
    %1431 = vmatpush2.msra.mxu0 0.0
    %1432 = vmatprep.subr.mxu0 0.0
    %1433 = vmatpush2.msra.mxu0 0.0
    %1434 = vmatprep.subr.mxu0 0.0
    %1435 = vmatpush2.msra.mxu0 0.0
    %1436 = vmatprep.subr.mxu0 0.0
    %1437 = vmatpush2.msra.mxu0 0.0
    %1438 = vmatprep.subr.mxu0 0.0
    %1439 = vmatpush2.msra.mxu0 0.0
    %1440 = vmatprep.subr.mxu0 0.0
    %1441 = vmatpush2.msra.mxu0 0.0
    %1442 = vmatprep.subr.mxu0 0.0
    %1443 = vmatpush2.msra.mxu0 0.0
    %1444 = vmatprep.subr.mxu0 0.0
    %1445 = vmatpush2.msra.mxu0 0.0
    %1446 = vmatprep.mubr.f32.mxu0 0.0
    %1447 = vmatmul.mubr.f32.gmra.mxu0 %v1380
    %v1448 = vpop.f32.mrf.mxu0
    %v1449 = vadd.f32 %v1350, %v1448
    %v1450 = vpop.f32.mrf.mxu0
    %1451 = vdwg.mxu0
    %v1453 = vsel %vm98, %v1306, 0
    %1455 = vmatprep.subr.mxu0 0.0
    %1456 = vmatpush1.msra.mxu0 0.0
    %1457 = vmatprep.subr.mxu0 0.0
    %1458 = vmatpush1.msra.mxu0 0.0
    %1459 = vmatprep.subr.mxu0 0.0
    %1460 = vmatpush1.msra.mxu0 0.0
    %1461 = vmatprep.subr.mxu0 0.0
    %1462 = vmatpush1.msra.mxu0 0.0
    %1463 = vmatprep.subr.mxu0 0.0
    %1464 = vmatpush1.msra.mxu0 0.0
    %1465 = vmatprep.subr.mxu0 0.0
    %1466 = vmatpush1.msra.mxu0 0.0
    %1467 = vmatprep.subr.mxu0 0.0
    %1468 = vmatpush1.msra.mxu0 0.0
    %1469 = vmatprep.subr.mxu0 0.0
    %1470 = vmatpush1.msra.mxu0 0.0
    %1471 = vmatprep.subr.mxu0 0.0
    %1472 = vmatpush1.msra.mxu0 0.0
    %1473 = vmatprep.subr.mxu0 0.0
    %1474 = vmatpush1.msra.mxu0 0.0
    %1475 = vmatprep.subr.mxu0 0.0
    %1476 = vmatpush1.msra.mxu0 0.0
    %1477 = vmatprep.subr.mxu0 0.0
    %1478 = vmatpush1.msra.mxu0 0.0
    %1479 = vmatprep.subr.mxu0 0.0
    %1480 = vmatpush1.msra.mxu0 %v1314
    %1481 = vmatprep.subr.mxu0 0.0
    %1482 = vmatpush1.msra.mxu0 %v1313
    %1483 = vmatprep.subr.mxu0 0.0
    %1484 = vmatpush1.msra.mxu0 %v1312
    %1485 = vmatprep.subr.mxu0 0.0
    %1486 = vmatpush1.msra.mxu0 %v1311
    %1487 = vmatprep.subr.mxu0 0.0
    %1488 = vmatpush2.msra.mxu0 0.0
    %1489 = vmatprep.subr.mxu0 0.0
    %1490 = vmatpush2.msra.mxu0 0.0
    %1491 = vmatprep.subr.mxu0 0.0
    %1492 = vmatpush2.msra.mxu0 0.0
    %1493 = vmatprep.subr.mxu0 0.0
    %1494 = vmatpush2.msra.mxu0 0.0
    %1495 = vmatprep.subr.mxu0 0.0
    %1496 = vmatpush2.msra.mxu0 0.0
    %1497 = vmatprep.subr.mxu0 0.0
    %1498 = vmatpush2.msra.mxu0 0.0
    %1499 = vmatprep.subr.mxu0 0.0
    %1500 = vmatpush2.msra.mxu0 0.0
    %1501 = vmatprep.subr.mxu0 0.0
    %1502 = vmatpush2.msra.mxu0 0.0
    %1503 = vmatprep.subr.mxu0 0.0
    %1504 = vmatpush2.msra.mxu0 0.0
    %1505 = vmatprep.subr.mxu0 0.0
    %1506 = vmatpush2.msra.mxu0 0.0
    %1507 = vmatprep.subr.mxu0 0.0
    %1508 = vmatpush2.msra.mxu0 0.0
    %1509 = vmatprep.subr.mxu0 0.0
    %1510 = vmatpush2.msra.mxu0 0.0
    %1511 = vmatprep.subr.mxu0 0.0
    %1512 = vmatpush2.msra.mxu0 0.0
    %1513 = vmatprep.subr.mxu0 0.0
    %1514 = vmatpush2.msra.mxu0 0.0
    %1515 = vmatprep.subr.mxu0 0.0
    %1516 = vmatpush2.msra.mxu0 0.0
    %1517 = vmatprep.subr.mxu0 0.0
    %1518 = vmatpush2.msra.mxu0 0.0
    %1519 = vmatprep.mubr.f32.mxu0 0.0
    %1520 = vmatmul.mubr.f32.gmra.mxu0 %v1453
    %v1521 = vpop.f32.mrf.mxu0
    %v1522 = vadd.f32 %v1354, %v1521
    %v1523 = vpop.f32.mrf.mxu0
    %1524 = vdwg.mxu0
    %1525 = vmatprep.subr.mxu0 0.0
    %1526 = vmatpush1.msra.mxu0 0.0
    %1527 = vmatprep.subr.mxu0 0.0
    %1528 = vmatpush1.msra.mxu0 0.0
    %1529 = vmatprep.subr.mxu0 0.0
    %1530 = vmatpush1.msra.mxu0 0.0
    %1531 = vmatprep.subr.mxu0 0.0
    %1532 = vmatpush1.msra.mxu0 0.0
    %1533 = vmatprep.subr.mxu0 0.0
    %1534 = vmatpush1.msra.mxu0 0.0
    %1535 = vmatprep.subr.mxu0 0.0
    %1536 = vmatpush1.msra.mxu0 0.0
    %1537 = vmatprep.subr.mxu0 0.0
    %1538 = vmatpush1.msra.mxu0 0.0
    %1539 = vmatprep.subr.mxu0 0.0
    %1540 = vmatpush1.msra.mxu0 0.0
    %1541 = vmatprep.subr.mxu0 0.0
    %1542 = vmatpush1.msra.mxu0 0.0
    %1543 = vmatprep.subr.mxu0 0.0
    %1544 = vmatpush1.msra.mxu0 0.0
    %1545 = vmatprep.subr.mxu0 0.0
    %1546 = vmatpush1.msra.mxu0 0.0
    %1547 = vmatprep.subr.mxu0 0.0
    %1548 = vmatpush1.msra.mxu0 0.0
    %1549 = vmatprep.subr.mxu0 0.0
    %1550 = vmatpush1.msra.mxu0 %v1318
    %1551 = vmatprep.subr.mxu0 0.0
    %1552 = vmatpush1.msra.mxu0 %v1317
    %1553 = vmatprep.subr.mxu0 0.0
    %1554 = vmatpush1.msra.mxu0 %v1316
    %1555 = vmatprep.subr.mxu0 0.0
    %1556 = vmatpush1.msra.mxu0 %v1315
    %1557 = vmatprep.subr.mxu0 0.0
    %1558 = vmatpush2.msra.mxu0 0.0
    %1559 = vmatprep.subr.mxu0 0.0
    %1560 = vmatpush2.msra.mxu0 0.0
    %1561 = vmatprep.subr.mxu0 0.0
    %1562 = vmatpush2.msra.mxu0 0.0
    %1563 = vmatprep.subr.mxu0 0.0
    %1564 = vmatpush2.msra.mxu0 0.0
    %1565 = vmatprep.subr.mxu0 0.0
    %1566 = vmatpush2.msra.mxu0 0.0
    %1567 = vmatprep.subr.mxu0 0.0
    %1568 = vmatpush2.msra.mxu0 0.0
    %1569 = vmatprep.subr.mxu0 0.0
    %1570 = vmatpush2.msra.mxu0 0.0
    %1571 = vmatprep.subr.mxu0 0.0
    %1572 = vmatpush2.msra.mxu0 0.0
    %1573 = vmatprep.subr.mxu0 0.0
    %1574 = vmatpush2.msra.mxu0 0.0
    %1575 = vmatprep.subr.mxu0 0.0
    %1576 = vmatpush2.msra.mxu0 0.0
    %1577 = vmatprep.subr.mxu0 0.0
    %1578 = vmatpush2.msra.mxu0 0.0
    %1579 = vmatprep.subr.mxu0 0.0
    %1580 = vmatpush2.msra.mxu0 0.0
    %1581 = vmatprep.subr.mxu0 0.0
    %1582 = vmatpush2.msra.mxu0 0.0
    %1583 = vmatprep.subr.mxu0 0.0
    %1584 = vmatpush2.msra.mxu0 0.0
    %1585 = vmatprep.subr.mxu0 0.0
    %1586 = vmatpush2.msra.mxu0 0.0
    %1587 = vmatprep.subr.mxu0 0.0
    %1588 = vmatpush2.msra.mxu0 0.0
    %1589 = vmatprep.mubr.f32.mxu0 0.0
    %1590 = vmatmul.mubr.f32.gmra.mxu0 %v1380
    %v1591 = vpop.f32.mrf.mxu0
    %v1592 = vadd.f32 %v1358, %v1591
    %v1593 = vpop.f32.mrf.mxu0
    %1594 = vdwg.mxu0
    %1595 = vmatprep.subr.mxu0 0.0
    %1596 = vmatpush1.msra.mxu0 0.0
    %1597 = vmatprep.subr.mxu0 0.0
    %1598 = vmatpush1.msra.mxu0 0.0
    %1599 = vmatprep.subr.mxu0 0.0
    %1600 = vmatpush1.msra.mxu0 0.0
    %1601 = vmatprep.subr.mxu0 0.0
    %1602 = vmatpush1.msra.mxu0 0.0
    %1603 = vmatprep.subr.mxu0 0.0
    %1604 = vmatpush1.msra.mxu0 0.0
    %1605 = vmatprep.subr.mxu0 0.0
    %1606 = vmatpush1.msra.mxu0 0.0
    %1607 = vmatprep.subr.mxu0 0.0
    %1608 = vmatpush1.msra.mxu0 0.0
    %1609 = vmatprep.subr.mxu0 0.0
    %1610 = vmatpush1.msra.mxu0 0.0
    %1611 = vmatprep.subr.mxu0 0.0
    %1612 = vmatpush1.msra.mxu0 0.0
    %1613 = vmatprep.subr.mxu0 0.0
    %1614 = vmatpush1.msra.mxu0 0.0
    %1615 = vmatprep.subr.mxu0 0.0
    %1616 = vmatpush1.msra.mxu0 0.0
    %1617 = vmatprep.subr.mxu0 0.0
    %1618 = vmatpush1.msra.mxu0 0.0
    %1619 = vmatprep.subr.mxu0 0.0
    %1620 = vmatpush1.msra.mxu0 %v1322
    %1621 = vmatprep.subr.mxu0 0.0
    %1622 = vmatpush1.msra.mxu0 %v1321
    %1623 = vmatprep.subr.mxu0 0.0
    %1624 = vmatpush1.msra.mxu0 %v1320
    %1625 = vmatprep.subr.mxu0 0.0
    %1626 = vmatpush1.msra.mxu0 %v1319
    %1627 = vmatprep.subr.mxu0 0.0
    %1628 = vmatpush2.msra.mxu0 0.0
    %1629 = vmatprep.subr.mxu0 0.0
    %1630 = vmatpush2.msra.mxu0 0.0
    %1631 = vmatprep.subr.mxu0 0.0
    %1632 = vmatpush2.msra.mxu0 0.0
    %1633 = vmatprep.subr.mxu0 0.0
    %1634 = vmatpush2.msra.mxu0 0.0
    %1635 = vmatprep.subr.mxu0 0.0
    %1636 = vmatpush2.msra.mxu0 0.0
    %1637 = vmatprep.subr.mxu0 0.0
    %1638 = vmatpush2.msra.mxu0 0.0
    %1639 = vmatprep.subr.mxu0 0.0
    %1640 = vmatpush2.msra.mxu0 0.0
    %1641 = vmatprep.subr.mxu0 0.0
    %1642 = vmatpush2.msra.mxu0 0.0
    %1643 = vmatprep.subr.mxu0 0.0
    %1644 = vmatpush2.msra.mxu0 0.0
    %1645 = vmatprep.subr.mxu0 0.0
    %1646 = vmatpush2.msra.mxu0 0.0
    %1647 = vmatprep.subr.mxu0 0.0
    %1648 = vmatpush2.msra.mxu0 0.0
    %1649 = vmatprep.subr.mxu0 0.0
    %1650 = vmatpush2.msra.mxu0 0.0
    %1651 = vmatprep.subr.mxu0 0.0
    %1652 = vmatpush2.msra.mxu0 0.0
    %1653 = vmatprep.subr.mxu0 0.0
    %1654 = vmatpush2.msra.mxu0 0.0
    %1655 = vmatprep.subr.mxu0 0.0
    %1656 = vmatpush2.msra.mxu0 0.0
    %1657 = vmatprep.subr.mxu0 0.0
    %1658 = vmatpush2.msra.mxu0 0.0
    %1659 = vmatprep.mubr.f32.mxu0 0.0
    %1660 = vmatmul.mubr.f32.gmra.mxu0 %v1453
    %v1661 = vpop.f32.mrf.mxu0
    %v1662 = vadd.f32 %v1362, %v1661
    %v1663 = vpop.f32.mrf.mxu0
    %1664 = vdwg.mxu0
    %1665 = vmatprep.subr.mxu0 0.0
    %1666 = vmatpush1.msra.mxu0 0.0
    %1667 = vmatprep.subr.mxu0 0.0
    %1668 = vmatpush1.msra.mxu0 0.0
    %1669 = vmatprep.subr.mxu0 0.0
    %1670 = vmatpush1.msra.mxu0 0.0
    %1671 = vmatprep.subr.mxu0 0.0
    %1672 = vmatpush1.msra.mxu0 0.0
    %1673 = vmatprep.subr.mxu0 0.0
    %1674 = vmatpush1.msra.mxu0 0.0
    %1675 = vmatprep.subr.mxu0 0.0
    %1676 = vmatpush1.msra.mxu0 0.0
    %1677 = vmatprep.subr.mxu0 0.0
    %1678 = vmatpush1.msra.mxu0 0.0
    %1679 = vmatprep.subr.mxu0 0.0
    %1680 = vmatpush1.msra.mxu0 0.0
    %1681 = vmatprep.subr.mxu0 0.0
    %1682 = vmatpush1.msra.mxu0 0.0
    %1683 = vmatprep.subr.mxu0 0.0
    %1684 = vmatpush1.msra.mxu0 0.0
    %1685 = vmatprep.subr.mxu0 0.0
    %1686 = vmatpush1.msra.mxu0 0.0
    %1687 = vmatprep.subr.mxu0 0.0
    %1688 = vmatpush1.msra.mxu0 0.0
    %1689 = vmatprep.subr.mxu0 0.0
    %1690 = vmatpush1.msra.mxu0 %v1326
    %1691 = vmatprep.subr.mxu0 0.0
    %1692 = vmatpush1.msra.mxu0 %v1325
    %1693 = vmatprep.subr.mxu0 0.0
    %1694 = vmatpush1.msra.mxu0 %v1324
    %1695 = vmatprep.subr.mxu0 0.0
    %1696 = vmatpush1.msra.mxu0 %v1323
    %1697 = vmatprep.subr.mxu0 0.0
    %1698 = vmatpush2.msra.mxu0 0.0
    %1699 = vmatprep.subr.mxu0 0.0
    %1700 = vmatpush2.msra.mxu0 0.0
    %1701 = vmatprep.subr.mxu0 0.0
    %1702 = vmatpush2.msra.mxu0 0.0
    %1703 = vmatprep.subr.mxu0 0.0
    %1704 = vmatpush2.msra.mxu0 0.0
    %1705 = vmatprep.subr.mxu0 0.0
    %1706 = vmatpush2.msra.mxu0 0.0
    %1707 = vmatprep.subr.mxu0 0.0
    %1708 = vmatpush2.msra.mxu0 0.0
    %1709 = vmatprep.subr.mxu0 0.0
    %1710 = vmatpush2.msra.mxu0 0.0
    %1711 = vmatprep.subr.mxu0 0.0
    %1712 = vmatpush2.msra.mxu0 0.0
    %1713 = vmatprep.subr.mxu0 0.0
    %1714 = vmatpush2.msra.mxu0 0.0
    %1715 = vmatprep.subr.mxu0 0.0
    %1716 = vmatpush2.msra.mxu0 0.0
    %1717 = vmatprep.subr.mxu0 0.0
    %1718 = vmatpush2.msra.mxu0 0.0
    %1719 = vmatprep.subr.mxu0 0.0
    %1720 = vmatpush2.msra.mxu0 0.0
    %1721 = vmatprep.subr.mxu0 0.0
    %1722 = vmatpush2.msra.mxu0 0.0
    %1723 = vmatprep.subr.mxu0 0.0
    %1724 = vmatpush2.msra.mxu0 0.0
    %1725 = vmatprep.subr.mxu0 0.0
    %1726 = vmatpush2.msra.mxu0 0.0
    %1727 = vmatprep.subr.mxu0 0.0
    %1728 = vmatpush2.msra.mxu0 0.0
    %1729 = vmatprep.mubr.f32.mxu0 0.0
    %1730 = vmatmul.mubr.f32.gmra.mxu0 %v1380
    %v1731 = vpop.f32.mrf.mxu0
    %v1732 = vadd.f32 %v1366, %v1731
    %v1733 = vpop.f32.mrf.mxu0
    %1734 = vdwg.mxu0
    %1735 = vmatprep.subr.mxu0 0.0
    %1736 = vmatpush1.msra.mxu0 0.0
    %1737 = vmatprep.subr.mxu0 0.0
    %1738 = vmatpush1.msra.mxu0 0.0
    %1739 = vmatprep.subr.mxu0 0.0
    %1740 = vmatpush1.msra.mxu0 0.0
    %1741 = vmatprep.subr.mxu0 0.0
    %1742 = vmatpush1.msra.mxu0 0.0
    %1743 = vmatprep.subr.mxu0 0.0
    %1744 = vmatpush1.msra.mxu0 0.0
    %1745 = vmatprep.subr.mxu0 0.0
    %1746 = vmatpush1.msra.mxu0 0.0
    %1747 = vmatprep.subr.mxu0 0.0
    %1748 = vmatpush1.msra.mxu0 0.0
    %1749 = vmatprep.subr.mxu0 0.0
    %1750 = vmatpush1.msra.mxu0 0.0
    %1751 = vmatprep.subr.mxu0 0.0
    %1752 = vmatpush1.msra.mxu0 0.0
    %1753 = vmatprep.subr.mxu0 0.0
    %1754 = vmatpush1.msra.mxu0 0.0
    %1755 = vmatprep.subr.mxu0 0.0
    %1756 = vmatpush1.msra.mxu0 0.0
    %1757 = vmatprep.subr.mxu0 0.0
    %1758 = vmatpush1.msra.mxu0 0.0
    %1759 = vmatprep.subr.mxu0 0.0
    %1760 = vmatpush1.msra.mxu0 %v1330
    %1761 = vmatprep.subr.mxu0 0.0
    %1762 = vmatpush1.msra.mxu0 %v1329
    %1763 = vmatprep.subr.mxu0 0.0
    %1764 = vmatpush1.msra.mxu0 %v1328
    %1765 = vmatprep.subr.mxu0 0.0
    %1766 = vmatpush1.msra.mxu0 %v1327
    %1767 = vmatprep.subr.mxu0 0.0
    %1768 = vmatpush2.msra.mxu0 0.0
    %1769 = vmatprep.subr.mxu0 0.0
    %1770 = vmatpush2.msra.mxu0 0.0
    %1771 = vmatprep.subr.mxu0 0.0
    %1772 = vmatpush2.msra.mxu0 0.0
    %1773 = vmatprep.subr.mxu0 0.0
    %1774 = vmatpush2.msra.mxu0 0.0
    %1775 = vmatprep.subr.mxu0 0.0
    %1776 = vmatpush2.msra.mxu0 0.0
    %1777 = vmatprep.subr.mxu0 0.0
    %1778 = vmatpush2.msra.mxu0 0.0
    %1779 = vmatprep.subr.mxu0 0.0
    %1780 = vmatpush2.msra.mxu0 0.0
    %1781 = vmatprep.subr.mxu0 0.0
    %1782 = vmatpush2.msra.mxu0 0.0
    %1783 = vmatprep.subr.mxu0 0.0
    %1784 = vmatpush2.msra.mxu0 0.0
    %1785 = vmatprep.subr.mxu0 0.0
    %1786 = vmatpush2.msra.mxu0 0.0
    %1787 = vmatprep.subr.mxu0 0.0
    %1788 = vmatpush2.msra.mxu0 0.0
    %1789 = vmatprep.subr.mxu0 0.0
    %1790 = vmatpush2.msra.mxu0 0.0
    %1791 = vmatprep.subr.mxu0 0.0
    %1792 = vmatpush2.msra.mxu0 0.0
    %1793 = vmatprep.subr.mxu0 0.0
    %1794 = vmatpush2.msra.mxu0 0.0
    %1795 = vmatprep.subr.mxu0 0.0
    %1796 = vmatpush2.msra.mxu0 0.0
    %1797 = vmatprep.subr.mxu0 0.0
    %1798 = vmatpush2.msra.mxu0 0.0
    %1799 = vmatprep.mubr.f32.mxu0 0.0
    %1800 = vmatmul.mubr.f32.gmra.mxu0 %v1453
    %v1801 = vpop.f32.mrf.mxu0
    %v1802 = vadd.f32 %v1370, %v1801
    %v1803 = vpop.f32.mrf.mxu0
    %1804 = vdwg.mxu0
    %1805 = vmatprep.subr.mxu0 0.0
    %1806 = vmatpush1.msra.mxu0 0.0
    %1807 = vmatprep.subr.mxu0 0.0
    %1808 = vmatpush1.msra.mxu0 0.0
    %1809 = vmatprep.subr.mxu0 0.0
    %1810 = vmatpush1.msra.mxu0 0.0
    %1811 = vmatprep.subr.mxu0 0.0
    %1812 = vmatpush1.msra.mxu0 0.0
    %1813 = vmatprep.subr.mxu0 0.0
    %1814 = vmatpush1.msra.mxu0 0.0
    %1815 = vmatprep.subr.mxu0 0.0
    %1816 = vmatpush1.msra.mxu0 0.0
    %1817 = vmatprep.subr.mxu0 0.0
    %1818 = vmatpush1.msra.mxu0 0.0
    %1819 = vmatprep.subr.mxu0 0.0
    %1820 = vmatpush1.msra.mxu0 0.0
    %1821 = vmatprep.subr.mxu0 0.0
    %1822 = vmatpush1.msra.mxu0 0.0
    %1823 = vmatprep.subr.mxu0 0.0
    %1824 = vmatpush1.msra.mxu0 0.0
    %1825 = vmatprep.subr.mxu0 0.0
    %1826 = vmatpush1.msra.mxu0 0.0
    %1827 = vmatprep.subr.mxu0 0.0
    %1828 = vmatpush1.msra.mxu0 0.0
    %1829 = vmatprep.subr.mxu0 0.0
    %1830 = vmatpush1.msra.mxu0 %v1334
    %1831 = vmatprep.subr.mxu0 0.0
    %1832 = vmatpush1.msra.mxu0 %v1333
    %1833 = vmatprep.subr.mxu0 0.0
    %1834 = vmatpush1.msra.mxu0 %v1332
    %1835 = vmatprep.subr.mxu0 0.0
    %1836 = vmatpush1.msra.mxu0 %v1331
    %1837 = vmatprep.subr.mxu0 0.0
    %1838 = vmatpush2.msra.mxu0 0.0
    %1839 = vmatprep.subr.mxu0 0.0
    %1840 = vmatpush2.msra.mxu0 0.0
    %1841 = vmatprep.subr.mxu0 0.0
    %1842 = vmatpush2.msra.mxu0 0.0
    %1843 = vmatprep.subr.mxu0 0.0
    %1844 = vmatpush2.msra.mxu0 0.0
    %1845 = vmatprep.subr.mxu0 0.0
    %1846 = vmatpush2.msra.mxu0 0.0
    %1847 = vmatprep.subr.mxu0 0.0
    %1848 = vmatpush2.msra.mxu0 0.0
    %1849 = vmatprep.subr.mxu0 0.0
    %1850 = vmatpush2.msra.mxu0 0.0
    %1851 = vmatprep.subr.mxu0 0.0
    %1852 = vmatpush2.msra.mxu0 0.0
    %1853 = vmatprep.subr.mxu0 0.0
    %1854 = vmatpush2.msra.mxu0 0.0
    %1855 = vmatprep.subr.mxu0 0.0
    %1856 = vmatpush2.msra.mxu0 0.0
    %1857 = vmatprep.subr.mxu0 0.0
    %1858 = vmatpush2.msra.mxu0 0.0
    %1859 = vmatprep.subr.mxu0 0.0
    %1860 = vmatpush2.msra.mxu0 0.0
    %1861 = vmatprep.subr.mxu0 0.0
    %1862 = vmatpush2.msra.mxu0 0.0
    %1863 = vmatprep.subr.mxu0 0.0
    %1864 = vmatpush2.msra.mxu0 0.0
    %1865 = vmatprep.subr.mxu0 0.0
    %1866 = vmatpush2.msra.mxu0 0.0
    %1867 = vmatprep.subr.mxu0 0.0
    %1868 = vmatpush2.msra.mxu0 0.0
    %1869 = vmatprep.mubr.f32.mxu0 0.0
    %1870 = vmatmul.mubr.f32.gmra.mxu0 %v1380
    %v1871 = vpop.f32.mrf.mxu0
    %v1872 = vadd.f32 %v1374, %v1871
    %v1873 = vpop.f32.mrf.mxu0
    %1874 = vdwg.mxu0
    %1875 = vmatprep.subr.mxu0 0.0
    %1876 = vmatpush1.msra.mxu0 0.0
    %1877 = vmatprep.subr.mxu0 0.0
    %1878 = vmatpush1.msra.mxu0 0.0
    %1879 = vmatprep.subr.mxu0 0.0
    %1880 = vmatpush1.msra.mxu0 0.0
    %1881 = vmatprep.subr.mxu0 0.0
    %1882 = vmatpush1.msra.mxu0 0.0
    %1883 = vmatprep.subr.mxu0 0.0
    %1884 = vmatpush1.msra.mxu0 0.0
    %1885 = vmatprep.subr.mxu0 0.0
    %1886 = vmatpush1.msra.mxu0 0.0
    %1887 = vmatprep.subr.mxu0 0.0
    %1888 = vmatpush1.msra.mxu0 0.0
    %1889 = vmatprep.subr.mxu0 0.0
    %1890 = vmatpush1.msra.mxu0 0.0
    %1891 = vmatprep.subr.mxu0 0.0
    %1892 = vmatpush1.msra.mxu0 0.0
    %1893 = vmatprep.subr.mxu0 0.0
    %1894 = vmatpush1.msra.mxu0 0.0
    %1895 = vmatprep.subr.mxu0 0.0
    %1896 = vmatpush1.msra.mxu0 0.0
    %1897 = vmatprep.subr.mxu0 0.0
    %1898 = vmatpush1.msra.mxu0 0.0
    %1899 = vmatprep.subr.mxu0 0.0
    %1900 = vmatpush1.msra.mxu0 %v1338
    %1901 = vmatprep.subr.mxu0 0.0
    %1902 = vmatpush1.msra.mxu0 %v1337
    %1903 = vmatprep.subr.mxu0 0.0
    %1904 = vmatpush1.msra.mxu0 %v1336
    %1905 = vmatprep.subr.mxu0 0.0
    %1906 = vmatpush1.msra.mxu0 %v1335
    %1907 = vmatprep.subr.mxu0 0.0
    %1908 = vmatpush2.msra.mxu0 0.0
    %1909 = vmatprep.subr.mxu0 0.0
    %1910 = vmatpush2.msra.mxu0 0.0
    %1911 = vmatprep.subr.mxu0 0.0
    %1912 = vmatpush2.msra.mxu0 0.0
    %1913 = vmatprep.subr.mxu0 0.0
    %1914 = vmatpush2.msra.mxu0 0.0
    %1915 = vmatprep.subr.mxu0 0.0
    %1916 = vmatpush2.msra.mxu0 0.0
    %1917 = vmatprep.subr.mxu0 0.0
    %1918 = vmatpush2.msra.mxu0 0.0
    %1919 = vmatprep.subr.mxu0 0.0
    %1920 = vmatpush2.msra.mxu0 0.0
    %1921 = vmatprep.subr.mxu0 0.0
    %1922 = vmatpush2.msra.mxu0 0.0
    %1923 = vmatprep.subr.mxu0 0.0
    %1924 = vmatpush2.msra.mxu0 0.0
    %1925 = vmatprep.subr.mxu0 0.0
    %1926 = vmatpush2.msra.mxu0 0.0
    %1927 = vmatprep.subr.mxu0 0.0
    %1928 = vmatpush2.msra.mxu0 0.0
    %1929 = vmatprep.subr.mxu0 0.0
    %1930 = vmatpush2.msra.mxu0 0.0
    %1931 = vmatprep.subr.mxu0 0.0
    %1932 = vmatpush2.msra.mxu0 0.0
    %1933 = vmatprep.subr.mxu0 0.0
    %1934 = vmatpush2.msra.mxu0 0.0
    %1935 = vmatprep.subr.mxu0 0.0
    %1936 = vmatpush2.msra.mxu0 0.0
    %1937 = vmatprep.subr.mxu0 0.0
    %1938 = vmatpush2.msra.mxu0 0.0
    %1939 = vmatprep.mubr.f32.mxu0 0.0
    %1940 = vmatmul.mubr.f32.gmra.mxu0 %v1453
    %v1941 = vpop.f32.mrf.mxu0
    %v1942 = vadd.f32 %v1378, %v1941
    %v1943 = vpop.f32.mrf.mxu0
    %1944 = vdwg.mxu0
    %vm1945 = vcmask 130048
    %v1947 = vsel %vm1945, %v169, 0
    %v1950 = vsel %vm1945, %v809, 0
    %1952 = vmatprep.subr.mxu0 0.0
    %1953 = vmatpush1.xpose.msra.mxu0 0.0
    %1954 = vmatprep.subr.mxu0 0.0
    %1955 = vmatpush1.xpose.msra.mxu0 0.0
    %1956 = vmatprep.subr.mxu0 0.0
    %1957 = vmatpush1.xpose.msra.mxu0 0.0
    %1958 = vmatprep.subr.mxu0 0.0
    %1959 = vmatpush1.xpose.msra.mxu0 0.0
    %1960 = vmatprep.subr.mxu0 0.0
    %1961 = vmatpush1.xpose.msra.mxu0 0.0
    %1962 = vmatprep.subr.mxu0 0.0
    %1963 = vmatpush1.xpose.msra.mxu0 0.0
    %1964 = vmatprep.subr.mxu0 0.0
    %1965 = vmatpush1.xpose.msra.mxu0 0.0
    %1966 = vmatprep.subr.mxu0 0.0
    %1967 = vmatpush1.xpose.msra.mxu0 0.0
    %1968 = vmatprep.subr.mxu0 0.0
    %1969 = vmatpush1.xpose.msra.mxu0 0.0
    %1970 = vmatprep.subr.mxu0 0.0
    %1971 = vmatpush1.xpose.msra.mxu0 0.0
    %1972 = vmatprep.subr.mxu0 0.0
    %1973 = vmatpush1.xpose.msra.mxu0 0.0
    %1974 = vmatprep.subr.mxu0 0.0
    %1975 = vmatpush1.xpose.msra.mxu0 0.0
    %1976 = vmatprep.subr.mxu0 0.0
    %1977 = vmatpush1.xpose.msra.mxu0 0.0
    %1978 = vmatprep.subr.mxu0 0.0
    %1979 = vmatpush1.xpose.msra.mxu0 0.0
    %1980 = vmatprep.subr.mxu0 0.0
    %1981 = vmatpush1.xpose.msra.mxu0 0.0
    %1982 = vmatprep.subr.mxu0 0.0
    %1983 = vmatpush1.xpose.msra.mxu0 %v1950
    %1984 = vmatprep.subr.mxu0 0.0
    %1985 = vmatpush2.xpose.msra.mxu0 0.0
    %1986 = vmatprep.subr.mxu0 0.0
    %1987 = vmatpush2.xpose.msra.mxu0 0.0
    %1988 = vmatprep.subr.mxu0 0.0
    %1989 = vmatpush2.xpose.msra.mxu0 0.0
    %1990 = vmatprep.subr.mxu0 0.0
    %1991 = vmatpush2.xpose.msra.mxu0 0.0
    %1992 = vmatprep.subr.mxu0 0.0
    %1993 = vmatpush2.xpose.msra.mxu0 0.0
    %1994 = vmatprep.subr.mxu0 0.0
    %1995 = vmatpush2.xpose.msra.mxu0 0.0
    %1996 = vmatprep.subr.mxu0 0.0
    %1997 = vmatpush2.xpose.msra.mxu0 0.0
    %1998 = vmatprep.subr.mxu0 0.0
    %1999 = vmatpush2.xpose.msra.mxu0 0.0
    %2000 = vmatprep.subr.mxu0 0.0
    %2001 = vmatpush2.xpose.msra.mxu0 0.0
    %2002 = vmatprep.subr.mxu0 0.0
    %2003 = vmatpush2.xpose.msra.mxu0 0.0
    %2004 = vmatprep.subr.mxu0 0.0
    %2005 = vmatpush2.xpose.msra.mxu0 0.0
    %2006 = vmatprep.subr.mxu0 0.0
    %2007 = vmatpush2.xpose.msra.mxu0 0.0
    %2008 = vmatprep.subr.mxu0 0.0
    %2009 = vmatpush2.xpose.msra.mxu0 0.0
    %2010 = vmatprep.subr.mxu0 0.0
    %2011 = vmatpush2.xpose.msra.mxu0 0.0
    %2012 = vmatprep.subr.mxu0 0.0
    %2013 = vmatpush2.xpose.msra.mxu0 0.0
    %2014 = vmatprep.subr.mxu0 0.0
    %2015 = vmatpush2.xpose.msra.mxu0 0.0
    %2016 = vmatprep.mubr.f32.mxu0 0.0
    %2017 = vmatmul.mubr.f32.gmra.mxu0 %v1947
    %v2018 = vpop.f32.mrf.mxu0
    %v2019 = vadd.f32 0.0, %v2018
    %v2020 = vpop.f32.mrf.mxu0
    %2021 = vdwg.mxu0
    %v2023 = vsel %vm1945, %v242, 0
    %v2026 = vsel %vm1945, %v882, 0
    %2028 = vmatprep.subr.mxu0 0.0
    %2029 = vmatpush1.xpose.msra.mxu0 0.0
    %2030 = vmatprep.subr.mxu0 0.0
    %2031 = vmatpush1.xpose.msra.mxu0 0.0
    %2032 = vmatprep.subr.mxu0 0.0
    %2033 = vmatpush1.xpose.msra.mxu0 0.0
    %2034 = vmatprep.subr.mxu0 0.0
    %2035 = vmatpush1.xpose.msra.mxu0 0.0
    %2036 = vmatprep.subr.mxu0 0.0
    %2037 = vmatpush1.xpose.msra.mxu0 0.0
    %2038 = vmatprep.subr.mxu0 0.0
    %2039 = vmatpush1.xpose.msra.mxu0 0.0
    %2040 = vmatprep.subr.mxu0 0.0
    %2041 = vmatpush1.xpose.msra.mxu0 0.0
    %2042 = vmatprep.subr.mxu0 0.0
    %2043 = vmatpush1.xpose.msra.mxu0 0.0
    %2044 = vmatprep.subr.mxu0 0.0
    %2045 = vmatpush1.xpose.msra.mxu0 0.0
    %2046 = vmatprep.subr.mxu0 0.0
    %2047 = vmatpush1.xpose.msra.mxu0 0.0
    %2048 = vmatprep.subr.mxu0 0.0
    %2049 = vmatpush1.xpose.msra.mxu0 0.0
    %2050 = vmatprep.subr.mxu0 0.0
    %2051 = vmatpush1.xpose.msra.mxu0 0.0
    %2052 = vmatprep.subr.mxu0 0.0
    %2053 = vmatpush1.xpose.msra.mxu0 0.0
    %2054 = vmatprep.subr.mxu0 0.0
    %2055 = vmatpush1.xpose.msra.mxu0 0.0
    %2056 = vmatprep.subr.mxu0 0.0
    %2057 = vmatpush1.xpose.msra.mxu0 0.0
    %2058 = vmatprep.subr.mxu0 0.0
    %2059 = vmatpush1.xpose.msra.mxu0 %v2026
    %2060 = vmatprep.subr.mxu0 0.0
    %2061 = vmatpush2.xpose.msra.mxu0 0.0
    %2062 = vmatprep.subr.mxu0 0.0
    %2063 = vmatpush2.xpose.msra.mxu0 0.0
    %2064 = vmatprep.subr.mxu0 0.0
    %2065 = vmatpush2.xpose.msra.mxu0 0.0
    %2066 = vmatprep.subr.mxu0 0.0
    %2067 = vmatpush2.xpose.msra.mxu0 0.0
    %2068 = vmatprep.subr.mxu0 0.0
    %2069 = vmatpush2.xpose.msra.mxu0 0.0
    %2070 = vmatprep.subr.mxu0 0.0
    %2071 = vmatpush2.xpose.msra.mxu0 0.0
    %2072 = vmatprep.subr.mxu0 0.0
    %2073 = vmatpush2.xpose.msra.mxu0 0.0
    %2074 = vmatprep.subr.mxu0 0.0
    %2075 = vmatpush2.xpose.msra.mxu0 0.0
    %2076 = vmatprep.subr.mxu0 0.0
    %2077 = vmatpush2.xpose.msra.mxu0 0.0
    %2078 = vmatprep.subr.mxu0 0.0
    %2079 = vmatpush2.xpose.msra.mxu0 0.0
    %2080 = vmatprep.subr.mxu0 0.0
    %2081 = vmatpush2.xpose.msra.mxu0 0.0
    %2082 = vmatprep.subr.mxu0 0.0
    %2083 = vmatpush2.xpose.msra.mxu0 0.0
    %2084 = vmatprep.subr.mxu0 0.0
    %2085 = vmatpush2.xpose.msra.mxu0 0.0
    %2086 = vmatprep.subr.mxu0 0.0
    %2087 = vmatpush2.xpose.msra.mxu0 0.0
    %2088 = vmatprep.subr.mxu0 0.0
    %2089 = vmatpush2.xpose.msra.mxu0 0.0
    %2090 = vmatprep.subr.mxu0 0.0
    %2091 = vmatpush2.xpose.msra.mxu0 0.0
    %2092 = vmatprep.mubr.f32.mxu0 0.0
    %2093 = vmatmul.mubr.f32.gmra.mxu0 %v2023
    %v2094 = vpop.f32.mrf.mxu0
    %v2095 = vadd.f32 0.0, %v2094
    %v2096 = vpop.f32.mrf.mxu0
    %2097 = vdwg.mxu0
    %v2099 = vsel %vm1945, %v312, 0
    %v2102 = vsel %vm1945, %v952, 0
    %2104 = vmatprep.subr.mxu0 0.0
    %2105 = vmatpush1.xpose.msra.mxu0 0.0
    %2106 = vmatprep.subr.mxu0 0.0
    %2107 = vmatpush1.xpose.msra.mxu0 0.0
    %2108 = vmatprep.subr.mxu0 0.0
    %2109 = vmatpush1.xpose.msra.mxu0 0.0
    %2110 = vmatprep.subr.mxu0 0.0
    %2111 = vmatpush1.xpose.msra.mxu0 0.0
    %2112 = vmatprep.subr.mxu0 0.0
    %2113 = vmatpush1.xpose.msra.mxu0 0.0
    %2114 = vmatprep.subr.mxu0 0.0
    %2115 = vmatpush1.xpose.msra.mxu0 0.0
    %2116 = vmatprep.subr.mxu0 0.0
    %2117 = vmatpush1.xpose.msra.mxu0 0.0
    %2118 = vmatprep.subr.mxu0 0.0
    %2119 = vmatpush1.xpose.msra.mxu0 0.0
    %2120 = vmatprep.subr.mxu0 0.0
    %2121 = vmatpush1.xpose.msra.mxu0 0.0
    %2122 = vmatprep.subr.mxu0 0.0
    %2123 = vmatpush1.xpose.msra.mxu0 0.0
    %2124 = vmatprep.subr.mxu0 0.0
    %2125 = vmatpush1.xpose.msra.mxu0 0.0
    %2126 = vmatprep.subr.mxu0 0.0
    %2127 = vmatpush1.xpose.msra.mxu0 0.0
    %2128 = vmatprep.subr.mxu0 0.0
    %2129 = vmatpush1.xpose.msra.mxu0 0.0
    %2130 = vmatprep.subr.mxu0 0.0
    %2131 = vmatpush1.xpose.msra.mxu0 0.0
    %2132 = vmatprep.subr.mxu0 0.0
    %2133 = vmatpush1.xpose.msra.mxu0 0.0
    %2134 = vmatprep.subr.mxu0 0.0
    %2135 = vmatpush1.xpose.msra.mxu0 %v2102
    %2136 = vmatprep.subr.mxu0 0.0
    %2137 = vmatpush2.xpose.msra.mxu0 0.0
    %2138 = vmatprep.subr.mxu0 0.0
    %2139 = vmatpush2.xpose.msra.mxu0 0.0
    %2140 = vmatprep.subr.mxu0 0.0
    %2141 = vmatpush2.xpose.msra.mxu0 0.0
    %2142 = vmatprep.subr.mxu0 0.0
    %2143 = vmatpush2.xpose.msra.mxu0 0.0
    %2144 = vmatprep.subr.mxu0 0.0
    %2145 = vmatpush2.xpose.msra.mxu0 0.0
    %2146 = vmatprep.subr.mxu0 0.0
    %2147 = vmatpush2.xpose.msra.mxu0 0.0
    %2148 = vmatprep.subr.mxu0 0.0
    %2149 = vmatpush2.xpose.msra.mxu0 0.0
    %2150 = vmatprep.subr.mxu0 0.0
    %2151 = vmatpush2.xpose.msra.mxu0 0.0
    %2152 = vmatprep.subr.mxu0 0.0
    %2153 = vmatpush2.xpose.msra.mxu0 0.0
    %2154 = vmatprep.subr.mxu0 0.0
    %2155 = vmatpush2.xpose.msra.mxu0 0.0
    %2156 = vmatprep.subr.mxu0 0.0
    %2157 = vmatpush2.xpose.msra.mxu0 0.0
    %2158 = vmatprep.subr.mxu0 0.0
    %2159 = vmatpush2.xpose.msra.mxu0 0.0
    %2160 = vmatprep.subr.mxu0 0.0
    %2161 = vmatpush2.xpose.msra.mxu0 0.0
    %2162 = vmatprep.subr.mxu0 0.0
    %2163 = vmatpush2.xpose.msra.mxu0 0.0
    %2164 = vmatprep.subr.mxu0 0.0
    %2165 = vmatpush2.xpose.msra.mxu0 0.0
    %2166 = vmatprep.subr.mxu0 0.0
    %2167 = vmatpush2.xpose.msra.mxu0 0.0
    %2168 = vmatprep.mubr.f32.mxu0 0.0
    %2169 = vmatmul.mubr.f32.gmra.mxu0 %v2099
    %v2170 = vpop.f32.mrf.mxu0
    %v2171 = vadd.f32 0.0, %v2170
    %v2172 = vpop.f32.mrf.mxu0
    %2173 = vdwg.mxu0
    %v2175 = vsel %vm1945, %v382, 0
    %v2178 = vsel %vm1945, %v1022, 0
    %2180 = vmatprep.subr.mxu0 0.0
    %2181 = vmatpush1.xpose.msra.mxu0 0.0
    %2182 = vmatprep.subr.mxu0 0.0
    %2183 = vmatpush1.xpose.msra.mxu0 0.0
    %2184 = vmatprep.subr.mxu0 0.0
    %2185 = vmatpush1.xpose.msra.mxu0 0.0
    %2186 = vmatprep.subr.mxu0 0.0
    %2187 = vmatpush1.xpose.msra.mxu0 0.0
    %2188 = vmatprep.subr.mxu0 0.0
    %2189 = vmatpush1.xpose.msra.mxu0 0.0
    %2190 = vmatprep.subr.mxu0 0.0
    %2191 = vmatpush1.xpose.msra.mxu0 0.0
    %2192 = vmatprep.subr.mxu0 0.0
    %2193 = vmatpush1.xpose.msra.mxu0 0.0
    %2194 = vmatprep.subr.mxu0 0.0
    %2195 = vmatpush1.xpose.msra.mxu0 0.0
    %2196 = vmatprep.subr.mxu0 0.0
    %2197 = vmatpush1.xpose.msra.mxu0 0.0
    %2198 = vmatprep.subr.mxu0 0.0
    %2199 = vmatpush1.xpose.msra.mxu0 0.0
    %2200 = vmatprep.subr.mxu0 0.0
    %2201 = vmatpush1.xpose.msra.mxu0 0.0
    %2202 = vmatprep.subr.mxu0 0.0
    %2203 = vmatpush1.xpose.msra.mxu0 0.0
    %2204 = vmatprep.subr.mxu0 0.0
    %2205 = vmatpush1.xpose.msra.mxu0 0.0
    %2206 = vmatprep.subr.mxu0 0.0
    %2207 = vmatpush1.xpose.msra.mxu0 0.0
    %2208 = vmatprep.subr.mxu0 0.0
    %2209 = vmatpush1.xpose.msra.mxu0 0.0
    %2210 = vmatprep.subr.mxu0 0.0
    %2211 = vmatpush1.xpose.msra.mxu0 %v2178
    %2212 = vmatprep.subr.mxu0 0.0
    %2213 = vmatpush2.xpose.msra.mxu0 0.0
    %2214 = vmatprep.subr.mxu0 0.0
    %2215 = vmatpush2.xpose.msra.mxu0 0.0
    %2216 = vmatprep.subr.mxu0 0.0
    %2217 = vmatpush2.xpose.msra.mxu0 0.0
    %2218 = vmatprep.subr.mxu0 0.0
    %2219 = vmatpush2.xpose.msra.mxu0 0.0
    %2220 = vmatprep.subr.mxu0 0.0
    %2221 = vmatpush2.xpose.msra.mxu0 0.0
    %2222 = vmatprep.subr.mxu0 0.0
    %2223 = vmatpush2.xpose.msra.mxu0 0.0
    %2224 = vmatprep.subr.mxu0 0.0
    %2225 = vmatpush2.xpose.msra.mxu0 0.0
    %2226 = vmatprep.subr.mxu0 0.0
    %2227 = vmatpush2.xpose.msra.mxu0 0.0
    %2228 = vmatprep.subr.mxu0 0.0
    %2229 = vmatpush2.xpose.msra.mxu0 0.0
    %2230 = vmatprep.subr.mxu0 0.0
    %2231 = vmatpush2.xpose.msra.mxu0 0.0
    %2232 = vmatprep.subr.mxu0 0.0
    %2233 = vmatpush2.xpose.msra.mxu0 0.0
    %2234 = vmatprep.subr.mxu0 0.0
    %2235 = vmatpush2.xpose.msra.mxu0 0.0
    %2236 = vmatprep.subr.mxu0 0.0
    %2237 = vmatpush2.xpose.msra.mxu0 0.0
    %2238 = vmatprep.subr.mxu0 0.0
    %2239 = vmatpush2.xpose.msra.mxu0 0.0
    %2240 = vmatprep.subr.mxu0 0.0
    %2241 = vmatpush2.xpose.msra.mxu0 0.0
    %2242 = vmatprep.subr.mxu0 0.0
    %2243 = vmatpush2.xpose.msra.mxu0 0.0
    %2244 = vmatprep.mubr.f32.mxu0 0.0
    %2245 = vmatmul.mubr.f32.gmra.mxu0 %v2175
    %v2246 = vpop.f32.mrf.mxu0
    %v2247 = vadd.f32 0.0, %v2246
    %v2248 = vpop.f32.mrf.mxu0
    %2249 = vdwg.mxu0
    %v2251 = vsel %vm1945, %v452, 0
    %v2254 = vsel %vm1945, %v1092, 0
    %2256 = vmatprep.subr.mxu0 0.0
    %2257 = vmatpush1.xpose.msra.mxu0 0.0
    %2258 = vmatprep.subr.mxu0 0.0
    %2259 = vmatpush1.xpose.msra.mxu0 0.0
    %2260 = vmatprep.subr.mxu0 0.0
    %2261 = vmatpush1.xpose.msra.mxu0 0.0
    %2262 = vmatprep.subr.mxu0 0.0
    %2263 = vmatpush1.xpose.msra.mxu0 0.0
    %2264 = vmatprep.subr.mxu0 0.0
    %2265 = vmatpush1.xpose.msra.mxu0 0.0
    %2266 = vmatprep.subr.mxu0 0.0
    %2267 = vmatpush1.xpose.msra.mxu0 0.0
    %2268 = vmatprep.subr.mxu0 0.0
    %2269 = vmatpush1.xpose.msra.mxu0 0.0
    %2270 = vmatprep.subr.mxu0 0.0
    %2271 = vmatpush1.xpose.msra.mxu0 0.0
    %2272 = vmatprep.subr.mxu0 0.0
    %2273 = vmatpush1.xpose.msra.mxu0 0.0
    %2274 = vmatprep.subr.mxu0 0.0
    %2275 = vmatpush1.xpose.msra.mxu0 0.0
    %2276 = vmatprep.subr.mxu0 0.0
    %2277 = vmatpush1.xpose.msra.mxu0 0.0
    %2278 = vmatprep.subr.mxu0 0.0
    %2279 = vmatpush1.xpose.msra.mxu0 0.0
    %2280 = vmatprep.subr.mxu0 0.0
    %2281 = vmatpush1.xpose.msra.mxu0 0.0
    %2282 = vmatprep.subr.mxu0 0.0
    %2283 = vmatpush1.xpose.msra.mxu0 0.0
    %2284 = vmatprep.subr.mxu0 0.0
    %2285 = vmatpush1.xpose.msra.mxu0 0.0
    %2286 = vmatprep.subr.mxu0 0.0
    %2287 = vmatpush1.xpose.msra.mxu0 %v2254
    %2288 = vmatprep.subr.mxu0 0.0
    %2289 = vmatpush2.xpose.msra.mxu0 0.0
    %2290 = vmatprep.subr.mxu0 0.0
    %2291 = vmatpush2.xpose.msra.mxu0 0.0
    %2292 = vmatprep.subr.mxu0 0.0
    %2293 = vmatpush2.xpose.msra.mxu0 0.0
    %2294 = vmatprep.subr.mxu0 0.0
    %2295 = vmatpush2.xpose.msra.mxu0 0.0
    %2296 = vmatprep.subr.mxu0 0.0
    %2297 = vmatpush2.xpose.msra.mxu0 0.0
    %2298 = vmatprep.subr.mxu0 0.0
    %2299 = vmatpush2.xpose.msra.mxu0 0.0
    %2300 = vmatprep.subr.mxu0 0.0
    %2301 = vmatpush2.xpose.msra.mxu0 0.0
    %2302 = vmatprep.subr.mxu0 0.0
    %2303 = vmatpush2.xpose.msra.mxu0 0.0
    %2304 = vmatprep.subr.mxu0 0.0
    %2305 = vmatpush2.xpose.msra.mxu0 0.0
    %2306 = vmatprep.subr.mxu0 0.0
    %2307 = vmatpush2.xpose.msra.mxu0 0.0
    %2308 = vmatprep.subr.mxu0 0.0
    %2309 = vmatpush2.xpose.msra.mxu0 0.0
    %2310 = vmatprep.subr.mxu0 0.0
    %2311 = vmatpush2.xpose.msra.mxu0 0.0
    %2312 = vmatprep.subr.mxu0 0.0
    %2313 = vmatpush2.xpose.msra.mxu0 0.0
    %2314 = vmatprep.subr.mxu0 0.0
    %2315 = vmatpush2.xpose.msra.mxu0 0.0
    %2316 = vmatprep.subr.mxu0 0.0
    %2317 = vmatpush2.xpose.msra.mxu0 0.0
    %2318 = vmatprep.subr.mxu0 0.0
    %2319 = vmatpush2.xpose.msra.mxu0 0.0
    %2320 = vmatprep.mubr.f32.mxu0 0.0
    %2321 = vmatmul.mubr.f32.gmra.mxu0 %v2251
    %v2322 = vpop.f32.mrf.mxu0
    %v2323 = vadd.f32 0.0, %v2322
    %v2324 = vpop.f32.mrf.mxu0
    %2325 = vdwg.mxu0
    %v2327 = vsel %vm1945, %v522, 0
    %v2330 = vsel %vm1945, %v1162, 0
    %2332 = vmatprep.subr.mxu0 0.0
    %2333 = vmatpush1.xpose.msra.mxu0 0.0
    %2334 = vmatprep.subr.mxu0 0.0
    %2335 = vmatpush1.xpose.msra.mxu0 0.0
    %2336 = vmatprep.subr.mxu0 0.0
    %2337 = vmatpush1.xpose.msra.mxu0 0.0
    %2338 = vmatprep.subr.mxu0 0.0
    %2339 = vmatpush1.xpose.msra.mxu0 0.0
    %2340 = vmatprep.subr.mxu0 0.0
    %2341 = vmatpush1.xpose.msra.mxu0 0.0
    %2342 = vmatprep.subr.mxu0 0.0
    %2343 = vmatpush1.xpose.msra.mxu0 0.0
    %2344 = vmatprep.subr.mxu0 0.0
    %2345 = vmatpush1.xpose.msra.mxu0 0.0
    %2346 = vmatprep.subr.mxu0 0.0
    %2347 = vmatpush1.xpose.msra.mxu0 0.0
    %2348 = vmatprep.subr.mxu0 0.0
    %2349 = vmatpush1.xpose.msra.mxu0 0.0
    %2350 = vmatprep.subr.mxu0 0.0
    %2351 = vmatpush1.xpose.msra.mxu0 0.0
    %2352 = vmatprep.subr.mxu0 0.0
    %2353 = vmatpush1.xpose.msra.mxu0 0.0
    %2354 = vmatprep.subr.mxu0 0.0
    %2355 = vmatpush1.xpose.msra.mxu0 0.0
    %2356 = vmatprep.subr.mxu0 0.0
    %2357 = vmatpush1.xpose.msra.mxu0 0.0
    %2358 = vmatprep.subr.mxu0 0.0
    %2359 = vmatpush1.xpose.msra.mxu0 0.0
    %2360 = vmatprep.subr.mxu0 0.0
    %2361 = vmatpush1.xpose.msra.mxu0 0.0
    %2362 = vmatprep.subr.mxu0 0.0
    %2363 = vmatpush1.xpose.msra.mxu0 %v2330
    %2364 = vmatprep.subr.mxu0 0.0
    %2365 = vmatpush2.xpose.msra.mxu0 0.0
    %2366 = vmatprep.subr.mxu0 0.0
    %2367 = vmatpush2.xpose.msra.mxu0 0.0
    %2368 = vmatprep.subr.mxu0 0.0
    %2369 = vmatpush2.xpose.msra.mxu0 0.0
    %2370 = vmatprep.subr.mxu0 0.0
    %2371 = vmatpush2.xpose.msra.mxu0 0.0
    %2372 = vmatprep.subr.mxu0 0.0
    %2373 = vmatpush2.xpose.msra.mxu0 0.0
    %2374 = vmatprep.subr.mxu0 0.0
    %2375 = vmatpush2.xpose.msra.mxu0 0.0
    %2376 = vmatprep.subr.mxu0 0.0
    %2377 = vmatpush2.xpose.msra.mxu0 0.0
    %2378 = vmatprep.subr.mxu0 0.0
    %2379 = vmatpush2.xpose.msra.mxu0 0.0
    %2380 = vmatprep.subr.mxu0 0.0
    %2381 = vmatpush2.xpose.msra.mxu0 0.0
    %2382 = vmatprep.subr.mxu0 0.0
    %2383 = vmatpush2.xpose.msra.mxu0 0.0
    %2384 = vmatprep.subr.mxu0 0.0
    %2385 = vmatpush2.xpose.msra.mxu0 0.0
    %2386 = vmatprep.subr.mxu0 0.0
    %2387 = vmatpush2.xpose.msra.mxu0 0.0
    %2388 = vmatprep.subr.mxu0 0.0
    %2389 = vmatpush2.xpose.msra.mxu0 0.0
    %2390 = vmatprep.subr.mxu0 0.0
    %2391 = vmatpush2.xpose.msra.mxu0 0.0
    %2392 = vmatprep.subr.mxu0 0.0
    %2393 = vmatpush2.xpose.msra.mxu0 0.0
    %2394 = vmatprep.subr.mxu0 0.0
    %2395 = vmatpush2.xpose.msra.mxu0 0.0
    %2396 = vmatprep.mubr.f32.mxu0 0.0
    %2397 = vmatmul.mubr.f32.gmra.mxu0 %v2327
    %v2398 = vpop.f32.mrf.mxu0
    %v2399 = vadd.f32 0.0, %v2398
    %v2400 = vpop.f32.mrf.mxu0
    %2401 = vdwg.mxu0
    %v2403 = vsel %vm1945, %v592, 0
    %v2406 = vsel %vm1945, %v1232, 0
    %2408 = vmatprep.subr.mxu0 0.0
    %2409 = vmatpush1.xpose.msra.mxu0 0.0
    %2410 = vmatprep.subr.mxu0 0.0
    %2411 = vmatpush1.xpose.msra.mxu0 0.0
    %2412 = vmatprep.subr.mxu0 0.0
    %2413 = vmatpush1.xpose.msra.mxu0 0.0
    %2414 = vmatprep.subr.mxu0 0.0
    %2415 = vmatpush1.xpose.msra.mxu0 0.0
    %2416 = vmatprep.subr.mxu0 0.0
    %2417 = vmatpush1.xpose.msra.mxu0 0.0
    %2418 = vmatprep.subr.mxu0 0.0
    %2419 = vmatpush1.xpose.msra.mxu0 0.0
    %2420 = vmatprep.subr.mxu0 0.0
    %2421 = vmatpush1.xpose.msra.mxu0 0.0
    %2422 = vmatprep.subr.mxu0 0.0
    %2423 = vmatpush1.xpose.msra.mxu0 0.0
    %2424 = vmatprep.subr.mxu0 0.0
    %2425 = vmatpush1.xpose.msra.mxu0 0.0
    %2426 = vmatprep.subr.mxu0 0.0
    %2427 = vmatpush1.xpose.msra.mxu0 0.0
    %2428 = vmatprep.subr.mxu0 0.0
    %2429 = vmatpush1.xpose.msra.mxu0 0.0
    %2430 = vmatprep.subr.mxu0 0.0
    %2431 = vmatpush1.xpose.msra.mxu0 0.0
    %2432 = vmatprep.subr.mxu0 0.0
    %2433 = vmatpush1.xpose.msra.mxu0 0.0
    %2434 = vmatprep.subr.mxu0 0.0
    %2435 = vmatpush1.xpose.msra.mxu0 0.0
    %2436 = vmatprep.subr.mxu0 0.0
    %2437 = vmatpush1.xpose.msra.mxu0 0.0
    %2438 = vmatprep.subr.mxu0 0.0
    %2439 = vmatpush1.xpose.msra.mxu0 %v2406
    %2440 = vmatprep.subr.mxu0 0.0
    %2441 = vmatpush2.xpose.msra.mxu0 0.0
    %2442 = vmatprep.subr.mxu0 0.0
    %2443 = vmatpush2.xpose.msra.mxu0 0.0
    %2444 = vmatprep.subr.mxu0 0.0
    %2445 = vmatpush2.xpose.msra.mxu0 0.0
    %2446 = vmatprep.subr.mxu0 0.0
    %2447 = vmatpush2.xpose.msra.mxu0 0.0
    %2448 = vmatprep.subr.mxu0 0.0
    %2449 = vmatpush2.xpose.msra.mxu0 0.0
    %2450 = vmatprep.subr.mxu0 0.0
    %2451 = vmatpush2.xpose.msra.mxu0 0.0
    %2452 = vmatprep.subr.mxu0 0.0
    %2453 = vmatpush2.xpose.msra.mxu0 0.0
    %2454 = vmatprep.subr.mxu0 0.0
    %2455 = vmatpush2.xpose.msra.mxu0 0.0
    %2456 = vmatprep.subr.mxu0 0.0
    %2457 = vmatpush2.xpose.msra.mxu0 0.0
    %2458 = vmatprep.subr.mxu0 0.0
    %2459 = vmatpush2.xpose.msra.mxu0 0.0
    %2460 = vmatprep.subr.mxu0 0.0
    %2461 = vmatpush2.xpose.msra.mxu0 0.0
    %2462 = vmatprep.subr.mxu0 0.0
    %2463 = vmatpush2.xpose.msra.mxu0 0.0
    %2464 = vmatprep.subr.mxu0 0.0
    %2465 = vmatpush2.xpose.msra.mxu0 0.0
    %2466 = vmatprep.subr.mxu0 0.0
    %2467 = vmatpush2.xpose.msra.mxu0 0.0
    %2468 = vmatprep.subr.mxu0 0.0
    %2469 = vmatpush2.xpose.msra.mxu0 0.0
    %2470 = vmatprep.subr.mxu0 0.0
    %2471 = vmatpush2.xpose.msra.mxu0 0.0
    %2472 = vmatprep.mubr.f32.mxu0 0.0
    %2473 = vmatmul.mubr.f32.gmra.mxu0 %v2403
    %v2474 = vpop.f32.mrf.mxu0
    %v2475 = vadd.f32 0.0, %v2474
    %v2476 = vpop.f32.mrf.mxu0
    %2477 = vdwg.mxu0
    %v2479 = vsel %vm1945, %v662, 0
    %v2482 = vsel %vm1945, %v1302, 0
    %2484 = vmatprep.subr.mxu0 0.0
    %2485 = vmatpush1.xpose.msra.mxu0 0.0
    %2486 = vmatprep.subr.mxu0 0.0
    %2487 = vmatpush1.xpose.msra.mxu0 0.0
    %2488 = vmatprep.subr.mxu0 0.0
    %2489 = vmatpush1.xpose.msra.mxu0 0.0
    %2490 = vmatprep.subr.mxu0 0.0
    %2491 = vmatpush1.xpose.msra.mxu0 0.0
    %2492 = vmatprep.subr.mxu0 0.0
    %2493 = vmatpush1.xpose.msra.mxu0 0.0
    %2494 = vmatprep.subr.mxu0 0.0
    %2495 = vmatpush1.xpose.msra.mxu0 0.0
    %2496 = vmatprep.subr.mxu0 0.0
    %2497 = vmatpush1.xpose.msra.mxu0 0.0
    %2498 = vmatprep.subr.mxu0 0.0
    %2499 = vmatpush1.xpose.msra.mxu0 0.0
    %2500 = vmatprep.subr.mxu0 0.0
    %2501 = vmatpush1.xpose.msra.mxu0 0.0
    %2502 = vmatprep.subr.mxu0 0.0
    %2503 = vmatpush1.xpose.msra.mxu0 0.0
    %2504 = vmatprep.subr.mxu0 0.0
    %2505 = vmatpush1.xpose.msra.mxu0 0.0
    %2506 = vmatprep.subr.mxu0 0.0
    %2507 = vmatpush1.xpose.msra.mxu0 0.0
    %2508 = vmatprep.subr.mxu0 0.0
    %2509 = vmatpush1.xpose.msra.mxu0 0.0
    %2510 = vmatprep.subr.mxu0 0.0
    %2511 = vmatpush1.xpose.msra.mxu0 0.0
    %2512 = vmatprep.subr.mxu0 0.0
    %2513 = vmatpush1.xpose.msra.mxu0 0.0
    %2514 = vmatprep.subr.mxu0 0.0
    %2515 = vmatpush1.xpose.msra.mxu0 %v2482
    %2516 = vmatprep.subr.mxu0 0.0
    %2517 = vmatpush2.xpose.msra.mxu0 0.0
    %2518 = vmatprep.subr.mxu0 0.0
    %2519 = vmatpush2.xpose.msra.mxu0 0.0
    %2520 = vmatprep.subr.mxu0 0.0
    %2521 = vmatpush2.xpose.msra.mxu0 0.0
    %2522 = vmatprep.subr.mxu0 0.0
    %2523 = vmatpush2.xpose.msra.mxu0 0.0
    %2524 = vmatprep.subr.mxu0 0.0
    %2525 = vmatpush2.xpose.msra.mxu0 0.0
    %2526 = vmatprep.subr.mxu0 0.0
    %2527 = vmatpush2.xpose.msra.mxu0 0.0
    %2528 = vmatprep.subr.mxu0 0.0
    %2529 = vmatpush2.xpose.msra.mxu0 0.0
    %2530 = vmatprep.subr.mxu0 0.0
    %2531 = vmatpush2.xpose.msra.mxu0 0.0
    %2532 = vmatprep.subr.mxu0 0.0
    %2533 = vmatpush2.xpose.msra.mxu0 0.0
    %2534 = vmatprep.subr.mxu0 0.0
    %2535 = vmatpush2.xpose.msra.mxu0 0.0
    %2536 = vmatprep.subr.mxu0 0.0
    %2537 = vmatpush2.xpose.msra.mxu0 0.0
    %2538 = vmatprep.subr.mxu0 0.0
    %2539 = vmatpush2.xpose.msra.mxu0 0.0
    %2540 = vmatprep.subr.mxu0 0.0
    %2541 = vmatpush2.xpose.msra.mxu0 0.0
    %2542 = vmatprep.subr.mxu0 0.0
    %2543 = vmatpush2.xpose.msra.mxu0 0.0
    %2544 = vmatprep.subr.mxu0 0.0
    %2545 = vmatpush2.xpose.msra.mxu0 0.0
    %2546 = vmatprep.subr.mxu0 0.0
    %2547 = vmatpush2.xpose.msra.mxu0 0.0
    %2548 = vmatprep.mubr.f32.mxu0 0.0
    %2549 = vmatmul.mubr.f32.gmra.mxu0 %v2479
    %v2550 = vpop.f32.mrf.mxu0
    %v2551 = vadd.f32 0.0, %v2550
    %v2552 = vpop.f32.mrf.mxu0
    %2553 = vdwg.mxu0
    %v2554 = vmul.f32 %v2019, 0.25
    %v2555 = vmul.f32 %v2095, 0.25
    %v2556 = vmul.f32 %v2171, 0.25
    %v2557 = vmul.f32 %v2247, 0.25
    %v2558 = vmul.f32 %v2323, 0.25
    %v2559 = vmul.f32 %v2399, 0.25
    %v2560 = vmul.f32 %v2475, 0.25
    %v2561 = vmul.f32 %v2551, 0.25
    %vm2562 = vcmask 64512
    %v2563 = vsel %vm2562, %v2554, -inf
    %2564 = vmax.xlane.f32.xlu0 %v2563
    %v2565 = vpop.xlane.xlu0 %2564
    %v2566 = vsel %vm2562, %v2555, -inf
    %2567 = vmax.xlane.f32.xlu0 %v2566
    %v2568 = vpop.xlane.xlu0 %2567
    %v2569 = vsel %vm2562, %v2556, -inf
    %2570 = vmax.xlane.f32.xlu0 %v2569
    %v2571 = vpop.xlane.xlu0 %2570
    %v2572 = vsel %vm2562, %v2557, -inf
    %2573 = vmax.xlane.f32.xlu0 %v2572
    %v2574 = vpop.xlane.xlu0 %2573
    %v2575 = vsel %vm2562, %v2558, -inf
    %2576 = vmax.xlane.f32.xlu0 %v2575
    %v2577 = vpop.xlane.xlu0 %2576
    %v2578 = vsel %vm2562, %v2559, -inf
    %2579 = vmax.xlane.f32.xlu0 %v2578
    %v2580 = vpop.xlane.xlu0 %2579
    %v2581 = vsel %vm2562, %v2560, -inf
    %2582 = vmax.xlane.f32.xlu0 %v2581
    %v2583 = vpop.xlane.xlu0 %2582
    %v2584 = vsel %vm2562, %v2561, -inf
    %2585 = vmax.xlane.f32.xlu0 %v2584
    %v2586 = vpop.xlane.xlu0 %2585
    %v2587 = vsub.f32 %v2554, %v2565
    %v2588 = vsub.f32 %v2555, %v2568
    %v2589 = vsub.f32 %v2556, %v2571
    %v2590 = vsub.f32 %v2557, %v2574
    %v2591 = vsub.f32 %v2558, %v2577
    %v2592 = vsub.f32 %v2559, %v2580
    %v2593 = vsub.f32 %v2560, %v2583
    %v2594 = vsub.f32 %v2561, %v2586
    %v2595 = vmul.f32 %v2587, 1.442695
    %v2596 = vpow.pop %v2595
    %v2597 = vmul.f32 %v2588, 1.442695
    %v2598 = vpow.pop %v2597
    %v2599 = vmul.f32 %v2589, 1.442695
    %v2600 = vpow.pop %v2599
    %v2601 = vmul.f32 %v2590, 1.442695
    %v2602 = vpow.pop %v2601
    %v2603 = vmul.f32 %v2591, 1.442695
    %v2604 = vpow.pop %v2603
    %v2605 = vmul.f32 %v2592, 1.442695
    %v2606 = vpow.pop %v2605
    %v2607 = vmul.f32 %v2593, 1.442695
    %v2608 = vpow.pop %v2607
    %v2609 = vmul.f32 %v2594, 1.442695
    %v2610 = vpow.pop %v2609
    %v2611 = vsel %vm2562, %v2596, 0.0
    %2612 = vadd.xlane.f32.xlu0 %v2611
    %v2613 = vpop.xlane.xlu0 %2612
    %v2614 = vsel %vm2562, %v2598, 0.0
    %2615 = vadd.xlane.f32.xlu0 %v2614
    %v2616 = vpop.xlane.xlu0 %2615
    %v2617 = vsel %vm2562, %v2600, 0.0
    %2618 = vadd.xlane.f32.xlu0 %v2617
    %v2619 = vpop.xlane.xlu0 %2618
    %v2620 = vsel %vm2562, %v2602, 0.0
    %2621 = vadd.xlane.f32.xlu0 %v2620
    %v2622 = vpop.xlane.xlu0 %2621
    %v2623 = vsel %vm2562, %v2604, 0.0
    %2624 = vadd.xlane.f32.xlu0 %v2623
    %v2625 = vpop.xlane.xlu0 %2624
    %v2626 = vsel %vm2562, %v2606, 0.0
    %2627 = vadd.xlane.f32.xlu0 %v2626
    %v2628 = vpop.xlane.xlu0 %2627
    %v2629 = vsel %vm2562, %v2608, 0.0
    %2630 = vadd.xlane.f32.xlu0 %v2629
    %v2631 = vpop.xlane.xlu0 %2630
    %v2632 = vsel %vm2562, %v2610, 0.0
    %2633 = vadd.xlane.f32.xlu0 %v2632
    %v2634 = vpop.xlane.xlu0 %2633
    %v2635 = vrcp.pop %v2613
    %v2636 = vrcp.pop %v2616
    %v2637 = vrcp.pop %v2619
    %v2638 = vrcp.pop %v2622
    %v2639 = vrcp.pop %v2625
    %v2640 = vrcp.pop %v2628
    %v2641 = vrcp.pop %v2631
    %v2642 = vrcp.pop %v2634
    %v2643 = vmul.f32 %v2596, %v2635
    %v2644 = vmul.f32 %v2598, %v2636
    %v2645 = vmul.f32 %v2600, %v2637
    %v2646 = vmul.f32 %v2602, %v2638
    %v2647 = vmul.f32 %v2604, %v2639
    %v2648 = vmul.f32 %v2606, %v2640
    %v2649 = vmul.f32 %v2608, %v2641
    %v2650 = vmul.f32 %v2610, %v2642
    %v2652 = vsel %vm2562, %v2643, 0
    %2654 = vmatprep.subr.mxu0 0.0
    %2655 = vmatpush1.msra.mxu0 0.0
    %2656 = vmatprep.subr.mxu0 0.0
    %2657 = vmatpush1.msra.mxu0 0.0
    %2658 = vmatprep.subr.mxu0 0.0
    %2659 = vmatpush1.msra.mxu0 0.0
    %2660 = vmatprep.subr.mxu0 0.0
    %2661 = vmatpush1.msra.mxu0 0.0
    %2662 = vmatprep.subr.mxu0 0.0
    %2663 = vmatpush1.msra.mxu0 0.0
    %2664 = vmatprep.subr.mxu0 0.0
    %2665 = vmatpush1.msra.mxu0 0.0
    %2666 = vmatprep.subr.mxu0 0.0
    %2667 = vmatpush1.msra.mxu0 0.0
    %2668 = vmatprep.subr.mxu0 0.0
    %2669 = vmatpush1.msra.mxu0 0.0
    %2670 = vmatprep.subr.mxu0 0.0
    %2671 = vmatpush1.msra.mxu0 0.0
    %2672 = vmatprep.subr.mxu0 0.0
    %2673 = vmatpush1.msra.mxu0 0.0
    %2674 = vmatprep.subr.mxu0 0.0
    %2675 = vmatpush1.msra.mxu0 0.0
    %2676 = vmatprep.subr.mxu0 0.0
    %2677 = vmatpush1.msra.mxu0 0.0
    %2678 = vmatprep.subr.mxu0 0.0
    %2679 = vmatpush1.msra.mxu0 0.0
    %2680 = vmatprep.subr.mxu0 0.0
    %2681 = vmatpush1.msra.mxu0 0.0
    %2682 = vmatprep.subr.mxu0 0.0
    %2683 = vmatpush1.msra.mxu0 0.0
    %2684 = vmatprep.subr.mxu0 0.0
    %2685 = vmatpush1.msra.mxu0 %v1449
    %2686 = vmatprep.subr.mxu0 0.0
    %2687 = vmatpush2.msra.mxu0 0.0
    %2688 = vmatprep.subr.mxu0 0.0
    %2689 = vmatpush2.msra.mxu0 0.0
    %2690 = vmatprep.subr.mxu0 0.0
    %2691 = vmatpush2.msra.mxu0 0.0
    %2692 = vmatprep.subr.mxu0 0.0
    %2693 = vmatpush2.msra.mxu0 0.0
    %2694 = vmatprep.subr.mxu0 0.0
    %2695 = vmatpush2.msra.mxu0 0.0
    %2696 = vmatprep.subr.mxu0 0.0
    %2697 = vmatpush2.msra.mxu0 0.0
    %2698 = vmatprep.subr.mxu0 0.0
    %2699 = vmatpush2.msra.mxu0 0.0
    %2700 = vmatprep.subr.mxu0 0.0
    %2701 = vmatpush2.msra.mxu0 0.0
    %2702 = vmatprep.subr.mxu0 0.0
    %2703 = vmatpush2.msra.mxu0 0.0
    %2704 = vmatprep.subr.mxu0 0.0
    %2705 = vmatpush2.msra.mxu0 0.0
    %2706 = vmatprep.subr.mxu0 0.0
    %2707 = vmatpush2.msra.mxu0 0.0
    %2708 = vmatprep.subr.mxu0 0.0
    %2709 = vmatpush2.msra.mxu0 0.0
    %2710 = vmatprep.subr.mxu0 0.0
    %2711 = vmatpush2.msra.mxu0 0.0
    %2712 = vmatprep.subr.mxu0 0.0
    %2713 = vmatpush2.msra.mxu0 0.0
    %2714 = vmatprep.subr.mxu0 0.0
    %2715 = vmatpush2.msra.mxu0 0.0
    %2716 = vmatprep.subr.mxu0 0.0
    %2717 = vmatpush2.msra.mxu0 0.0
    %2718 = vmatprep.mubr.f32.mxu0 0.0
    %2719 = vmatmul.mubr.f32.gmra.mxu0 %v2652
    %v2720 = vpop.f32.mrf.mxu0
    %v2721 = vadd.f32 0.0, %v2720
    %v2722 = vpop.f32.mrf.mxu0
    %2723 = vdwg.mxu0
    %v2725 = vsel %vm2562, %v2644, 0
    %2727 = vmatprep.subr.mxu0 0.0
    %2728 = vmatpush1.msra.mxu0 0.0
    %2729 = vmatprep.subr.mxu0 0.0
    %2730 = vmatpush1.msra.mxu0 0.0
    %2731 = vmatprep.subr.mxu0 0.0
    %2732 = vmatpush1.msra.mxu0 0.0
    %2733 = vmatprep.subr.mxu0 0.0
    %2734 = vmatpush1.msra.mxu0 0.0
    %2735 = vmatprep.subr.mxu0 0.0
    %2736 = vmatpush1.msra.mxu0 0.0
    %2737 = vmatprep.subr.mxu0 0.0
    %2738 = vmatpush1.msra.mxu0 0.0
    %2739 = vmatprep.subr.mxu0 0.0
    %2740 = vmatpush1.msra.mxu0 0.0
    %2741 = vmatprep.subr.mxu0 0.0
    %2742 = vmatpush1.msra.mxu0 0.0
    %2743 = vmatprep.subr.mxu0 0.0
    %2744 = vmatpush1.msra.mxu0 0.0
    %2745 = vmatprep.subr.mxu0 0.0
    %2746 = vmatpush1.msra.mxu0 0.0
    %2747 = vmatprep.subr.mxu0 0.0
    %2748 = vmatpush1.msra.mxu0 0.0
    %2749 = vmatprep.subr.mxu0 0.0
    %2750 = vmatpush1.msra.mxu0 0.0
    %2751 = vmatprep.subr.mxu0 0.0
    %2752 = vmatpush1.msra.mxu0 0.0
    %2753 = vmatprep.subr.mxu0 0.0
    %2754 = vmatpush1.msra.mxu0 0.0
    %2755 = vmatprep.subr.mxu0 0.0
    %2756 = vmatpush1.msra.mxu0 0.0
    %2757 = vmatprep.subr.mxu0 0.0
    %2758 = vmatpush1.msra.mxu0 %v1522
    %2759 = vmatprep.subr.mxu0 0.0
    %2760 = vmatpush2.msra.mxu0 0.0
    %2761 = vmatprep.subr.mxu0 0.0
    %2762 = vmatpush2.msra.mxu0 0.0
    %2763 = vmatprep.subr.mxu0 0.0
    %2764 = vmatpush2.msra.mxu0 0.0
    %2765 = vmatprep.subr.mxu0 0.0
    %2766 = vmatpush2.msra.mxu0 0.0
    %2767 = vmatprep.subr.mxu0 0.0
    %2768 = vmatpush2.msra.mxu0 0.0
    %2769 = vmatprep.subr.mxu0 0.0
    %2770 = vmatpush2.msra.mxu0 0.0
    %2771 = vmatprep.subr.mxu0 0.0
    %2772 = vmatpush2.msra.mxu0 0.0
    %2773 = vmatprep.subr.mxu0 0.0
    %2774 = vmatpush2.msra.mxu0 0.0
    %2775 = vmatprep.subr.mxu0 0.0
    %2776 = vmatpush2.msra.mxu0 0.0
    %2777 = vmatprep.subr.mxu0 0.0
    %2778 = vmatpush2.msra.mxu0 0.0
    %2779 = vmatprep.subr.mxu0 0.0
    %2780 = vmatpush2.msra.mxu0 0.0
    %2781 = vmatprep.subr.mxu0 0.0
    %2782 = vmatpush2.msra.mxu0 0.0
    %2783 = vmatprep.subr.mxu0 0.0
    %2784 = vmatpush2.msra.mxu0 0.0
    %2785 = vmatprep.subr.mxu0 0.0
    %2786 = vmatpush2.msra.mxu0 0.0
    %2787 = vmatprep.subr.mxu0 0.0
    %2788 = vmatpush2.msra.mxu0 0.0
    %2789 = vmatprep.subr.mxu0 0.0
    %2790 = vmatpush2.msra.mxu0 0.0
    %2791 = vmatprep.mubr.f32.mxu0 0.0
    %2792 = vmatmul.mubr.f32.gmra.mxu0 %v2725
    %v2793 = vpop.f32.mrf.mxu0
    %v2794 = vadd.f32 0.0, %v2793
    %v2795 = vpop.f32.mrf.mxu0
    %2796 = vdwg.mxu0
    %v2798 = vsel %vm2562, %v2645, 0
    %2800 = vmatprep.subr.mxu0 0.0
    %2801 = vmatpush1.msra.mxu0 0.0
    %2802 = vmatprep.subr.mxu0 0.0
    %2803 = vmatpush1.msra.mxu0 0.0
    %2804 = vmatprep.subr.mxu0 0.0
    %2805 = vmatpush1.msra.mxu0 0.0
    %2806 = vmatprep.subr.mxu0 0.0
    %2807 = vmatpush1.msra.mxu0 0.0
    %2808 = vmatprep.subr.mxu0 0.0
    %2809 = vmatpush1.msra.mxu0 0.0
    %2810 = vmatprep.subr.mxu0 0.0
    %2811 = vmatpush1.msra.mxu0 0.0
    %2812 = vmatprep.subr.mxu0 0.0
    %2813 = vmatpush1.msra.mxu0 0.0
    %2814 = vmatprep.subr.mxu0 0.0
    %2815 = vmatpush1.msra.mxu0 0.0
    %2816 = vmatprep.subr.mxu0 0.0
    %2817 = vmatpush1.msra.mxu0 0.0
    %2818 = vmatprep.subr.mxu0 0.0
    %2819 = vmatpush1.msra.mxu0 0.0
    %2820 = vmatprep.subr.mxu0 0.0
    %2821 = vmatpush1.msra.mxu0 0.0
    %2822 = vmatprep.subr.mxu0 0.0
    %2823 = vmatpush1.msra.mxu0 0.0
    %2824 = vmatprep.subr.mxu0 0.0
    %2825 = vmatpush1.msra.mxu0 0.0
    %2826 = vmatprep.subr.mxu0 0.0
    %2827 = vmatpush1.msra.mxu0 0.0
    %2828 = vmatprep.subr.mxu0 0.0
    %2829 = vmatpush1.msra.mxu0 0.0
    %2830 = vmatprep.subr.mxu0 0.0
    %2831 = vmatpush1.msra.mxu0 %v1592
    %2832 = vmatprep.subr.mxu0 0.0
    %2833 = vmatpush2.msra.mxu0 0.0
    %2834 = vmatprep.subr.mxu0 0.0
    %2835 = vmatpush2.msra.mxu0 0.0
    %2836 = vmatprep.subr.mxu0 0.0
    %2837 = vmatpush2.msra.mxu0 0.0
    %2838 = vmatprep.subr.mxu0 0.0
    %2839 = vmatpush2.msra.mxu0 0.0
    %2840 = vmatprep.subr.mxu0 0.0
    %2841 = vmatpush2.msra.mxu0 0.0
    %2842 = vmatprep.subr.mxu0 0.0
    %2843 = vmatpush2.msra.mxu0 0.0
    %2844 = vmatprep.subr.mxu0 0.0
    %2845 = vmatpush2.msra.mxu0 0.0
    %2846 = vmatprep.subr.mxu0 0.0
    %2847 = vmatpush2.msra.mxu0 0.0
    %2848 = vmatprep.subr.mxu0 0.0
    %2849 = vmatpush2.msra.mxu0 0.0
    %2850 = vmatprep.subr.mxu0 0.0
    %2851 = vmatpush2.msra.mxu0 0.0
    %2852 = vmatprep.subr.mxu0 0.0
    %2853 = vmatpush2.msra.mxu0 0.0
    %2854 = vmatprep.subr.mxu0 0.0
    %2855 = vmatpush2.msra.mxu0 0.0
    %2856 = vmatprep.subr.mxu0 0.0
    %2857 = vmatpush2.msra.mxu0 0.0
    %2858 = vmatprep.subr.mxu0 0.0
    %2859 = vmatpush2.msra.mxu0 0.0
    %2860 = vmatprep.subr.mxu0 0.0
    %2861 = vmatpush2.msra.mxu0 0.0
    %2862 = vmatprep.subr.mxu0 0.0
    %2863 = vmatpush2.msra.mxu0 0.0
    %2864 = vmatprep.mubr.f32.mxu0 0.0
    %2865 = vmatmul.mubr.f32.gmra.mxu0 %v2798
    %v2866 = vpop.f32.mrf.mxu0
    %v2867 = vadd.f32 0.0, %v2866
    %v2868 = vpop.f32.mrf.mxu0
    %2869 = vdwg.mxu0
    %v2871 = vsel %vm2562, %v2646, 0
    %2873 = vmatprep.subr.mxu0 0.0
    %2874 = vmatpush1.msra.mxu0 0.0
    %2875 = vmatprep.subr.mxu0 0.0
    %2876 = vmatpush1.msra.mxu0 0.0
    %2877 = vmatprep.subr.mxu0 0.0
    %2878 = vmatpush1.msra.mxu0 0.0
    %2879 = vmatprep.subr.mxu0 0.0
    %2880 = vmatpush1.msra.mxu0 0.0
    %2881 = vmatprep.subr.mxu0 0.0
    %2882 = vmatpush1.msra.mxu0 0.0
    %2883 = vmatprep.subr.mxu0 0.0
    %2884 = vmatpush1.msra.mxu0 0.0
    %2885 = vmatprep.subr.mxu0 0.0
    %2886 = vmatpush1.msra.mxu0 0.0
    %2887 = vmatprep.subr.mxu0 0.0
    %2888 = vmatpush1.msra.mxu0 0.0
    %2889 = vmatprep.subr.mxu0 0.0
    %2890 = vmatpush1.msra.mxu0 0.0
    %2891 = vmatprep.subr.mxu0 0.0
    %2892 = vmatpush1.msra.mxu0 0.0
    %2893 = vmatprep.subr.mxu0 0.0
    %2894 = vmatpush1.msra.mxu0 0.0
    %2895 = vmatprep.subr.mxu0 0.0
    %2896 = vmatpush1.msra.mxu0 0.0
    %2897 = vmatprep.subr.mxu0 0.0
    %2898 = vmatpush1.msra.mxu0 0.0
    %2899 = vmatprep.subr.mxu0 0.0
    %2900 = vmatpush1.msra.mxu0 0.0
    %2901 = vmatprep.subr.mxu0 0.0
    %2902 = vmatpush1.msra.mxu0 0.0
    %2903 = vmatprep.subr.mxu0 0.0
    %2904 = vmatpush1.msra.mxu0 %v1662
    %2905 = vmatprep.subr.mxu0 0.0
    %2906 = vmatpush2.msra.mxu0 0.0
    %2907 = vmatprep.subr.mxu0 0.0
    %2908 = vmatpush2.msra.mxu0 0.0
    %2909 = vmatprep.subr.mxu0 0.0
    %2910 = vmatpush2.msra.mxu0 0.0
    %2911 = vmatprep.subr.mxu0 0.0
    %2912 = vmatpush2.msra.mxu0 0.0
    %2913 = vmatprep.subr.mxu0 0.0
    %2914 = vmatpush2.msra.mxu0 0.0
    %2915 = vmatprep.subr.mxu0 0.0
    %2916 = vmatpush2.msra.mxu0 0.0
    %2917 = vmatprep.subr.mxu0 0.0
    %2918 = vmatpush2.msra.mxu0 0.0
    %2919 = vmatprep.subr.mxu0 0.0
    %2920 = vmatpush2.msra.mxu0 0.0
    %2921 = vmatprep.subr.mxu0 0.0
    %2922 = vmatpush2.msra.mxu0 0.0
    %2923 = vmatprep.subr.mxu0 0.0
    %2924 = vmatpush2.msra.mxu0 0.0
    %2925 = vmatprep.subr.mxu0 0.0
    %2926 = vmatpush2.msra.mxu0 0.0
    %2927 = vmatprep.subr.mxu0 0.0
    %2928 = vmatpush2.msra.mxu0 0.0
    %2929 = vmatprep.subr.mxu0 0.0
    %2930 = vmatpush2.msra.mxu0 0.0
    %2931 = vmatprep.subr.mxu0 0.0
    %2932 = vmatpush2.msra.mxu0 0.0
    %2933 = vmatprep.subr.mxu0 0.0
    %2934 = vmatpush2.msra.mxu0 0.0
    %2935 = vmatprep.subr.mxu0 0.0
    %2936 = vmatpush2.msra.mxu0 0.0
    %2937 = vmatprep.mubr.f32.mxu0 0.0
    %2938 = vmatmul.mubr.f32.gmra.mxu0 %v2871
    %v2939 = vpop.f32.mrf.mxu0
    %v2940 = vadd.f32 0.0, %v2939
    %v2941 = vpop.f32.mrf.mxu0
    %2942 = vdwg.mxu0
    %v2944 = vsel %vm2562, %v2647, 0
    %2946 = vmatprep.subr.mxu0 0.0
    %2947 = vmatpush1.msra.mxu0 0.0
    %2948 = vmatprep.subr.mxu0 0.0
    %2949 = vmatpush1.msra.mxu0 0.0
    %2950 = vmatprep.subr.mxu0 0.0
    %2951 = vmatpush1.msra.mxu0 0.0
    %2952 = vmatprep.subr.mxu0 0.0
    %2953 = vmatpush1.msra.mxu0 0.0
    %2954 = vmatprep.subr.mxu0 0.0
    %2955 = vmatpush1.msra.mxu0 0.0
    %2956 = vmatprep.subr.mxu0 0.0
    %2957 = vmatpush1.msra.mxu0 0.0
    %2958 = vmatprep.subr.mxu0 0.0
    %2959 = vmatpush1.msra.mxu0 0.0
    %2960 = vmatprep.subr.mxu0 0.0
    %2961 = vmatpush1.msra.mxu0 0.0
    %2962 = vmatprep.subr.mxu0 0.0
    %2963 = vmatpush1.msra.mxu0 0.0
    %2964 = vmatprep.subr.mxu0 0.0
    %2965 = vmatpush1.msra.mxu0 0.0
    %2966 = vmatprep.subr.mxu0 0.0
    %2967 = vmatpush1.msra.mxu0 0.0
    %2968 = vmatprep.subr.mxu0 0.0
    %2969 = vmatpush1.msra.mxu0 0.0
    %2970 = vmatprep.subr.mxu0 0.0
    %2971 = vmatpush1.msra.mxu0 0.0
    %2972 = vmatprep.subr.mxu0 0.0
    %2973 = vmatpush1.msra.mxu0 0.0
    %2974 = vmatprep.subr.mxu0 0.0
    %2975 = vmatpush1.msra.mxu0 0.0
    %2976 = vmatprep.subr.mxu0 0.0
    %2977 = vmatpush1.msra.mxu0 %v1732
    %2978 = vmatprep.subr.mxu0 0.0
    %2979 = vmatpush2.msra.mxu0 0.0
    %2980 = vmatprep.subr.mxu0 0.0
    %2981 = vmatpush2.msra.mxu0 0.0
    %2982 = vmatprep.subr.mxu0 0.0
    %2983 = vmatpush2.msra.mxu0 0.0
    %2984 = vmatprep.subr.mxu0 0.0
    %2985 = vmatpush2.msra.mxu0 0.0
    %2986 = vmatprep.subr.mxu0 0.0
    %2987 = vmatpush2.msra.mxu0 0.0
    %2988 = vmatprep.subr.mxu0 0.0
    %2989 = vmatpush2.msra.mxu0 0.0
    %2990 = vmatprep.subr.mxu0 0.0
    %2991 = vmatpush2.msra.mxu0 0.0
    %2992 = vmatprep.subr.mxu0 0.0
    %2993 = vmatpush2.msra.mxu0 0.0
    %2994 = vmatprep.subr.mxu0 0.0
    %2995 = vmatpush2.msra.mxu0 0.0
    %2996 = vmatprep.subr.mxu0 0.0
    %2997 = vmatpush2.msra.mxu0 0.0
    %2998 = vmatprep.subr.mxu0 0.0
    %2999 = vmatpush2.msra.mxu0 0.0
    %3000 = vmatprep.subr.mxu0 0.0
    %3001 = vmatpush2.msra.mxu0 0.0
    %3002 = vmatprep.subr.mxu0 0.0
    %3003 = vmatpush2.msra.mxu0 0.0
    %3004 = vmatprep.subr.mxu0 0.0
    %3005 = vmatpush2.msra.mxu0 0.0
    %3006 = vmatprep.subr.mxu0 0.0
    %3007 = vmatpush2.msra.mxu0 0.0
    %3008 = vmatprep.subr.mxu0 0.0
    %3009 = vmatpush2.msra.mxu0 0.0
    %3010 = vmatprep.mubr.f32.mxu0 0.0
    %3011 = vmatmul.mubr.f32.gmra.mxu0 %v2944
    %v3012 = vpop.f32.mrf.mxu0
    %v3013 = vadd.f32 0.0, %v3012
    %v3014 = vpop.f32.mrf.mxu0
    %3015 = vdwg.mxu0
    %v3017 = vsel %vm2562, %v2648, 0
    %3019 = vmatprep.subr.mxu0 0.0
    %3020 = vmatpush1.msra.mxu0 0.0
    %3021 = vmatprep.subr.mxu0 0.0
    %3022 = vmatpush1.msra.mxu0 0.0
    %3023 = vmatprep.subr.mxu0 0.0
    %3024 = vmatpush1.msra.mxu0 0.0
    %3025 = vmatprep.subr.mxu0 0.0
    %3026 = vmatpush1.msra.mxu0 0.0
    %3027 = vmatprep.subr.mxu0 0.0
    %3028 = vmatpush1.msra.mxu0 0.0
    %3029 = vmatprep.subr.mxu0 0.0
    %3030 = vmatpush1.msra.mxu0 0.0
    %3031 = vmatprep.subr.mxu0 0.0
    %3032 = vmatpush1.msra.mxu0 0.0
    %3033 = vmatprep.subr.mxu0 0.0
    %3034 = vmatpush1.msra.mxu0 0.0
    %3035 = vmatprep.subr.mxu0 0.0
    %3036 = vmatpush1.msra.mxu0 0.0
    %3037 = vmatprep.subr.mxu0 0.0
    %3038 = vmatpush1.msra.mxu0 0.0
    %3039 = vmatprep.subr.mxu0 0.0
    %3040 = vmatpush1.msra.mxu0 0.0
    %3041 = vmatprep.subr.mxu0 0.0
    %3042 = vmatpush1.msra.mxu0 0.0
    %3043 = vmatprep.subr.mxu0 0.0
    %3044 = vmatpush1.msra.mxu0 0.0
    %3045 = vmatprep.subr.mxu0 0.0
    %3046 = vmatpush1.msra.mxu0 0.0
    %3047 = vmatprep.subr.mxu0 0.0
    %3048 = vmatpush1.msra.mxu0 0.0
    %3049 = vmatprep.subr.mxu0 0.0
    %3050 = vmatpush1.msra.mxu0 %v1802
    %3051 = vmatprep.subr.mxu0 0.0
    %3052 = vmatpush2.msra.mxu0 0.0
    %3053 = vmatprep.subr.mxu0 0.0
    %3054 = vmatpush2.msra.mxu0 0.0
    %3055 = vmatprep.subr.mxu0 0.0
    %3056 = vmatpush2.msra.mxu0 0.0
    %3057 = vmatprep.subr.mxu0 0.0
    %3058 = vmatpush2.msra.mxu0 0.0
    %3059 = vmatprep.subr.mxu0 0.0
    %3060 = vmatpush2.msra.mxu0 0.0
    %3061 = vmatprep.subr.mxu0 0.0
    %3062 = vmatpush2.msra.mxu0 0.0
    %3063 = vmatprep.subr.mxu0 0.0
    %3064 = vmatpush2.msra.mxu0 0.0
    %3065 = vmatprep.subr.mxu0 0.0
    %3066 = vmatpush2.msra.mxu0 0.0
    %3067 = vmatprep.subr.mxu0 0.0
    %3068 = vmatpush2.msra.mxu0 0.0
    %3069 = vmatprep.subr.mxu0 0.0
    %3070 = vmatpush2.msra.mxu0 0.0
    %3071 = vmatprep.subr.mxu0 0.0
    %3072 = vmatpush2.msra.mxu0 0.0
    %3073 = vmatprep.subr.mxu0 0.0
    %3074 = vmatpush2.msra.mxu0 0.0
    %3075 = vmatprep.subr.mxu0 0.0
    %3076 = vmatpush2.msra.mxu0 0.0
    %3077 = vmatprep.subr.mxu0 0.0
    %3078 = vmatpush2.msra.mxu0 0.0
    %3079 = vmatprep.subr.mxu0 0.0
    %3080 = vmatpush2.msra.mxu0 0.0
    %3081 = vmatprep.subr.mxu0 0.0
    %3082 = vmatpush2.msra.mxu0 0.0
    %3083 = vmatprep.mubr.f32.mxu0 0.0
    %3084 = vmatmul.mubr.f32.gmra.mxu0 %v3017
    %v3085 = vpop.f32.mrf.mxu0
    %v3086 = vadd.f32 0.0, %v3085
    %v3087 = vpop.f32.mrf.mxu0
    %3088 = vdwg.mxu0
    %v3090 = vsel %vm2562, %v2649, 0
    %3092 = vmatprep.subr.mxu0 0.0
    %3093 = vmatpush1.msra.mxu0 0.0
    %3094 = vmatprep.subr.mxu0 0.0
    %3095 = vmatpush1.msra.mxu0 0.0
    %3096 = vmatprep.subr.mxu0 0.0
    %3097 = vmatpush1.msra.mxu0 0.0
    %3098 = vmatprep.subr.mxu0 0.0
    %3099 = vmatpush1.msra.mxu0 0.0
    %3100 = vmatprep.subr.mxu0 0.0
    %3101 = vmatpush1.msra.mxu0 0.0
    %3102 = vmatprep.subr.mxu0 0.0
    %3103 = vmatpush1.msra.mxu0 0.0
    %3104 = vmatprep.subr.mxu0 0.0
    %3105 = vmatpush1.msra.mxu0 0.0
    %3106 = vmatprep.subr.mxu0 0.0
    %3107 = vmatpush1.msra.mxu0 0.0
    %3108 = vmatprep.subr.mxu0 0.0
    %3109 = vmatpush1.msra.mxu0 0.0
    %3110 = vmatprep.subr.mxu0 0.0
    %3111 = vmatpush1.msra.mxu0 0.0
    %3112 = vmatprep.subr.mxu0 0.0
    %3113 = vmatpush1.msra.mxu0 0.0
    %3114 = vmatprep.subr.mxu0 0.0
    %3115 = vmatpush1.msra.mxu0 0.0
    %3116 = vmatprep.subr.mxu0 0.0
    %3117 = vmatpush1.msra.mxu0 0.0
    %3118 = vmatprep.subr.mxu0 0.0
    %3119 = vmatpush1.msra.mxu0 0.0
    %3120 = vmatprep.subr.mxu0 0.0
    %3121 = vmatpush1.msra.mxu0 0.0
    %3122 = vmatprep.subr.mxu0 0.0
    %3123 = vmatpush1.msra.mxu0 %v1872
    %3124 = vmatprep.subr.mxu0 0.0
    %3125 = vmatpush2.msra.mxu0 0.0
    %3126 = vmatprep.subr.mxu0 0.0
    %3127 = vmatpush2.msra.mxu0 0.0
    %3128 = vmatprep.subr.mxu0 0.0
    %3129 = vmatpush2.msra.mxu0 0.0
    %3130 = vmatprep.subr.mxu0 0.0
    %3131 = vmatpush2.msra.mxu0 0.0
    %3132 = vmatprep.subr.mxu0 0.0
    %3133 = vmatpush2.msra.mxu0 0.0
    %3134 = vmatprep.subr.mxu0 0.0
    %3135 = vmatpush2.msra.mxu0 0.0
    %3136 = vmatprep.subr.mxu0 0.0
    %3137 = vmatpush2.msra.mxu0 0.0
    %3138 = vmatprep.subr.mxu0 0.0
    %3139 = vmatpush2.msra.mxu0 0.0
    %3140 = vmatprep.subr.mxu0 0.0
    %3141 = vmatpush2.msra.mxu0 0.0
    %3142 = vmatprep.subr.mxu0 0.0
    %3143 = vmatpush2.msra.mxu0 0.0
    %3144 = vmatprep.subr.mxu0 0.0
    %3145 = vmatpush2.msra.mxu0 0.0
    %3146 = vmatprep.subr.mxu0 0.0
    %3147 = vmatpush2.msra.mxu0 0.0
    %3148 = vmatprep.subr.mxu0 0.0
    %3149 = vmatpush2.msra.mxu0 0.0
    %3150 = vmatprep.subr.mxu0 0.0
    %3151 = vmatpush2.msra.mxu0 0.0
    %3152 = vmatprep.subr.mxu0 0.0
    %3153 = vmatpush2.msra.mxu0 0.0
    %3154 = vmatprep.subr.mxu0 0.0
    %3155 = vmatpush2.msra.mxu0 0.0
    %3156 = vmatprep.mubr.f32.mxu0 0.0
    %3157 = vmatmul.mubr.f32.gmra.mxu0 %v3090
    %v3158 = vpop.f32.mrf.mxu0
    %v3159 = vadd.f32 0.0, %v3158
    %v3160 = vpop.f32.mrf.mxu0
    %3161 = vdwg.mxu0
    %v3163 = vsel %vm2562, %v2650, 0
    %3165 = vmatprep.subr.mxu0 0.0
    %3166 = vmatpush1.msra.mxu0 0.0
    %3167 = vmatprep.subr.mxu0 0.0
    %3168 = vmatpush1.msra.mxu0 0.0
    %3169 = vmatprep.subr.mxu0 0.0
    %3170 = vmatpush1.msra.mxu0 0.0
    %3171 = vmatprep.subr.mxu0 0.0
    %3172 = vmatpush1.msra.mxu0 0.0
    %3173 = vmatprep.subr.mxu0 0.0
    %3174 = vmatpush1.msra.mxu0 0.0
    %3175 = vmatprep.subr.mxu0 0.0
    %3176 = vmatpush1.msra.mxu0 0.0
    %3177 = vmatprep.subr.mxu0 0.0
    %3178 = vmatpush1.msra.mxu0 0.0
    %3179 = vmatprep.subr.mxu0 0.0
    %3180 = vmatpush1.msra.mxu0 0.0
    %3181 = vmatprep.subr.mxu0 0.0
    %3182 = vmatpush1.msra.mxu0 0.0
    %3183 = vmatprep.subr.mxu0 0.0
    %3184 = vmatpush1.msra.mxu0 0.0
    %3185 = vmatprep.subr.mxu0 0.0
    %3186 = vmatpush1.msra.mxu0 0.0
    %3187 = vmatprep.subr.mxu0 0.0
    %3188 = vmatpush1.msra.mxu0 0.0
    %3189 = vmatprep.subr.mxu0 0.0
    %3190 = vmatpush1.msra.mxu0 0.0
    %3191 = vmatprep.subr.mxu0 0.0
    %3192 = vmatpush1.msra.mxu0 0.0
    %3193 = vmatprep.subr.mxu0 0.0
    %3194 = vmatpush1.msra.mxu0 0.0
    %3195 = vmatprep.subr.mxu0 0.0
    %3196 = vmatpush1.msra.mxu0 %v1942
    %3197 = vmatprep.subr.mxu0 0.0
    %3198 = vmatpush2.msra.mxu0 0.0
    %3199 = vmatprep.subr.mxu0 0.0
    %3200 = vmatpush2.msra.mxu0 0.0
    %3201 = vmatprep.subr.mxu0 0.0
    %3202 = vmatpush2.msra.mxu0 0.0
    %3203 = vmatprep.subr.mxu0 0.0
    %3204 = vmatpush2.msra.mxu0 0.0
    %3205 = vmatprep.subr.mxu0 0.0
    %3206 = vmatpush2.msra.mxu0 0.0
    %3207 = vmatprep.subr.mxu0 0.0
    %3208 = vmatpush2.msra.mxu0 0.0
    %3209 = vmatprep.subr.mxu0 0.0
    %3210 = vmatpush2.msra.mxu0 0.0
    %3211 = vmatprep.subr.mxu0 0.0
    %3212 = vmatpush2.msra.mxu0 0.0
    %3213 = vmatprep.subr.mxu0 0.0
    %3214 = vmatpush2.msra.mxu0 0.0
    %3215 = vmatprep.subr.mxu0 0.0
    %3216 = vmatpush2.msra.mxu0 0.0
    %3217 = vmatprep.subr.mxu0 0.0
    %3218 = vmatpush2.msra.mxu0 0.0
    %3219 = vmatprep.subr.mxu0 0.0
    %3220 = vmatpush2.msra.mxu0 0.0
    %3221 = vmatprep.subr.mxu0 0.0
    %3222 = vmatpush2.msra.mxu0 0.0
    %3223 = vmatprep.subr.mxu0 0.0
    %3224 = vmatpush2.msra.mxu0 0.0
    %3225 = vmatprep.subr.mxu0 0.0
    %3226 = vmatpush2.msra.mxu0 0.0
    %3227 = vmatprep.subr.mxu0 0.0
    %3228 = vmatpush2.msra.mxu0 0.0
    %3229 = vmatprep.mubr.f32.mxu0 0.0
    %3230 = vmatmul.mubr.f32.gmra.mxu0 %v3163
    %v3231 = vpop.f32.mrf.mxu0
    %v3232 = vadd.f32 0.0, %v3231
    %v3233 = vpop.f32.mrf.mxu0
    %3234 = vdwg.mxu0
    %v3235 = vld [vmem:[%s4] sm:$0xff]
    %v3236 = vld [vmem:[%s4 + $0x8] sm:$0xff]
    %v3237 = vld [vmem:[%s4 + $0x10] sm:$0xff]
    %v3238 = vld [vmem:[%s4 + $0x18] sm:$0xff]
    %v3239 = vld [vmem:[%s4 + $0x20] sm:$0xff]
    %v3240 = vld [vmem:[%s4 + $0x28] sm:$0xff]
    %v3241 = vld [vmem:[%s4 + $0x30] sm:$0xff]
    %v3242 = vld [vmem:[%s4 + $0x38] sm:$0xff]
    %v3243 = vld [vmem:[%s4 + $0x40] sm:$0xff]
    %v3244 = vld [vmem:[%s4 + $0x48] sm:$0xff]
    %v3245 = vld [vmem:[%s4 + $0x50] sm:$0xff]
    %v3246 = vld [vmem:[%s4 + $0x58] sm:$0xff]
    %v3247 = vld [vmem:[%s4 + $0x60] sm:$0xff]
    %v3248 = vld [vmem:[%s4 + $0x68] sm:$0xff]
    %v3249 = vld [vmem:[%s4 + $0x70] sm:$0xff]
    %v3250 = vld [vmem:[%s4 + $0x78] sm:$0xff]
    %v3252 = vsel %vm1945, %v2721, 0
    %3254 = vmatprep.subr.mxu0 0.0
    %3255 = vmatpush1.msra.mxu0 0.0
    %3256 = vmatprep.subr.mxu0 0.0
    %3257 = vmatpush1.msra.mxu0 0.0
    %3258 = vmatprep.subr.mxu0 0.0
    %3259 = vmatpush1.msra.mxu0 0.0
    %3260 = vmatprep.subr.mxu0 0.0
    %3261 = vmatpush1.msra.mxu0 0.0
    %3262 = vmatprep.subr.mxu0 0.0
    %3263 = vmatpush1.msra.mxu0 0.0
    %3264 = vmatprep.subr.mxu0 0.0
    %3265 = vmatpush1.msra.mxu0 0.0
    %3266 = vmatprep.subr.mxu0 0.0
    %3267 = vmatpush1.msra.mxu0 0.0
    %3268 = vmatprep.subr.mxu0 0.0
    %3269 = vmatpush1.msra.mxu0 0.0
    %3270 = vmatprep.subr.mxu0 0.0
    %3271 = vmatpush1.msra.mxu0 0.0
    %3272 = vmatprep.subr.mxu0 0.0
    %3273 = vmatpush1.msra.mxu0 0.0
    %3274 = vmatprep.subr.mxu0 0.0
    %3275 = vmatpush1.msra.mxu0 0.0
    %3276 = vmatprep.subr.mxu0 0.0
    %3277 = vmatpush1.msra.mxu0 0.0
    %3278 = vmatprep.subr.mxu0 0.0
    %3279 = vmatpush1.msra.mxu0 0.0
    %3280 = vmatprep.subr.mxu0 0.0
    %3281 = vmatpush1.msra.mxu0 0.0
    %3282 = vmatprep.subr.mxu0 0.0
    %3283 = vmatpush1.msra.mxu0 %v3236
    %3284 = vmatprep.subr.mxu0 0.0
    %3285 = vmatpush1.msra.mxu0 %v3235
    %3286 = vmatprep.subr.mxu0 0.0
    %3287 = vmatpush2.msra.mxu0 0.0
    %3288 = vmatprep.subr.mxu0 0.0
    %3289 = vmatpush2.msra.mxu0 0.0
    %3290 = vmatprep.subr.mxu0 0.0
    %3291 = vmatpush2.msra.mxu0 0.0
    %3292 = vmatprep.subr.mxu0 0.0
    %3293 = vmatpush2.msra.mxu0 0.0
    %3294 = vmatprep.subr.mxu0 0.0
    %3295 = vmatpush2.msra.mxu0 0.0
    %3296 = vmatprep.subr.mxu0 0.0
    %3297 = vmatpush2.msra.mxu0 0.0
    %3298 = vmatprep.subr.mxu0 0.0
    %3299 = vmatpush2.msra.mxu0 0.0
    %3300 = vmatprep.subr.mxu0 0.0
    %3301 = vmatpush2.msra.mxu0 0.0
    %3302 = vmatprep.subr.mxu0 0.0
    %3303 = vmatpush2.msra.mxu0 0.0
    %3304 = vmatprep.subr.mxu0 0.0
    %3305 = vmatpush2.msra.mxu0 0.0
    %3306 = vmatprep.subr.mxu0 0.0
    %3307 = vmatpush2.msra.mxu0 0.0
    %3308 = vmatprep.subr.mxu0 0.0
    %3309 = vmatpush2.msra.mxu0 0.0
    %3310 = vmatprep.subr.mxu0 0.0
    %3311 = vmatpush2.msra.mxu0 0.0
    %3312 = vmatprep.subr.mxu0 0.0
    %3313 = vmatpush2.msra.mxu0 0.0
    %3314 = vmatprep.subr.mxu0 0.0
    %3315 = vmatpush2.msra.mxu0 0.0
    %3316 = vmatprep.subr.mxu0 0.0
    %3317 = vmatpush2.msra.mxu0 0.0
    %3318 = vmatprep.mubr.f32.mxu0 0.0
    %3319 = vmatmul.mubr.f32.gmra.mxu0 %v3252
    %v3320 = vpop.f32.mrf.mxu0
    %v3321 = vadd.f32 0.0, %v3320
    %v3322 = vpop.f32.mrf.mxu0
    %3323 = vdwg.mxu0
    %v3325 = vsel %vm1945, %v2794, 0
    %3327 = vmatprep.subr.mxu0 0.0
    %3328 = vmatpush1.msra.mxu0 0.0
    %3329 = vmatprep.subr.mxu0 0.0
    %3330 = vmatpush1.msra.mxu0 0.0
    %3331 = vmatprep.subr.mxu0 0.0
    %3332 = vmatpush1.msra.mxu0 0.0
    %3333 = vmatprep.subr.mxu0 0.0
    %3334 = vmatpush1.msra.mxu0 0.0
    %3335 = vmatprep.subr.mxu0 0.0
    %3336 = vmatpush1.msra.mxu0 0.0
    %3337 = vmatprep.subr.mxu0 0.0
    %3338 = vmatpush1.msra.mxu0 0.0
    %3339 = vmatprep.subr.mxu0 0.0
    %3340 = vmatpush1.msra.mxu0 0.0
    %3341 = vmatprep.subr.mxu0 0.0
    %3342 = vmatpush1.msra.mxu0 0.0
    %3343 = vmatprep.subr.mxu0 0.0
    %3344 = vmatpush1.msra.mxu0 0.0
    %3345 = vmatprep.subr.mxu0 0.0
    %3346 = vmatpush1.msra.mxu0 0.0
    %3347 = vmatprep.subr.mxu0 0.0
    %3348 = vmatpush1.msra.mxu0 0.0
    %3349 = vmatprep.subr.mxu0 0.0
    %3350 = vmatpush1.msra.mxu0 0.0
    %3351 = vmatprep.subr.mxu0 0.0
    %3352 = vmatpush1.msra.mxu0 0.0
    %3353 = vmatprep.subr.mxu0 0.0
    %3354 = vmatpush1.msra.mxu0 0.0
    %3355 = vmatprep.subr.mxu0 0.0
    %3356 = vmatpush1.msra.mxu0 %v3238
    %3357 = vmatprep.subr.mxu0 0.0
    %3358 = vmatpush1.msra.mxu0 %v3237
    %3359 = vmatprep.subr.mxu0 0.0
    %3360 = vmatpush2.msra.mxu0 0.0
    %3361 = vmatprep.subr.mxu0 0.0
    %3362 = vmatpush2.msra.mxu0 0.0
    %3363 = vmatprep.subr.mxu0 0.0
    %3364 = vmatpush2.msra.mxu0 0.0
    %3365 = vmatprep.subr.mxu0 0.0
    %3366 = vmatpush2.msra.mxu0 0.0
    %3367 = vmatprep.subr.mxu0 0.0
    %3368 = vmatpush2.msra.mxu0 0.0
    %3369 = vmatprep.subr.mxu0 0.0
    %3370 = vmatpush2.msra.mxu0 0.0
    %3371 = vmatprep.subr.mxu0 0.0
    %3372 = vmatpush2.msra.mxu0 0.0
    %3373 = vmatprep.subr.mxu0 0.0
    %3374 = vmatpush2.msra.mxu0 0.0
    %3375 = vmatprep.subr.mxu0 0.0
    %3376 = vmatpush2.msra.mxu0 0.0
    %3377 = vmatprep.subr.mxu0 0.0
    %3378 = vmatpush2.msra.mxu0 0.0
    %3379 = vmatprep.subr.mxu0 0.0
    %3380 = vmatpush2.msra.mxu0 0.0
    %3381 = vmatprep.subr.mxu0 0.0
    %3382 = vmatpush2.msra.mxu0 0.0
    %3383 = vmatprep.subr.mxu0 0.0
    %3384 = vmatpush2.msra.mxu0 0.0
    %3385 = vmatprep.subr.mxu0 0.0
    %3386 = vmatpush2.msra.mxu0 0.0
    %3387 = vmatprep.subr.mxu0 0.0
    %3388 = vmatpush2.msra.mxu0 0.0
    %3389 = vmatprep.subr.mxu0 0.0
    %3390 = vmatpush2.msra.mxu0 0.0
    %3391 = vmatprep.mubr.f32.mxu0 0.0
    %3392 = vmatmul.mubr.f32.gmra.mxu0 %v3325
    %v3393 = vpop.f32.mrf.mxu0
    %v3394 = vadd.f32 0.0, %v3393
    %v3395 = vpop.f32.mrf.mxu0
    %3396 = vdwg.mxu0
    %v3398 = vsel %vm1945, %v2867, 0
    %3400 = vmatprep.subr.mxu0 0.0
    %3401 = vmatpush1.msra.mxu0 0.0
    %3402 = vmatprep.subr.mxu0 0.0
    %3403 = vmatpush1.msra.mxu0 0.0
    %3404 = vmatprep.subr.mxu0 0.0
    %3405 = vmatpush1.msra.mxu0 0.0
    %3406 = vmatprep.subr.mxu0 0.0
    %3407 = vmatpush1.msra.mxu0 0.0
    %3408 = vmatprep.subr.mxu0 0.0
    %3409 = vmatpush1.msra.mxu0 0.0
    %3410 = vmatprep.subr.mxu0 0.0
    %3411 = vmatpush1.msra.mxu0 0.0
    %3412 = vmatprep.subr.mxu0 0.0
    %3413 = vmatpush1.msra.mxu0 0.0
    %3414 = vmatprep.subr.mxu0 0.0
    %3415 = vmatpush1.msra.mxu0 0.0
    %3416 = vmatprep.subr.mxu0 0.0
    %3417 = vmatpush1.msra.mxu0 0.0
    %3418 = vmatprep.subr.mxu0 0.0
    %3419 = vmatpush1.msra.mxu0 0.0
    %3420 = vmatprep.subr.mxu0 0.0
    %3421 = vmatpush1.msra.mxu0 0.0
    %3422 = vmatprep.subr.mxu0 0.0
    %3423 = vmatpush1.msra.mxu0 0.0
    %3424 = vmatprep.subr.mxu0 0.0
    %3425 = vmatpush1.msra.mxu0 0.0
    %3426 = vmatprep.subr.mxu0 0.0
    %3427 = vmatpush1.msra.mxu0 0.0
    %3428 = vmatprep.subr.mxu0 0.0
    %3429 = vmatpush1.msra.mxu0 %v3240
    %3430 = vmatprep.subr.mxu0 0.0
    %3431 = vmatpush1.msra.mxu0 %v3239
    %3432 = vmatprep.subr.mxu0 0.0
    %3433 = vmatpush2.msra.mxu0 0.0
    %3434 = vmatprep.subr.mxu0 0.0
    %3435 = vmatpush2.msra.mxu0 0.0
    %3436 = vmatprep.subr.mxu0 0.0
    %3437 = vmatpush2.msra.mxu0 0.0
    %3438 = vmatprep.subr.mxu0 0.0
    %3439 = vmatpush2.msra.mxu0 0.0
    %3440 = vmatprep.subr.mxu0 0.0
    %3441 = vmatpush2.msra.mxu0 0.0
    %3442 = vmatprep.subr.mxu0 0.0
    %3443 = vmatpush2.msra.mxu0 0.0
    %3444 = vmatprep.subr.mxu0 0.0
    %3445 = vmatpush2.msra.mxu0 0.0
    %3446 = vmatprep.subr.mxu0 0.0
    %3447 = vmatpush2.msra.mxu0 0.0
    %3448 = vmatprep.subr.mxu0 0.0
    %3449 = vmatpush2.msra.mxu0 0.0
    %3450 = vmatprep.subr.mxu0 0.0
    %3451 = vmatpush2.msra.mxu0 0.0
    %3452 = vmatprep.subr.mxu0 0.0
    %3453 = vmatpush2.msra.mxu0 0.0
    %3454 = vmatprep.subr.mxu0 0.0
    %3455 = vmatpush2.msra.mxu0 0.0
    %3456 = vmatprep.subr.mxu0 0.0
    %3457 = vmatpush2.msra.mxu0 0.0
    %3458 = vmatprep.subr.mxu0 0.0
    %3459 = vmatpush2.msra.mxu0 0.0
    %3460 = vmatprep.subr.mxu0 0.0
    %3461 = vmatpush2.msra.mxu0 0.0
    %3462 = vmatprep.subr.mxu0 0.0
    %3463 = vmatpush2.msra.mxu0 0.0
    %3464 = vmatprep.mubr.f32.mxu0 0.0
    %3465 = vmatmul.mubr.f32.gmra.mxu0 %v3398
    %v3466 = vpop.f32.mrf.mxu0
    %v3467 = vadd.f32 0.0, %v3466
    %v3468 = vpop.f32.mrf.mxu0
    %3469 = vdwg.mxu0
    %v3471 = vsel %vm1945, %v2940, 0
    %3473 = vmatprep.subr.mxu0 0.0
    %3474 = vmatpush1.msra.mxu0 0.0
    %3475 = vmatprep.subr.mxu0 0.0
    %3476 = vmatpush1.msra.mxu0 0.0
    %3477 = vmatprep.subr.mxu0 0.0
    %3478 = vmatpush1.msra.mxu0 0.0
    %3479 = vmatprep.subr.mxu0 0.0
    %3480 = vmatpush1.msra.mxu0 0.0
    %3481 = vmatprep.subr.mxu0 0.0
    %3482 = vmatpush1.msra.mxu0 0.0
    %3483 = vmatprep.subr.mxu0 0.0
    %3484 = vmatpush1.msra.mxu0 0.0
    %3485 = vmatprep.subr.mxu0 0.0
    %3486 = vmatpush1.msra.mxu0 0.0
    %3487 = vmatprep.subr.mxu0 0.0
    %3488 = vmatpush1.msra.mxu0 0.0
    %3489 = vmatprep.subr.mxu0 0.0
    %3490 = vmatpush1.msra.mxu0 0.0
    %3491 = vmatprep.subr.mxu0 0.0
    %3492 = vmatpush1.msra.mxu0 0.0
    %3493 = vmatprep.subr.mxu0 0.0
    %3494 = vmatpush1.msra.mxu0 0.0
    %3495 = vmatprep.subr.mxu0 0.0
    %3496 = vmatpush1.msra.mxu0 0.0
    %3497 = vmatprep.subr.mxu0 0.0
    %3498 = vmatpush1.msra.mxu0 0.0
    %3499 = vmatprep.subr.mxu0 0.0
    %3500 = vmatpush1.msra.mxu0 0.0
    %3501 = vmatprep.subr.mxu0 0.0
    %3502 = vmatpush1.msra.mxu0 %v3242
    %3503 = vmatprep.subr.mxu0 0.0
    %3504 = vmatpush1.msra.mxu0 %v3241
    %3505 = vmatprep.subr.mxu0 0.0
    %3506 = vmatpush2.msra.mxu0 0.0
    %3507 = vmatprep.subr.mxu0 0.0
    %3508 = vmatpush2.msra.mxu0 0.0
    %3509 = vmatprep.subr.mxu0 0.0
    %3510 = vmatpush2.msra.mxu0 0.0
    %3511 = vmatprep.subr.mxu0 0.0
    %3512 = vmatpush2.msra.mxu0 0.0
    %3513 = vmatprep.subr.mxu0 0.0
    %3514 = vmatpush2.msra.mxu0 0.0
    %3515 = vmatprep.subr.mxu0 0.0
    %3516 = vmatpush2.msra.mxu0 0.0
    %3517 = vmatprep.subr.mxu0 0.0
    %3518 = vmatpush2.msra.mxu0 0.0
    %3519 = vmatprep.subr.mxu0 0.0
    %3520 = vmatpush2.msra.mxu0 0.0
    %3521 = vmatprep.subr.mxu0 0.0
    %3522 = vmatpush2.msra.mxu0 0.0
    %3523 = vmatprep.subr.mxu0 0.0
    %3524 = vmatpush2.msra.mxu0 0.0
    %3525 = vmatprep.subr.mxu0 0.0
    %3526 = vmatpush2.msra.mxu0 0.0
    %3527 = vmatprep.subr.mxu0 0.0
    %3528 = vmatpush2.msra.mxu0 0.0
    %3529 = vmatprep.subr.mxu0 0.0
    %3530 = vmatpush2.msra.mxu0 0.0
    %3531 = vmatprep.subr.mxu0 0.0
    %3532 = vmatpush2.msra.mxu0 0.0
    %3533 = vmatprep.subr.mxu0 0.0
    %3534 = vmatpush2.msra.mxu0 0.0
    %3535 = vmatprep.subr.mxu0 0.0
    %3536 = vmatpush2.msra.mxu0 0.0
    %3537 = vmatprep.mubr.f32.mxu0 0.0
    %3538 = vmatmul.mubr.f32.gmra.mxu0 %v3471
    %v3539 = vpop.f32.mrf.mxu0
    %v3540 = vadd.f32 0.0, %v3539
    %v3541 = vpop.f32.mrf.mxu0
    %3542 = vdwg.mxu0
    %v3544 = vsel %vm1945, %v3013, 0
    %3546 = vmatprep.subr.mxu0 0.0
    %3547 = vmatpush1.msra.mxu0 0.0
    %3548 = vmatprep.subr.mxu0 0.0
    %3549 = vmatpush1.msra.mxu0 0.0
    %3550 = vmatprep.subr.mxu0 0.0
    %3551 = vmatpush1.msra.mxu0 0.0
    %3552 = vmatprep.subr.mxu0 0.0
    %3553 = vmatpush1.msra.mxu0 0.0
    %3554 = vmatprep.subr.mxu0 0.0
    %3555 = vmatpush1.msra.mxu0 0.0
    %3556 = vmatprep.subr.mxu0 0.0
    %3557 = vmatpush1.msra.mxu0 0.0
    %3558 = vmatprep.subr.mxu0 0.0
    %3559 = vmatpush1.msra.mxu0 0.0
    %3560 = vmatprep.subr.mxu0 0.0
    %3561 = vmatpush1.msra.mxu0 0.0
    %3562 = vmatprep.subr.mxu0 0.0
    %3563 = vmatpush1.msra.mxu0 0.0
    %3564 = vmatprep.subr.mxu0 0.0
    %3565 = vmatpush1.msra.mxu0 0.0
    %3566 = vmatprep.subr.mxu0 0.0
    %3567 = vmatpush1.msra.mxu0 0.0
    %3568 = vmatprep.subr.mxu0 0.0
    %3569 = vmatpush1.msra.mxu0 0.0
    %3570 = vmatprep.subr.mxu0 0.0
    %3571 = vmatpush1.msra.mxu0 0.0
    %3572 = vmatprep.subr.mxu0 0.0
    %3573 = vmatpush1.msra.mxu0 0.0
    %3574 = vmatprep.subr.mxu0 0.0
    %3575 = vmatpush1.msra.mxu0 %v3244
    %3576 = vmatprep.subr.mxu0 0.0
    %3577 = vmatpush1.msra.mxu0 %v3243
    %3578 = vmatprep.subr.mxu0 0.0
    %3579 = vmatpush2.msra.mxu0 0.0
    %3580 = vmatprep.subr.mxu0 0.0
    %3581 = vmatpush2.msra.mxu0 0.0
    %3582 = vmatprep.subr.mxu0 0.0
    %3583 = vmatpush2.msra.mxu0 0.0
    %3584 = vmatprep.subr.mxu0 0.0
    %3585 = vmatpush2.msra.mxu0 0.0
    %3586 = vmatprep.subr.mxu0 0.0
    %3587 = vmatpush2.msra.mxu0 0.0
    %3588 = vmatprep.subr.mxu0 0.0
    %3589 = vmatpush2.msra.mxu0 0.0
    %3590 = vmatprep.subr.mxu0 0.0
    %3591 = vmatpush2.msra.mxu0 0.0
    %3592 = vmatprep.subr.mxu0 0.0
    %3593 = vmatpush2.msra.mxu0 0.0
    %3594 = vmatprep.subr.mxu0 0.0
    %3595 = vmatpush2.msra.mxu0 0.0
    %3596 = vmatprep.subr.mxu0 0.0
    %3597 = vmatpush2.msra.mxu0 0.0
    %3598 = vmatprep.subr.mxu0 0.0
    %3599 = vmatpush2.msra.mxu0 0.0
    %3600 = vmatprep.subr.mxu0 0.0
    %3601 = vmatpush2.msra.mxu0 0.0
    %3602 = vmatprep.subr.mxu0 0.0
    %3603 = vmatpush2.msra.mxu0 0.0
    %3604 = vmatprep.subr.mxu0 0.0
    %3605 = vmatpush2.msra.mxu0 0.0
    %3606 = vmatprep.subr.mxu0 0.0
    %3607 = vmatpush2.msra.mxu0 0.0
    %3608 = vmatprep.subr.mxu0 0.0
    %3609 = vmatpush2.msra.mxu0 0.0
    %3610 = vmatprep.mubr.f32.mxu0 0.0
    %3611 = vmatmul.mubr.f32.gmra.mxu0 %v3544
    %v3612 = vpop.f32.mrf.mxu0
    %v3613 = vadd.f32 0.0, %v3612
    %v3614 = vpop.f32.mrf.mxu0
    %3615 = vdwg.mxu0
    %v3617 = vsel %vm1945, %v3086, 0
    %3619 = vmatprep.subr.mxu0 0.0
    %3620 = vmatpush1.msra.mxu0 0.0
    %3621 = vmatprep.subr.mxu0 0.0
    %3622 = vmatpush1.msra.mxu0 0.0
    %3623 = vmatprep.subr.mxu0 0.0
    %3624 = vmatpush1.msra.mxu0 0.0
    %3625 = vmatprep.subr.mxu0 0.0
    %3626 = vmatpush1.msra.mxu0 0.0
    %3627 = vmatprep.subr.mxu0 0.0
    %3628 = vmatpush1.msra.mxu0 0.0
    %3629 = vmatprep.subr.mxu0 0.0
    %3630 = vmatpush1.msra.mxu0 0.0
    %3631 = vmatprep.subr.mxu0 0.0
    %3632 = vmatpush1.msra.mxu0 0.0
    %3633 = vmatprep.subr.mxu0 0.0
    %3634 = vmatpush1.msra.mxu0 0.0
    %3635 = vmatprep.subr.mxu0 0.0
    %3636 = vmatpush1.msra.mxu0 0.0
    %3637 = vmatprep.subr.mxu0 0.0
    %3638 = vmatpush1.msra.mxu0 0.0
    %3639 = vmatprep.subr.mxu0 0.0
    %3640 = vmatpush1.msra.mxu0 0.0
    %3641 = vmatprep.subr.mxu0 0.0
    %3642 = vmatpush1.msra.mxu0 0.0
    %3643 = vmatprep.subr.mxu0 0.0
    %3644 = vmatpush1.msra.mxu0 0.0
    %3645 = vmatprep.subr.mxu0 0.0
    %3646 = vmatpush1.msra.mxu0 0.0
    %3647 = vmatprep.subr.mxu0 0.0
    %3648 = vmatpush1.msra.mxu0 %v3246
    %3649 = vmatprep.subr.mxu0 0.0
    %3650 = vmatpush1.msra.mxu0 %v3245
    %3651 = vmatprep.subr.mxu0 0.0
    %3652 = vmatpush2.msra.mxu0 0.0
    %3653 = vmatprep.subr.mxu0 0.0
    %3654 = vmatpush2.msra.mxu0 0.0
    %3655 = vmatprep.subr.mxu0 0.0
    %3656 = vmatpush2.msra.mxu0 0.0
    %3657 = vmatprep.subr.mxu0 0.0
    %3658 = vmatpush2.msra.mxu0 0.0
    %3659 = vmatprep.subr.mxu0 0.0
    %3660 = vmatpush2.msra.mxu0 0.0
    %3661 = vmatprep.subr.mxu0 0.0
    %3662 = vmatpush2.msra.mxu0 0.0
    %3663 = vmatprep.subr.mxu0 0.0
    %3664 = vmatpush2.msra.mxu0 0.0
    %3665 = vmatprep.subr.mxu0 0.0
    %3666 = vmatpush2.msra.mxu0 0.0
    %3667 = vmatprep.subr.mxu0 0.0
    %3668 = vmatpush2.msra.mxu0 0.0
    %3669 = vmatprep.subr.mxu0 0.0
    %3670 = vmatpush2.msra.mxu0 0.0
    %3671 = vmatprep.subr.mxu0 0.0
    %3672 = vmatpush2.msra.mxu0 0.0
    %3673 = vmatprep.subr.mxu0 0.0
    %3674 = vmatpush2.msra.mxu0 0.0
    %3675 = vmatprep.subr.mxu0 0.0
    %3676 = vmatpush2.msra.mxu0 0.0
    %3677 = vmatprep.subr.mxu0 0.0
    %3678 = vmatpush2.msra.mxu0 0.0
    %3679 = vmatprep.subr.mxu0 0.0
    %3680 = vmatpush2.msra.mxu0 0.0
    %3681 = vmatprep.subr.mxu0 0.0
    %3682 = vmatpush2.msra.mxu0 0.0
    %3683 = vmatprep.mubr.f32.mxu0 0.0
    %3684 = vmatmul.mubr.f32.gmra.mxu0 %v3617
    %v3685 = vpop.f32.mrf.mxu0
    %v3686 = vadd.f32 0.0, %v3685
    %v3687 = vpop.f32.mrf.mxu0
    %3688 = vdwg.mxu0
    %v3690 = vsel %vm1945, %v3159, 0
    %3692 = vmatprep.subr.mxu0 0.0
    %3693 = vmatpush1.msra.mxu0 0.0
    %3694 = vmatprep.subr.mxu0 0.0
    %3695 = vmatpush1.msra.mxu0 0.0
    %3696 = vmatprep.subr.mxu0 0.0
    %3697 = vmatpush1.msra.mxu0 0.0
    %3698 = vmatprep.subr.mxu0 0.0
    %3699 = vmatpush1.msra.mxu0 0.0
    %3700 = vmatprep.subr.mxu0 0.0
    %3701 = vmatpush1.msra.mxu0 0.0
    %3702 = vmatprep.subr.mxu0 0.0
    %3703 = vmatpush1.msra.mxu0 0.0
    %3704 = vmatprep.subr.mxu0 0.0
    %3705 = vmatpush1.msra.mxu0 0.0
    %3706 = vmatprep.subr.mxu0 0.0
    %3707 = vmatpush1.msra.mxu0 0.0
    %3708 = vmatprep.subr.mxu0 0.0
    %3709 = vmatpush1.msra.mxu0 0.0
    %3710 = vmatprep.subr.mxu0 0.0
    %3711 = vmatpush1.msra.mxu0 0.0
    %3712 = vmatprep.subr.mxu0 0.0
    %3713 = vmatpush1.msra.mxu0 0.0
    %3714 = vmatprep.subr.mxu0 0.0
    %3715 = vmatpush1.msra.mxu0 0.0
    %3716 = vmatprep.subr.mxu0 0.0
    %3717 = vmatpush1.msra.mxu0 0.0
    %3718 = vmatprep.subr.mxu0 0.0
    %3719 = vmatpush1.msra.mxu0 0.0
    %3720 = vmatprep.subr.mxu0 0.0
    %3721 = vmatpush1.msra.mxu0 %v3248
    %3722 = vmatprep.subr.mxu0 0.0
    %3723 = vmatpush1.msra.mxu0 %v3247
    %3724 = vmatprep.subr.mxu0 0.0
    %3725 = vmatpush2.msra.mxu0 0.0
    %3726 = vmatprep.subr.mxu0 0.0
    %3727 = vmatpush2.msra.mxu0 0.0
    %3728 = vmatprep.subr.mxu0 0.0
    %3729 = vmatpush2.msra.mxu0 0.0
    %3730 = vmatprep.subr.mxu0 0.0
    %3731 = vmatpush2.msra.mxu0 0.0
    %3732 = vmatprep.subr.mxu0 0.0
    %3733 = vmatpush2.msra.mxu0 0.0
    %3734 = vmatprep.subr.mxu0 0.0
    %3735 = vmatpush2.msra.mxu0 0.0
    %3736 = vmatprep.subr.mxu0 0.0
    %3737 = vmatpush2.msra.mxu0 0.0
    %3738 = vmatprep.subr.mxu0 0.0
    %3739 = vmatpush2.msra.mxu0 0.0
    %3740 = vmatprep.subr.mxu0 0.0
    %3741 = vmatpush2.msra.mxu0 0.0
    %3742 = vmatprep.subr.mxu0 0.0
    %3743 = vmatpush2.msra.mxu0 0.0
    %3744 = vmatprep.subr.mxu0 0.0
    %3745 = vmatpush2.msra.mxu0 0.0
    %3746 = vmatprep.subr.mxu0 0.0
    %3747 = vmatpush2.msra.mxu0 0.0
    %3748 = vmatprep.subr.mxu0 0.0
    %3749 = vmatpush2.msra.mxu0 0.0
    %3750 = vmatprep.subr.mxu0 0.0
    %3751 = vmatpush2.msra.mxu0 0.0
    %3752 = vmatprep.subr.mxu0 0.0
    %3753 = vmatpush2.msra.mxu0 0.0
    %3754 = vmatprep.subr.mxu0 0.0
    %3755 = vmatpush2.msra.mxu0 0.0
    %3756 = vmatprep.mubr.f32.mxu0 0.0
    %3757 = vmatmul.mubr.f32.gmra.mxu0 %v3690
    %v3758 = vpop.f32.mrf.mxu0
    %v3759 = vadd.f32 0.0, %v3758
    %v3760 = vpop.f32.mrf.mxu0
    %3761 = vdwg.mxu0
    %v3763 = vsel %vm1945, %v3232, 0
    %3765 = vmatprep.subr.mxu0 0.0
    %3766 = vmatpush1.msra.mxu0 0.0
    %3767 = vmatprep.subr.mxu0 0.0
    %3768 = vmatpush1.msra.mxu0 0.0
    %3769 = vmatprep.subr.mxu0 0.0
    %3770 = vmatpush1.msra.mxu0 0.0
    %3771 = vmatprep.subr.mxu0 0.0
    %3772 = vmatpush1.msra.mxu0 0.0
    %3773 = vmatprep.subr.mxu0 0.0
    %3774 = vmatpush1.msra.mxu0 0.0
    %3775 = vmatprep.subr.mxu0 0.0
    %3776 = vmatpush1.msra.mxu0 0.0
    %3777 = vmatprep.subr.mxu0 0.0
    %3778 = vmatpush1.msra.mxu0 0.0
    %3779 = vmatprep.subr.mxu0 0.0
    %3780 = vmatpush1.msra.mxu0 0.0
    %3781 = vmatprep.subr.mxu0 0.0
    %3782 = vmatpush1.msra.mxu0 0.0
    %3783 = vmatprep.subr.mxu0 0.0
    %3784 = vmatpush1.msra.mxu0 0.0
    %3785 = vmatprep.subr.mxu0 0.0
    %3786 = vmatpush1.msra.mxu0 0.0
    %3787 = vmatprep.subr.mxu0 0.0
    %3788 = vmatpush1.msra.mxu0 0.0
    %3789 = vmatprep.subr.mxu0 0.0
    %3790 = vmatpush1.msra.mxu0 0.0
    %3791 = vmatprep.subr.mxu0 0.0
    %3792 = vmatpush1.msra.mxu0 0.0
    %3793 = vmatprep.subr.mxu0 0.0
    %3794 = vmatpush1.msra.mxu0 %v3250
    %3795 = vmatprep.subr.mxu0 0.0
    %3796 = vmatpush1.msra.mxu0 %v3249
    %3797 = vmatprep.subr.mxu0 0.0
    %3798 = vmatpush2.msra.mxu0 0.0
    %3799 = vmatprep.subr.mxu0 0.0
    %3800 = vmatpush2.msra.mxu0 0.0
    %3801 = vmatprep.subr.mxu0 0.0
    %3802 = vmatpush2.msra.mxu0 0.0
    %3803 = vmatprep.subr.mxu0 0.0
    %3804 = vmatpush2.msra.mxu0 0.0
    %3805 = vmatprep.subr.mxu0 0.0
    %3806 = vmatpush2.msra.mxu0 0.0
    %3807 = vmatprep.subr.mxu0 0.0
    %3808 = vmatpush2.msra.mxu0 0.0
    %3809 = vmatprep.subr.mxu0 0.0
    %3810 = vmatpush2.msra.mxu0 0.0
    %3811 = vmatprep.subr.mxu0 0.0
    %3812 = vmatpush2.msra.mxu0 0.0
    %3813 = vmatprep.subr.mxu0 0.0
    %3814 = vmatpush2.msra.mxu0 0.0
    %3815 = vmatprep.subr.mxu0 0.0
    %3816 = vmatpush2.msra.mxu0 0.0
    %3817 = vmatprep.subr.mxu0 0.0
    %3818 = vmatpush2.msra.mxu0 0.0
    %3819 = vmatprep.subr.mxu0 0.0
    %3820 = vmatpush2.msra.mxu0 0.0
    %3821 = vmatprep.subr.mxu0 0.0
    %3822 = vmatpush2.msra.mxu0 0.0
    %3823 = vmatprep.subr.mxu0 0.0
    %3824 = vmatpush2.msra.mxu0 0.0
    %3825 = vmatprep.subr.mxu0 0.0
    %3826 = vmatpush2.msra.mxu0 0.0
    %3827 = vmatprep.subr.mxu0 0.0
    %3828 = vmatpush2.msra.mxu0 0.0
    %3829 = vmatprep.mubr.f32.mxu0 0.0
    %3830 = vmatmul.mubr.f32.gmra.mxu0 %v3763
    %v3831 = vpop.f32.mrf.mxu0
    %v3832 = vadd.f32 0.0, %v3831
    %v3833 = vpop.f32.mrf.mxu0
    %3834 = vdwg.mxu0
    %v3835 = vadd.f32 %v3321, %v3467
    %v3836 = vadd.f32 %v3394, %v3540
    %v3837 = vadd.f32 %v3835, %v3613
    %v3838 = vadd.f32 %v3836, %v3686
    %v3839 = vadd.f32 %v3837, %v3759
    %v3840 = vadd.f32 %v3838, %v3832
    %v3841 = vld [vmem:[%s5] sm:$0x1]
    %v3843 = vlaneseq
    %v3844 = vshrl.u32 %v3843, 7
    %v3845 = vsub.s32 0, %v3844
    %v3846 = vrot.slane %v3841, %v3845
    %v3848 = vadd.f32 %v3839, %v3846
    %v3849 = vadd.f32 %v3840, %v3846
    %3850 = vst.msk [vmem:[#allocation2] sm:$0xff] %vm98, %v3848
    %3851 = vst.msk [vmem:[#allocation2 + $0x8] sm:$0xff] %vm98, %v3849
    // Predicated region
    $region26: #{tpu_custom_call.1} parent=1 // pred_check
      _
    $region27: #{tpu_custom_call.1} parent=1 // pred_check_branch
      %3853 = sbr.rel (0) target = $region29
    $region28: #{tpu_custom_call.1} parent=1 // pred_region
      %s3855 = ssub.s32 256, 256
      %3856 = vsyncadd [#allocation3], %s3855
      %s3857 = sshll.u32 [#allocation2], 4
      %s3858 = int_to_ptr.vmem [resolvable:$true] %s3857
      %3863 = dma.vmem_to_hbm [thread:$0]  %s3858, 256, %s6, [#allocation3], 128, 128, 8
    $region29: #{tpu_custom_call.1} parent=1 // pred_fallthru
      _
    // Predicated region
    $region30: #{tpu_custom_call.1} parent=1 // pred_check
      _
    $region31: #{tpu_custom_call.1} parent=1 // pred_check_branch
      %3865 = sbr.rel (0) target = $region33
    $region32: #{tpu_custom_call.1} parent=1 // pred_region
      %3866 = dma.done [#allocation3], 256
    $region33: #{tpu_custom_call.1} parent=1 // pred_fallthru
      _
    %3867 = vsyncpa [#allocation3], 1

</llo_original>
